<compile_context>
chip_gen: v5e
topology: v5e:2x2
jax: 0.10.0
libtpu: 0.0.40
codegen_flags: <defaults>
</compile_context>

<pallas_src>
import functools

import numpy as np
import jax
import jax.numpy as jnp
from jax.experimental import pallas as pl
from jax.experimental.pallas import tpu as pltpu


def cnn_decoder_kernel(
    xw_ref,                              # [1, tile_L+16, C8]  overlapping input window (compute dtype)
    w1_ref, s1_ref, t1_ref,              # conv1 weight [5,C8,Hp]; folded BN scale/shift [1,Hp] (f32)
    w2_ref, s2_ref, t2_ref,              # conv2 weight [5,Hp,Hp]; folded BN scale/shift
    w3r_ref, br_ref,                     # conv3 (+) readout fused weight [5,Hp,Vp]; fused bias [1,Vp] (f32)
    logp_ref, logits_ref,                # outputs [tile_L, Vp] f32
    *, L, tile_L, vocab,
):
    f32 = jnp.float32
    cd = xw_ref.dtype                    # compute dtype (bf16 by default)
    tile = pl.program_id(0) * tile_L     # global row of this tile's first output row
    xw = xw_ref[0]                       # [tile_L+16, C8]; window row w <-> global row tile-8+w
    n1 = tile_L + 12                     # conv1 rows computed (halo 6 each side)
    n2 = tile_L + 8                      # conv2 rows computed (halo 4 each side)

    def mm(a, b):                        # bf16 x bf16 -> f32 accumulate on the MXU
        return jnp.dot(a, b, preferred_element_type=f32)

    # ---- Conv1 (k=5, pad=2) as 5 shifted matmuls + folded bias/BN1 + ReLU --------
    acc = mm(xw[0:n1], w1_ref[0])
    for k in range(1, 5):
        acc = acc + mm(xw[k:k + n1], w1_ref[k])
    h1 = jnp.maximum(acc * s1_ref[...] + t1_ref[...], 0.0)
    # emulate the next conv's zero padding: rows outside [0, L) must be zero
    # (cheap VPU work; only boundary tiles actually have such rows)
    g1 = tile - 6 + jax.lax.broadcasted_iota(jnp.int32, (n1, 1), 0)
    h1 = jnp.where((g1 >= 0) & (g1 < L), h1, 0.0)
    h1 = h1.astype(cd)                   # single cast per layer

    # ---- Conv2 + folded bias/BN2 + ReLU -----------------------------------------
    acc = mm(h1[0:n2], w2_ref[0])
    for k in range(1, 5):
        acc = acc + mm(h1[k:k + n2], w2_ref[k])
    h2 = jnp.maximum(acc * s2_ref[...] + t2_ref[...], 0.0)
    g2 = tile - 4 + jax.lax.broadcasted_iota(jnp.int32, (n2, 1), 0)
    h2 = jnp.where((g2 >= 0) & (g2 < L), h2, 0.0)
    h2 = h2.astype(cd)

    # ---- Conv3 fused with readout (no nonlinearity in between -> exact fold) ----
    acc = mm(h2[2:2 + tile_L], w3r_ref[0])
    for k in range(1, 5):
        acc = acc + mm(h2[k + 2:k + 2 + tile_L], w3r_ref[k])
    logits = acc + br_ref[...]                            # [tile_L, Vp] f32, lane-dense

    # ---- log_softmax over the real vocab columns (f32) --------------------------
    col = jax.lax.broadcasted_iota(jnp.int32, logits.shape, 1)
    masked = jnp.where(col < vocab, logits, -1e30)        # ignore lane padding
    m = jnp.max(masked, axis=-1, keepdims=True)
    lse = m + jnp.log(jnp.sum(jnp.exp(masked - m), axis=-1, keepdims=True))

    logits_ref[...] = logits
    logp_ref[...] = logits - lse


def _round_up(x, m):
    return (x + m - 1) // m * m


def cnn_decoder_forward(h_V, batch_id, params, *, vocab=33, tile_l=512,
                        compute_dtype=jnp.bfloat16):
    """(log_probs, logits) = CNNDecoder.forward(h_V, batch_id), BatchNorm in eval mode."""
    del batch_id                                   # unused by the reference forward()
    L, C = h_V.shape
    H = params["w1"].shape[-1]
    f32 = jnp.float32
    cd = compute_dtype
    eps = 1e-5
    hi = jax.lax.Precision.HIGHEST

    C8 = _round_up(C, 8)
    Hp = _round_up(H, 128)
    Vp = _round_up(vocab, 128)
    # Big tiles amortize per-grid-step overhead, but keep >= 2 tiles when possible so
    # both v7x TensorCores get work (the single grid axis is "parallel").
    tile_L = min(_round_up(tile_l, 8), max(8, _round_up((L + 1) // 2, 8)))
    Lp = _round_up(L, tile_L)
    T = Lp // tile_L
    Wn = tile_L + 16                               # halo of 8 rows each side (>= 6 needed)

    # --- fold conv bias + eval-mode BatchNorm into one per-channel scale/shift ----
    def bn_fold(b, gamma, beta, mean, var):
        s = gamma.astype(f32) / jnp.sqrt(var.astype(f32) + eps)
        return s, (b.astype(f32) - mean.astype(f32)) * s + beta.astype(f32)

    s1, sh1 = bn_fold(params["b1"], params["bn1_gamma"], params["bn1_beta"],
                      params["bn1_mean"], params["bn1_var"])
    s2, sh2 = bn_fold(params["b2"], params["bn2_gamma"], params["bn2_beta"],
                      params["bn2_mean"], params["bn2_var"])

    # --- fuse conv3 with the readout: logits = sum_k shift_k(h2)@(w3[k]@wr) + (b3@wr + br)
    w3r = jnp.einsum("khc,cv->khv", params["w3"].astype(f32),
                     params["wr"].astype(f32), precision=hi)           # [5, H, vocab]
    br3 = jnp.dot(params["b3"].astype(f32), params["wr"].astype(f32),
                  precision=hi) + params["br"].astype(f32)             # [vocab]

    def pad_w(w, cin_p, cout_p):       # [5, cin, cout] -> [5, cin_p, cout_p], compute dtype
        return jnp.pad(w.astype(f32), ((0, 0), (0, cin_p - w.shape[1]),
                                       (0, cout_p - w.shape[2]))).astype(cd)

    def pad_v(v, n_p):                 # [n] -> [1, n_p] f32 (applied to the f32 accumulator)
        return jnp.pad(v.astype(f32), (0, n_p - v.shape[0])).reshape(1, n_p)

    w1 = pad_w(params["w1"], C8, Hp)   # HBM holds bf16 weights on the default path
    w2 = pad_w(params["w2"], Hp, Hp)
    w3r = pad_w(w3r, Hp, Vp)
    s1, sh1, s2, sh2 = pad_v(s1, Hp), pad_v(sh1, Hp), pad_v(s2, Hp), pad_v(sh2, Hp)
    br3 = pad_v(br3, Vp)

    # --- overlapping halo windows, gathered on the UN-padded channel dim in compute
    #     dtype (much less input HBM traffic than a 128-lane f32 copy).  Window rows
    #     outside [0, L) are zero, which reproduces conv1's zero padding exactly.
    # TODO(synk): for very long sequences replace this gather with memory_space=pl.ANY
    #             + a manually double-buffered make_async_copy of each halo window.
    xp = jnp.pad(h_V.astype(cd), ((8, Lp - L + 8), (0, C8 - C)))        # [Lp+16, C8]
    rows = jnp.arange(T)[:, None] * tile_L + jnp.arange(Wn)[None, :]    # [T, Wn]
    x_win = xp[rows]                                                    # [T, Wn, C8]

    kernel = functools.partial(cnn_decoder_kernel, L=L, tile_L=tile_L, vocab=vocab)

    def full(shape):
        return pl.BlockSpec(shape, lambda t: (0,) * len(shape))

    in_specs = [
        pl.BlockSpec((1, Wn, C8), lambda t: (t, 0, 0)),   # only per-step streaming operand
        full((5, C8, Hp)), full((1, Hp)), full((1, Hp)),
        full((5, Hp, Hp)), full((1, Hp)), full((1, Hp)),
        full((5, Hp, Vp)), full((1, Vp)),
    ]
    out_spec = pl.BlockSpec((tile_L, Vp), lambda t: (t, 0))

    log_probs_p, logits_p = pl.pallas_call(
        kernel,
        out_shape=(jax.ShapeDtypeStruct((Lp, Vp), f32),
                   jax.ShapeDtypeStruct((Lp, Vp), f32)),
        grid=(T,),
        in_specs=in_specs,
        out_specs=(out_spec, out_spec),
        compiler_params=pltpu.CompilerParams(
            dimension_semantics=("parallel",),     # independent tiles -> megacore on v7x
            vmem_limit_bytes=32 * 1024 * 1024),
    )(x_win, w1, s1, sh1, w2, s2, sh2, w3r, br3)

    # Rows >= L and lanes >= vocab of the padded outputs are unspecified; only the
    # slice below is meaningful.
    return log_probs_p[:L, :vocab], logits_p[:L, :vocab]


def reference(h_V, params, vocab):
    """Pure-JAX replica of the PyTorch forward (BatchNorm in eval mode)."""
    f32 = jnp.float32
    eps = 1e-5
    hi = jax.lax.Precision.HIGHEST

    def conv1d(x, w, b):                           # x [L, cin], w [5, cin, cout]
        L = x.shape[0]
        xp = jnp.pad(x, ((2, 2), (0, 0)))
        acc = jnp.zeros((L, w.shape[-1]), f32)
        for k in range(5):
            acc = acc + jnp.dot(xp[k:k + L], w[k], precision=hi)
        return acc + b[None, :]

    def bn(y, g, b, m, v):
        s = g / jnp.sqrt(v + eps)
        return y * s + (b - m * s)

    h = jax.nn.relu(bn(conv1d(h_V, params["w1"], params["b1"]),
                       params["bn1_gamma"], params["bn1_beta"],
                       params["bn1_mean"], params["bn1_var"]))
    h = jax.nn.relu(bn(conv1d(h, params["w2"], params["b2"]),
                       params["bn2_gamma"], params["bn2_beta"],
                       params["bn2_mean"], params["bn2_var"]))
    h = conv1d(h, params["w3"], params["b3"])
    logits = jnp.dot(h, params["wr"], precision=hi) + params["br"][None, :]
    return jax.nn.log_softmax(logits, axis=-1), logits


if __name__ == "__main__":
    key = jax.random.PRNGKey(0)
    L, C_in, H, vocab = 200, 32, 64, 33            # small, but multi-tile (2 tiles -> both v7x cores)
    ks = jax.random.split(key, 20)

    def init(k, shape, scale=0.1):
        return scale * jax.random.normal(k, shape, jnp.float32)

    h_V = jax.random.normal(ks[0], (L, C_in), jnp.float32)
    batch_id = jnp.zeros((L,), jnp.int32)          # unused by forward()

    params = {
        # conv weights stored as [k, c_in, c_out]  (== torch Conv1d weight.permute(2,1,0))
        "w1": init(ks[1], (5, C_in, H)), "b1": init(ks[2], (H,)),
        "bn1_gamma": 1.0 + init(ks[3], (H,)), "bn1_beta": init(ks[4], (H,)),
        "bn1_mean": init(ks[5], (H,)), "bn1_var": 1.0 + jnp.abs(init(ks[6], (H,))),
        "w2": init(ks[7], (5, H, H)), "b2": init(ks[8], (H,)),
        "bn2_gamma": 1.0 + init(ks[9], (H,)), "bn2_beta": init(ks[10], (H,)),
        "bn2_mean": init(ks[11], (H,)), "bn2_var": 1.0 + jnp.abs(init(ks[12], (H,))),
        "w3": init(ks[13], (5, H, H)), "b3": init(ks[14], (H,)),
        "wr": init(ks[15], (H, vocab)), "br": init(ks[16], (vocab,)),
    }

    ref_lp, ref_lg = reference(h_V, params, vocab)

    # Default fast path: bf16 operands on the MXU, f32 accumulation.  Loose tolerance
    # (bf16 operand rounding accumulates over 3 conv layers); the tight numerical check
    # of the kernel structure is the f32 run below.
    log_probs, logits = cnn_decoder_forward(h_V, batch_id, params, vocab=vocab)
    log_probs, logits = jax.block_until_ready((log_probs, logits))
    assert log_probs.shape == (L, vocab) and logits.shape == (L, vocab)
    np.testing.assert_allclose(np.asarray(logits), np.asarray(ref_lg), atol=1e-1, rtol=1e-1)
    np.testing.assert_allclose(np.asarray(log_probs), np.asarray(ref_lp), atol=1e-1, rtol=1e-1)

    # f32 compute path: tight check of the tiling / halo / fusion arithmetic.
    lp32, lg32 = cnn_decoder_forward(h_V, batch_id, params, vocab=vocab,
                                     compute_dtype=jnp.float32)
    lp32, lg32 = jax.block_until_ready((lp32, lg32))
    np.testing.assert_allclose(np.asarray(lg32), np.asarray(ref_lg), atol=2e-2, rtol=2e-2)
    np.testing.assert_allclose(np.asarray(lp32), np.asarray(ref_lp), atol=2e-2, rtol=2e-2)

    print("KERNEL_OK")
</pallas_src>

<mosaic_0001>
module attributes {stable_mosaic.version = 11 : i64} {
  func.func @cnn_decoder_kernel(%arg0: i32, %arg1: memref<1x120x32xbf16, #tpu.memory_space<vmem>>, %arg2: memref<5x32x128xbf16, #tpu.memory_space<vmem>>, %arg3: memref<1x128xf32, #tpu.memory_space<vmem>>, %arg4: memref<1x128xf32, #tpu.memory_space<vmem>>, %arg5: memref<5x128x128xbf16, #tpu.memory_space<vmem>>, %arg6: memref<1x128xf32, #tpu.memory_space<vmem>>, %arg7: memref<1x128xf32, #tpu.memory_space<vmem>>, %arg8: memref<5x128x128xbf16, #tpu.memory_space<vmem>>, %arg9: memref<1x128xf32, #tpu.memory_space<vmem>>, %arg10: memref<104x128xf32, #tpu.memory_space<vmem>>, %arg11: memref<104x128xf32, #tpu.memory_space<vmem>>) attributes {dimension_semantics = [#tpu.dimension_semantics<parallel>], iteration_bounds = array<i64: 2>, scalar_prefetch = 0 : i64, scratch_operands = 0 : i64, tpu.core_type = #tpu.core_type<tc>, window_params = [{transform_indices = @transform_0, window_bounds = array<i64: 1, 120, 32>}, {pipeline_mode = #tpu.pipeline_mode<synchronous>, transform_indices = @transform_1, window_bounds = array<i64: 5, 32, 128>}, {pipeline_mode = #tpu.pipeline_mode<synchronous>, transform_indices = @transform_2, window_bounds = array<i64: 1, 128>}, {pipeline_mode = #tpu.pipeline_mode<synchronous>, transform_indices = @transform_3, window_bounds = array<i64: 1, 128>}, {pipeline_mode = #tpu.pipeline_mode<synchronous>, transform_indices = @transform_4, window_bounds = array<i64: 5, 128, 128>}, {pipeline_mode = #tpu.pipeline_mode<synchronous>, transform_indices = @transform_5, window_bounds = array<i64: 1, 128>}, {pipeline_mode = #tpu.pipeline_mode<synchronous>, transform_indices = @transform_6, window_bounds = array<i64: 1, 128>}, {pipeline_mode = #tpu.pipeline_mode<synchronous>, transform_indices = @transform_7, window_bounds = array<i64: 5, 128, 128>}, {pipeline_mode = #tpu.pipeline_mode<synchronous>, transform_indices = @transform_8, window_bounds = array<i64: 1, 128>}, {transform_indices = @transform_9, window_bounds = array<i64: 104, 128>}, {transform_indices = @transform_10, window_bounds = array<i64: 104, 128>}]} {
    %c104_i32 = arith.constant 104 : i32
    %0 = arith.muli %arg0, %c104_i32 : i32
    %c0 = arith.constant 0 : index
    %c0_0 = arith.constant 0 : index
    %c0_1 = arith.constant 0 : index
    %1 = vector.load %arg1[%c0, %c0_0, %c0_1] : memref<1x120x32xbf16, #tpu.memory_space<vmem>>, vector<1x120x32xbf16>
    %2 = vector.shape_cast %1 : vector<1x120x32xbf16> to vector<120x32xbf16>
    %3 = vector.extract_strided_slice %2 {offsets = [0, 0], sizes = [116, 32], strides = [1, 1]} : vector<120x32xbf16> to vector<116x32xbf16>
    %c0_2 = arith.constant 0 : index
    %c0_3 = arith.constant 0 : index
    %c0_4 = arith.constant 0 : index
    %4 = vector.load %arg2[%c0_2, %c0_3, %c0_4] : memref<5x32x128xbf16, #tpu.memory_space<vmem>>, vector<1x32x128xbf16>
    %5 = vector.shape_cast %4 : vector<1x32x128xbf16> to vector<32x128xbf16>
    %cst = arith.constant dense<0.000000e+00> : vector<116x128xf32>
    %6 = tpu.matmul %3, %5, %cst {dimension_numbers = #tpu.dot_dimension_numbers<[1], [0], [0], [1], [0, 0, 1, 1], [], []>} : vector<116x32xbf16>, vector<32x128xbf16>, vector<116x128xf32> -> vector<116x128xf32>
    %7 = vector.extract_strided_slice %2 {offsets = [1, 0], sizes = [116, 32], strides = [1, 1]} : vector<120x32xbf16> to vector<116x32xbf16>
    %c1 = arith.constant 1 : index
    %c0_5 = arith.constant 0 : index
    %c0_6 = arith.constant 0 : index
    %8 = vector.load %arg2[%c1, %c0_5, %c0_6] : memref<5x32x128xbf16, #tpu.memory_space<vmem>>, vector<1x32x128xbf16>
    %9 = vector.shape_cast %8 : vector<1x32x128xbf16> to vector<32x128xbf16>
    %cst_7 = arith.constant dense<0.000000e+00> : vector<116x128xf32>
    %10 = tpu.matmul %7, %9, %cst_7 {dimension_numbers = #tpu.dot_dimension_numbers<[1], [0], [0], [1], [0, 0, 1, 1], [], []>} : vector<116x32xbf16>, vector<32x128xbf16>, vector<116x128xf32> -> vector<116x128xf32>
    %11 = arith.addf %6, %10 : vector<116x128xf32>
    %12 = vector.extract_strided_slice %2 {offsets = [2, 0], sizes = [116, 32], strides = [1, 1]} : vector<120x32xbf16> to vector<116x32xbf16>
    %c2 = arith.constant 2 : index
    %c0_8 = arith.constant 0 : index
    %c0_9 = arith.constant 0 : index
    %13 = vector.load %arg2[%c2, %c0_8, %c0_9] : memref<5x32x128xbf16, #tpu.memory_space<vmem>>, vector<1x32x128xbf16>
    %14 = vector.shape_cast %13 : vector<1x32x128xbf16> to vector<32x128xbf16>
    %cst_10 = arith.constant dense<0.000000e+00> : vector<116x128xf32>
    %15 = tpu.matmul %12, %14, %cst_10 {dimension_numbers = #tpu.dot_dimension_numbers<[1], [0], [0], [1], [0, 0, 1, 1], [], []>} : vector<116x32xbf16>, vector<32x128xbf16>, vector<116x128xf32> -> vector<116x128xf32>
    %16 = arith.addf %11, %15 : vector<116x128xf32>
    %17 = vector.extract_strided_slice %2 {offsets = [3, 0], sizes = [116, 32], strides = [1, 1]} : vector<120x32xbf16> to vector<116x32xbf16>
    %c3 = arith.constant 3 : index
    %c0_11 = arith.constant 0 : index
    %c0_12 = arith.constant 0 : index
    %18 = vector.load %arg2[%c3, %c0_11, %c0_12] : memref<5x32x128xbf16, #tpu.memory_space<vmem>>, vector<1x32x128xbf16>
    %19 = vector.shape_cast %18 : vector<1x32x128xbf16> to vector<32x128xbf16>
    %cst_13 = arith.constant dense<0.000000e+00> : vector<116x128xf32>
    %20 = tpu.matmul %17, %19, %cst_13 {dimension_numbers = #tpu.dot_dimension_numbers<[1], [0], [0], [1], [0, 0, 1, 1], [], []>} : vector<116x32xbf16>, vector<32x128xbf16>, vector<116x128xf32> -> vector<116x128xf32>
    %21 = arith.addf %16, %20 : vector<116x128xf32>
    %22 = vector.extract_strided_slice %2 {offsets = [4, 0], sizes = [116, 32], strides = [1, 1]} : vector<120x32xbf16> to vector<116x32xbf16>
    %c4 = arith.constant 4 : index
    %c0_14 = arith.constant 0 : index
    %c0_15 = arith.constant 0 : index
    %23 = vector.load %arg2[%c4, %c0_14, %c0_15] : memref<5x32x128xbf16, #tpu.memory_space<vmem>>, vector<1x32x128xbf16>
    %24 = vector.shape_cast %23 : vector<1x32x128xbf16> to vector<32x128xbf16>
    %cst_16 = arith.constant dense<0.000000e+00> : vector<116x128xf32>
    %25 = tpu.matmul %22, %24, %cst_16 {dimension_numbers = #tpu.dot_dimension_numbers<[1], [0], [0], [1], [0, 0, 1, 1], [], []>} : vector<116x32xbf16>, vector<32x128xbf16>, vector<116x128xf32> -> vector<116x128xf32>
    %26 = arith.addf %21, %25 : vector<116x128xf32>
    %c0_17 = arith.constant 0 : index
    %c0_18 = arith.constant 0 : index
    %27 = vector.load %arg3[%c0_17, %c0_18] : memref<1x128xf32, #tpu.memory_space<vmem>>, vector<1x128xf32>
    %28 = vector.broadcast %27 : vector<1x128xf32> to vector<116x128xf32>
    %29 = arith.mulf %26, %28 : vector<116x128xf32>
    %c0_19 = arith.constant 0 : index
    %c0_20 = arith.constant 0 : index
    %30 = vector.load %arg4[%c0_19, %c0_20] : memref<1x128xf32, #tpu.memory_space<vmem>>, vector<1x128xf32>
    %31 = vector.broadcast %30 : vector<1x128xf32> to vector<116x128xf32>
    %32 = arith.addf %29, %31 : vector<116x128xf32>
    %cst_21 = arith.constant 0.000000e+00 : f32
    %33 = vector.broadcast %cst_21 : f32 to vector<116x128xf32>
    %34 = arith.maximumf %32, %33 : vector<116x128xf32>
    %c6_i32 = arith.constant 6 : i32
    %35 = arith.subi %0, %c6_i32 : i32
    %36 = tpu.iota {dimensions = array<i32: 0>} : vector<116x1xi32>
    %37 = vector.broadcast %35 : i32 to vector<116x1xi32>
    %38 = arith.addi %37, %36 : vector<116x1xi32>
    %c0_i32 = arith.constant 0 : i32
    %39 = vector.broadcast %c0_i32 : i32 to vector<116x1xi32>
    %40 = arith.cmpi sge, %38, %39 : vector<116x1xi32>
    %c200_i32 = arith.constant 200 : i32
    %41 = vector.broadcast %c200_i32 : i32 to vector<116x1xi32>
    %42 = arith.cmpi slt, %38, %41 : vector<116x1xi32>
    %43 = arith.andi %40, %42 : vector<116x1xi1>
    %cst_22 = arith.constant 0.000000e+00 : f32
    %44 = vector.shape_cast %43 : vector<116x1xi1> to vector<116x1xi1>
    %45 = vector.broadcast %44 : vector<116x1xi1> to vector<116x128xi1>
    %46 = vector.broadcast %cst_22 : f32 to vector<116x128xf32>
    %47 = arith.select %45, %34, %46 : vector<116x128xi1>, vector<116x128xf32>
    %48 = arith.truncf %47 : vector<116x128xf32> to vector<116x128xbf16>
    %49 = vector.extract_strided_slice %48 {offsets = [0, 0], sizes = [112, 128], strides = [1, 1]} : vector<116x128xbf16> to vector<112x128xbf16>
    %c0_23 = arith.constant 0 : index
    %c0_24 = arith.constant 0 : index
    %c0_25 = arith.constant 0 : index
    %50 = vector.load %arg5[%c0_23, %c0_24, %c0_25] : memref<5x128x128xbf16, #tpu.memory_space<vmem>>, vector<1x128x128xbf16>
    %51 = vector.shape_cast %50 : vector<1x128x128xbf16> to vector<128x128xbf16>
    %cst_26 = arith.constant dense<0.000000e+00> : vector<112x128xf32>
    %52 = tpu.matmul %49, %51, %cst_26 {dimension_numbers = #tpu.dot_dimension_numbers<[1], [0], [0], [1], [0, 0, 1, 1], [], []>} : vector<112x128xbf16>, vector<128x128xbf16>, vector<112x128xf32> -> vector<112x128xf32>
    %53 = vector.extract_strided_slice %48 {offsets = [1, 0], sizes = [112, 128], strides = [1, 1]} : vector<116x128xbf16> to vector<112x128xbf16>
    %c1_27 = arith.constant 1 : index
    %c0_28 = arith.constant 0 : index
    %c0_29 = arith.constant 0 : index
    %54 = vector.load %arg5[%c1_27, %c0_28, %c0_29] : memref<5x128x128xbf16, #tpu.memory_space<vmem>>, vector<1x128x128xbf16>
    %55 = vector.shape_cast %54 : vector<1x128x128xbf16> to vector<128x128xbf16>
    %cst_30 = arith.constant dense<0.000000e+00> : vector<112x128xf32>
    %56 = tpu.matmul %53, %55, %cst_30 {dimension_numbers = #tpu.dot_dimension_numbers<[1], [0], [0], [1], [0, 0, 1, 1], [], []>} : vector<112x128xbf16>, vector<128x128xbf16>, vector<112x128xf32> -> vector<112x128xf32>
    %57 = arith.addf %52, %56 : vector<112x128xf32>
    %58 = vector.extract_strided_slice %48 {offsets = [2, 0], sizes = [112, 128], strides = [1, 1]} : vector<116x128xbf16> to vector<112x128xbf16>
    %c2_31 = arith.constant 2 : index
    %c0_32 = arith.constant 0 : index
    %c0_33 = arith.constant 0 : index
    %59 = vector.load %arg5[%c2_31, %c0_32, %c0_33] : memref<5x128x128xbf16, #tpu.memory_space<vmem>>, vector<1x128x128xbf16>
    %60 = vector.shape_cast %59 : vector<1x128x128xbf16> to vector<128x128xbf16>
    %cst_34 = arith.constant dense<0.000000e+00> : vector<112x128xf32>
    %61 = tpu.matmul %58, %60, %cst_34 {dimension_numbers = #tpu.dot_dimension_numbers<[1], [0], [0], [1], [0, 0, 1, 1], [], []>} : vector<112x128xbf16>, vector<128x128xbf16>, vector<112x128xf32> -> vector<112x128xf32>
    %62 = arith.addf %57, %61 : vector<112x128xf32>
    %63 = vector.extract_strided_slice %48 {offsets = [3, 0], sizes = [112, 128], strides = [1, 1]} : vector<116x128xbf16> to vector<112x128xbf16>
    %c3_35 = arith.constant 3 : index
    %c0_36 = arith.constant 0 : index
    %c0_37 = arith.constant 0 : index
    %64 = vector.load %arg5[%c3_35, %c0_36, %c0_37] : memref<5x128x128xbf16, #tpu.memory_space<vmem>>, vector<1x128x128xbf16>
    %65 = vector.shape_cast %64 : vector<1x128x128xbf16> to vector<128x128xbf16>
    %cst_38 = arith.constant dense<0.000000e+00> : vector<112x128xf32>
    %66 = tpu.matmul %63, %65, %cst_38 {dimension_numbers = #tpu.dot_dimension_numbers<[1], [0], [0], [1], [0, 0, 1, 1], [], []>} : vector<112x128xbf16>, vector<128x128xbf16>, vector<112x128xf32> -> vector<112x128xf32>
    %67 = arith.addf %62, %66 : vector<112x128xf32>
    %68 = vector.extract_strided_slice %48 {offsets = [4, 0], sizes = [112, 128], strides = [1, 1]} : vector<116x128xbf16> to vector<112x128xbf16>
    %c4_39 = arith.constant 4 : index
    %c0_40 = arith.constant 0 : index
    %c0_41 = arith.constant 0 : index
    %69 = vector.load %arg5[%c4_39, %c0_40, %c0_41] : memref<5x128x128xbf16, #tpu.memory_space<vmem>>, vector<1x128x128xbf16>
    %70 = vector.shape_cast %69 : vector<1x128x128xbf16> to vector<128x128xbf16>
    %cst_42 = arith.constant dense<0.000000e+00> : vector<112x128xf32>
    %71 = tpu.matmul %68, %70, %cst_42 {dimension_numbers = #tpu.dot_dimension_numbers<[1], [0], [0], [1], [0, 0, 1, 1], [], []>} : vector<112x128xbf16>, vector<128x128xbf16>, vector<112x128xf32> -> vector<112x128xf32>
    %72 = arith.addf %67, %71 : vector<112x128xf32>
    %c0_43 = arith.constant 0 : index
    %c0_44 = arith.constant 0 : index
    %73 = vector.load %arg6[%c0_43, %c0_44] : memref<1x128xf32, #tpu.memory_space<vmem>>, vector<1x128xf32>
    %74 = vector.broadcast %73 : vector<1x128xf32> to vector<112x128xf32>
    %75 = arith.mulf %72, %74 : vector<112x128xf32>
    %c0_45 = arith.constant 0 : index
    %c0_46 = arith.constant 0 : index
    %76 = vector.load %arg7[%c0_45, %c0_46] : memref<1x128xf32, #tpu.memory_space<vmem>>, vector<1x128xf32>
    %77 = vector.broadcast %76 : vector<1x128xf32> to vector<112x128xf32>
    %78 = arith.addf %75, %77 : vector<112x128xf32>
    %cst_47 = arith.constant 0.000000e+00 : f32
    %79 = vector.broadcast %cst_47 : f32 to vector<112x128xf32>
    %80 = arith.maximumf %78, %79 : vector<112x128xf32>
    %c4_i32 = arith.constant 4 : i32
    %81 = arith.subi %0, %c4_i32 : i32
    %82 = tpu.iota {dimensions = array<i32: 0>} : vector<112x1xi32>
    %83 = vector.broadcast %81 : i32 to vector<112x1xi32>
    %84 = arith.addi %83, %82 : vector<112x1xi32>
    %c0_i32_48 = arith.constant 0 : i32
    %85 = vector.broadcast %c0_i32_48 : i32 to vector<112x1xi32>
    %86 = arith.cmpi sge, %84, %85 : vector<112x1xi32>
    %c200_i32_49 = arith.constant 200 : i32
    %87 = vector.broadcast %c200_i32_49 : i32 to vector<112x1xi32>
    %88 = arith.cmpi slt, %84, %87 : vector<112x1xi32>
    %89 = arith.andi %86, %88 : vector<112x1xi1>
    %cst_50 = arith.constant 0.000000e+00 : f32
    %90 = vector.shape_cast %89 : vector<112x1xi1> to vector<112x1xi1>
    %91 = vector.broadcast %90 : vector<112x1xi1> to vector<112x128xi1>
    %92 = vector.broadcast %cst_50 : f32 to vector<112x128xf32>
    %93 = arith.select %91, %80, %92 : vector<112x128xi1>, vector<112x128xf32>
    %94 = arith.truncf %93 : vector<112x128xf32> to vector<112x128xbf16>
    %95 = vector.extract_strided_slice %94 {offsets = [2, 0], sizes = [104, 128], strides = [1, 1]} : vector<112x128xbf16> to vector<104x128xbf16>
    %c0_51 = arith.constant 0 : index
    %c0_52 = arith.constant 0 : index
    %c0_53 = arith.constant 0 : index
    %96 = vector.load %arg8[%c0_51, %c0_52, %c0_53] : memref<5x128x128xbf16, #tpu.memory_space<vmem>>, vector<1x128x128xbf16>
    %97 = vector.shape_cast %96 : vector<1x128x128xbf16> to vector<128x128xbf16>
    %cst_54 = arith.constant dense<0.000000e+00> : vector<104x128xf32>
    %98 = tpu.matmul %95, %97, %cst_54 {dimension_numbers = #tpu.dot_dimension_numbers<[1], [0], [0], [1], [0, 0, 1, 1], [], []>} : vector<104x128xbf16>, vector<128x128xbf16>, vector<104x128xf32> -> vector<104x128xf32>
    %99 = vector.extract_strided_slice %94 {offsets = [3, 0], sizes = [104, 128], strides = [1, 1]} : vector<112x128xbf16> to vector<104x128xbf16>
    %c1_55 = arith.constant 1 : index
    %c0_56 = arith.constant 0 : index
    %c0_57 = arith.constant 0 : index
    %100 = vector.load %arg8[%c1_55, %c0_56, %c0_57] : memref<5x128x128xbf16, #tpu.memory_space<vmem>>, vector<1x128x128xbf16>
    %101 = vector.shape_cast %100 : vector<1x128x128xbf16> to vector<128x128xbf16>
    %cst_58 = arith.constant dense<0.000000e+00> : vector<104x128xf32>
    %102 = tpu.matmul %99, %101, %cst_58 {dimension_numbers = #tpu.dot_dimension_numbers<[1], [0], [0], [1], [0, 0, 1, 1], [], []>} : vector<104x128xbf16>, vector<128x128xbf16>, vector<104x128xf32> -> vector<104x128xf32>
    %103 = arith.addf %98, %102 : vector<104x128xf32>
    %104 = vector.extract_strided_slice %94 {offsets = [4, 0], sizes = [104, 128], strides = [1, 1]} : vector<112x128xbf16> to vector<104x128xbf16>
    %c2_59 = arith.constant 2 : index
    %c0_60 = arith.constant 0 : index
    %c0_61 = arith.constant 0 : index
    %105 = vector.load %arg8[%c2_59, %c0_60, %c0_61] : memref<5x128x128xbf16, #tpu.memory_space<vmem>>, vector<1x128x128xbf16>
    %106 = vector.shape_cast %105 : vector<1x128x128xbf16> to vector<128x128xbf16>
    %cst_62 = arith.constant dense<0.000000e+00> : vector<104x128xf32>
    %107 = tpu.matmul %104, %106, %cst_62 {dimension_numbers = #tpu.dot_dimension_numbers<[1], [0], [0], [1], [0, 0, 1, 1], [], []>} : vector<104x128xbf16>, vector<128x128xbf16>, vector<104x128xf32> -> vector<104x128xf32>
    %108 = arith.addf %103, %107 : vector<104x128xf32>
    %109 = vector.extract_strided_slice %94 {offsets = [5, 0], sizes = [104, 128], strides = [1, 1]} : vector<112x128xbf16> to vector<104x128xbf16>
    %c3_63 = arith.constant 3 : index
    %c0_64 = arith.constant 0 : index
    %c0_65 = arith.constant 0 : index
    %110 = vector.load %arg8[%c3_63, %c0_64, %c0_65] : memref<5x128x128xbf16, #tpu.memory_space<vmem>>, vector<1x128x128xbf16>
    %111 = vector.shape_cast %110 : vector<1x128x128xbf16> to vector<128x128xbf16>
    %cst_66 = arith.constant dense<0.000000e+00> : vector<104x128xf32>
    %112 = tpu.matmul %109, %111, %cst_66 {dimension_numbers = #tpu.dot_dimension_numbers<[1], [0], [0], [1], [0, 0, 1, 1], [], []>} : vector<104x128xbf16>, vector<128x128xbf16>, vector<104x128xf32> -> vector<104x128xf32>
    %113 = arith.addf %108, %112 : vector<104x128xf32>
    %114 = vector.extract_strided_slice %94 {offsets = [6, 0], sizes = [104, 128], strides = [1, 1]} : vector<112x128xbf16> to vector<104x128xbf16>
    %c4_67 = arith.constant 4 : index
    %c0_68 = arith.constant 0 : index
    %c0_69 = arith.constant 0 : index
    %115 = vector.load %arg8[%c4_67, %c0_68, %c0_69] : memref<5x128x128xbf16, #tpu.memory_space<vmem>>, vector<1x128x128xbf16>
    %116 = vector.shape_cast %115 : vector<1x128x128xbf16> to vector<128x128xbf16>
    %cst_70 = arith.constant dense<0.000000e+00> : vector<104x128xf32>
    %117 = tpu.matmul %114, %116, %cst_70 {dimension_numbers = #tpu.dot_dimension_numbers<[1], [0], [0], [1], [0, 0, 1, 1], [], []>} : vector<104x128xbf16>, vector<128x128xbf16>, vector<104x128xf32> -> vector<104x128xf32>
    %118 = arith.addf %113, %117 : vector<104x128xf32>
    %c0_71 = arith.constant 0 : index
    %c0_72 = arith.constant 0 : index
    %119 = vector.load %arg9[%c0_71, %c0_72] : memref<1x128xf32, #tpu.memory_space<vmem>>, vector<1x128xf32>
    %120 = vector.broadcast %119 : vector<1x128xf32> to vector<104x128xf32>
    %121 = arith.addf %118, %120 : vector<104x128xf32>
    %122 = tpu.iota {dimensions = array<i32: 1>} : vector<104x128xi32>
    %c33_i32 = arith.constant 33 : i32
    %123 = vector.broadcast %c33_i32 : i32 to vector<104x128xi32>
    %124 = arith.cmpi slt, %122, %123 : vector<104x128xi32>
    %cst_73 = arith.constant -1.000000e+30 : f32
    %125 = vector.broadcast %cst_73 : f32 to vector<104x128xf32>
    %126 = arith.select %124, %121, %125 : vector<104x128xi1>, vector<104x128xf32>
    %cst_74 = arith.constant dense<0xFF800000> : vector<104xf32>
    %127 = vector.multi_reduction <maximumf>, %126, %cst_74 [1] : vector<104x128xf32> to vector<104xf32>
    %128 = vector.shape_cast %127 : vector<104xf32> to vector<104x1xf32>
    %129 = vector.broadcast %128 : vector<104x1xf32> to vector<104x128xf32>
    %130 = arith.subf %126, %129 : vector<104x128xf32>
    %131 = math.exp %130 : vector<104x128xf32>
    %cst_75 = arith.constant dense<0.000000e+00> : vector<104xf32>
    %132 = vector.multi_reduction <add>, %131, %cst_75 [1] : vector<104x128xf32> to vector<104xf32>
    %133 = vector.shape_cast %132 : vector<104xf32> to vector<104x1xf32>
    %134 = math.log %133 : vector<104x1xf32>
    %135 = arith.addf %128, %134 : vector<104x1xf32>
    %c0_76 = arith.constant 0 : index
    %c0_77 = arith.constant 0 : index
    %136 = vector.load %arg11[%c0_76, %c0_77] : memref<104x128xf32, #tpu.memory_space<vmem>>, vector<104x128xf32>
    tpu.vector_store %arg11[%c0_76, %c0_77], %121 {strides = array<i32>} : memref<104x128xf32, #tpu.memory_space<vmem>>, vector<104x128xf32>,
    %137 = vector.broadcast %135 : vector<104x1xf32> to vector<104x128xf32>
    %138 = arith.subf %121, %137 : vector<104x128xf32>
    %c0_78 = arith.constant 0 : index
    %c0_79 = arith.constant 0 : index
    %139 = vector.load %arg10[%c0_78, %c0_79] : memref<104x128xf32, #tpu.memory_space<vmem>>, vector<104x128xf32>
    tpu.vector_store %arg10[%c0_78, %c0_79], %138 {strides = array<i32>} : memref<104x128xf32, #tpu.memory_space<vmem>>, vector<104x128xf32>,
    return
  }
  func.func @transform_0(%arg0: i32) -> (i32, i32, i32) {
    %c0_i32 = arith.constant 0 : i32
    %c0_i32_0 = arith.constant 0 : i32
    %c0_i32_1 = arith.constant 0 : i32
    return %arg0, %c0_i32, %c0_i32_0 : i32, i32, i32
  }
  func.func @transform_1(%arg0: i32) -> (i32, i32, i32) {
    %c0_i32 = arith.constant 0 : i32
    %c0_i32_0 = arith.constant 0 : i32
    %c0_i32_1 = arith.constant 0 : i32
    %c0_i32_2 = arith.constant 0 : i32
    return %c0_i32, %c0_i32_0, %c0_i32_1 : i32, i32, i32
  }
  func.func @transform_2(%arg0: i32) -> (i32, i32) {
    %c0_i32 = arith.constant 0 : i32
    %c0_i32_0 = arith.constant 0 : i32
    %c0_i32_1 = arith.constant 0 : i32
    return %c0_i32, %c0_i32_0 : i32, i32
  }
  func.func @transform_3(%arg0: i32) -> (i32, i32) {
    %c0_i32 = arith.constant 0 : i32
    %c0_i32_0 = arith.constant 0 : i32
    %c0_i32_1 = arith.constant 0 : i32
    return %c0_i32, %c0_i32_0 : i32, i32
  }
  func.func @transform_4(%arg0: i32) -> (i32, i32, i32) {
    %c0_i32 = arith.constant 0 : i32
    %c0_i32_0 = arith.constant 0 : i32
    %c0_i32_1 = arith.constant 0 : i32
    %c0_i32_2 = arith.constant 0 : i32
    return %c0_i32, %c0_i32_0, %c0_i32_1 : i32, i32, i32
  }
  func.func @transform_5(%arg0: i32) -> (i32, i32) {
    %c0_i32 = arith.constant 0 : i32
    %c0_i32_0 = arith.constant 0 : i32
    %c0_i32_1 = arith.constant 0 : i32
    return %c0_i32, %c0_i32_0 : i32, i32
  }
  func.func @transform_6(%arg0: i32) -> (i32, i32) {
    %c0_i32 = arith.constant 0 : i32
    %c0_i32_0 = arith.constant 0 : i32
    %c0_i32_1 = arith.constant 0 : i32
    return %c0_i32, %c0_i32_0 : i32, i32
  }
  func.func @transform_7(%arg0: i32) -> (i32, i32, i32) {
    %c0_i32 = arith.constant 0 : i32
    %c0_i32_0 = arith.constant 0 : i32
    %c0_i32_1 = arith.constant 0 : i32
    %c0_i32_2 = arith.constant 0 : i32
    return %c0_i32, %c0_i32_0, %c0_i32_1 : i32, i32, i32
  }
  func.func @transform_8(%arg0: i32) -> (i32, i32) {
    %c0_i32 = arith.constant 0 : i32
    %c0_i32_0 = arith.constant 0 : i32
    %c0_i32_1 = arith.constant 0 : i32
    return %c0_i32, %c0_i32_0 : i32, i32
  }
  func.func @transform_9(%arg0: i32) -> (i32, i32) {
    %c0_i32 = arith.constant 0 : i32
    %c0_i32_0 = arith.constant 0 : i32
    return %arg0, %c0_i32 : i32, i32
  }
  func.func @transform_10(%arg0: i32) -> (i32, i32) {
    %c0_i32 = arith.constant 0 : i32
    %c0_i32_0 = arith.constant 0 : i32
    return %arg0, %c0_i32 : i32, i32
  }
}

</mosaic_0001>

<llo_original>
// kernel: tpu_custom_call.1
$region0: #{tpu_custom_call.1}
  #allocation0 [shape = 'u32[]', space=smem, size = 0x4, offset = 0x4, fixed_abs, tag = 'smem constant byte address 0x4 - core index']
  #allocation1 [shape = 'u32[72,128]{1,0:T(1,128)}', space=vmem, size = 0x9000, scoped, tag = 'internal scratch']
  %s0 = inlined_call_operand.vmem [shape: bf16[2,120,32], index: 0, kind: input, shape index: {}]
  %s1 = inlined_call_operand.vmem [shape: bf16[5,32,128], index: 1, kind: input, shape index: {}]
  %s2 = inlined_call_operand.vmem [shape: f32[1,128], index: 2, kind: input, shape index: {}]
  %s3 = inlined_call_operand.vmem [shape: f32[1,128], index: 3, kind: input, shape index: {}]
  %s4 = inlined_call_operand.hbm [shape: bf16[5,128,128], index: 4, kind: input, shape index: {}]
  %s5 = inlined_call_operand.vmem [shape: f32[1,128], index: 5, kind: input, shape index: {}]
  %s6 = inlined_call_operand.vmem [shape: f32[1,128], index: 6, kind: input, shape index: {}]
  %s7 = inlined_call_operand.hbm [shape: bf16[5,128,128], index: 7, kind: input, shape index: {}]
  %s8 = inlined_call_operand.vmem [shape: f32[1,128], index: 8, kind: input, shape index: {}]
  %s9 = inlined_call_operand.hbm [shape: f32[208,128], index: 9, kind: output, shape index: {0}]
  %s10 = inlined_call_operand.hbm [shape: f32[208,128], index: 10, kind: output, shape index: {1}]
  %11 = xla_tuple %s9, %s10
  %s12 = sld [smem:[#allocation0]]
  $region85: #{tpu_custom_call.1} parent=0
    _
  %s14 = ssub.s32 1, %s12
  %s15 = scalar_select 0, %s14, %s12
  $region1: #{tpu_custom_call.1} parent=0
    #allocation2 [shape = 'u8[163840]{0}', space=vmem, size = 0x28000, scoped, tag = 'input window, operand 4, single buffered']
    #allocation3 [shape = 's32[2]{0}', space=sflag, size = 0x8, scoped, tag = 'scoped memory for tpu_custom_call.1']
    #allocation4 [shape = 's32[2]{0}', space=sflag, size = 0x8, scoped, tag = 'scoped memory for tpu_custom_call.1']
    #allocation5 [shape = 'u8[163840]{0}', space=vmem, size = 0x28000, scoped, tag = 'input window, operand 7, single buffered']
    #allocation6 [shape = 's32[1]{0}', space=sflag, size = 0x4, scoped, tag = 'scoped memory for tpu_custom_call.1']
    #allocation7 [shape = 'u8[106496]{0}', space=vmem, size = 0x1a000, scoped, tag = 'output window, operand 0']
    #allocation8 [shape = 'u8[106496]{0}', space=vmem, size = 0x1a000, scoped, tag = 'output window, operand 1']
    #allocation9 [shape = 's32[2]{0}', space=sflag, size = 0x8, scoped, tag = 'scoped memory for tpu_custom_call.1']
    %16 = vsyncpa [#allocation3], 0
    %17 = vsyncpa [#allocation6], 0
    %18 = vsyncpa [#allocation4], 0
    %s19 = scalar_lea.sflag [#allocation4], 1
    %20 = vsyncpa %s19, 0
    %21 = vsyncpa [#allocation9], 0
    %s22 = scalar_lea.sflag [#allocation9], 1
    %23 = vsyncpa %s22, 0
    loop: start=0, step=1, limit=4
    $region2: #{tpu_custom_call.1} parent=1 // loop_pre_header
      _
    $region3: #{tpu_custom_call.1} parent=1 // loop_header
      %s25 = sphi 0, %s29
      %p26 = scmp.ge.s32.totalorder %s25, 4
      %s35 = sphi 0, %s37
      %s38 = sphi 0, %s35
      %s39 = sphi 0, %s38
      %s55 = sphi 0, %s39
      %s59 = sphi 0, %s59
      %s61 = sphi 0, %s59
      %s62 = sphi 0, %s61
      %s76 = sphi 0, %s62
      %s80 = sphi 0, %s80
      %s82 = sphi 0, %s80
      %s83 = sphi 0, %s82
      %s97 = sphi 0, %s83
      %s101 = sphi 0, %s101
      %s103 = sphi 0, %s101
      %s104 = sphi 0, %s103
      %s118 = sphi 0, %s104
      %s122 = sphi 0, %s122
      %s124 = sphi 0, %s122
      %s125 = sphi 0, %s124
      %s139 = sphi 0, %s125
      %s143 = sphi 0, %s143
      %s145 = sphi 0, %s143
      %s146 = sphi 0, %s145
      %s160 = sphi 0, %s146
      %s164 = sphi 0, %s164
      %s166 = sphi 0, %s164
      %s167 = sphi 0, %s166
      %s181 = sphi 0, %s167
      %s185 = sphi 0, %s185
      %s187 = sphi 0, %s185
      %s188 = sphi 0, %s187
      %s202 = sphi 0, %s188
      %s206 = sphi 0, %s206
      %s208 = sphi 0, %s206
      %s209 = sphi 0, %s208
      %s223 = sphi 0, %s209
      %s229 = sphi 0, %s231
      %s232 = sphi 0, %s229
      %s233 = sphi 0, %s232
      %s249 = sphi 0, %s233
      %s255 = sphi 0, %s257
      %s258 = sphi 0, %s255
      %s259 = sphi 0, %s258
      %s275 = sphi 0, %s259
    $region4: #{tpu_custom_call.1} parent=1 // loop_header_branch
      %28 = sbr.rel (%p26) target = $region8
    $region5: #{tpu_custom_call.1} parent=1 // loop_body
      %s30 = ssub.s32 %s25, 1
      %s31 = ssub.s32 %s25, 2
      %s32 = sadd.s32 %s25, 1
      %s33 = ssub.s32 %s25, %s32
      %p34 = scmp.eq.s32.totalorder %s33, 0
      %s36 = sadd.s32 %s35, 1
      %s37 = scalar_select %p34, %s35, %s36
      %p40 = pneg %p34
      %p41 = scmp.eq.s32.totalorder %s25, 1
      %p42 = por %p40, %p41
      %p43 = scmp.ne.s32.totalorder %s35, %s38
      %p44 = scmp.eq.s32.totalorder %s25, 0
      %p45 = por %p43, %p44
      %p46 = scmp.ne.s32.totalorder %s35, %s38
      %p47 = scmp.eq.s32.totalorder %s30, 1
      %p48 = por %p46, %p47
      %p49 = scmp.ne.s32.totalorder %s38, %s39
      %p50 = scmp.eq.s32.totalorder %s30, 0
      %p51 = por %p49, %p50
      %p52 = scmp.ne.s32.totalorder %s38, %s39
      %p53 = scmp.eq.s32.totalorder %s31, 1
      %p54 = por %p52, %p53
      %p56 = scmp.ne.s32.totalorder %s39, %s55
      %p57 = scmp.eq.s32.totalorder %s31, 0
      %p58 = por %p56, %p57
      %s60 = sadd.s32 %s59, 1
      %p63 = scmp.eq.s32.totalorder %s25, 1
      %p64 = scmp.ne.s32.totalorder %s59, %s61
      %p65 = scmp.eq.s32.totalorder %s25, 0
      %p66 = por %p64, %p65
      %p67 = scmp.ne.s32.totalorder %s59, %s61
      %p68 = scmp.eq.s32.totalorder %s30, 1
      %p69 = por %p67, %p68
      %p70 = scmp.ne.s32.totalorder %s61, %s62
      %p71 = scmp.eq.s32.totalorder %s30, 0
      %p72 = por %p70, %p71
      %p73 = scmp.ne.s32.totalorder %s61, %s62
      %p74 = scmp.eq.s32.totalorder %s31, 1
      %p75 = por %p73, %p74
      %p77 = scmp.ne.s32.totalorder %s62, %s76
      %p78 = scmp.eq.s32.totalorder %s31, 0
      %p79 = por %p77, %p78
      %s81 = sadd.s32 %s80, 1
      %p84 = scmp.eq.s32.totalorder %s25, 1
      %p85 = scmp.ne.s32.totalorder %s80, %s82
      %p86 = scmp.eq.s32.totalorder %s25, 0
      %p87 = por %p85, %p86
      %p88 = scmp.ne.s32.totalorder %s80, %s82
      %p89 = scmp.eq.s32.totalorder %s30, 1
      %p90 = por %p88, %p89
      %p91 = scmp.ne.s32.totalorder %s82, %s83
      %p92 = scmp.eq.s32.totalorder %s30, 0
      %p93 = por %p91, %p92
      %p94 = scmp.ne.s32.totalorder %s82, %s83
      %p95 = scmp.eq.s32.totalorder %s31, 1
      %p96 = por %p94, %p95
      %p98 = scmp.ne.s32.totalorder %s83, %s97
      %p99 = scmp.eq.s32.totalorder %s31, 0
      %p100 = por %p98, %p99
      %s102 = sadd.s32 %s101, 1
      %p105 = scmp.eq.s32.totalorder %s25, 1
      %p106 = scmp.ne.s32.totalorder %s101, %s103
      %p107 = scmp.eq.s32.totalorder %s25, 0
      %p108 = por %p106, %p107
      %p109 = scmp.ne.s32.totalorder %s101, %s103
      %p110 = scmp.eq.s32.totalorder %s30, 1
      %p111 = por %p109, %p110
      %p112 = scmp.ne.s32.totalorder %s103, %s104
      %p113 = scmp.eq.s32.totalorder %s30, 0
      %p114 = por %p112, %p113
      %p115 = scmp.ne.s32.totalorder %s103, %s104
      %p116 = scmp.eq.s32.totalorder %s31, 1
      %p117 = por %p115, %p116
      %p119 = scmp.ne.s32.totalorder %s104, %s118
      %p120 = scmp.eq.s32.totalorder %s31, 0
      %p121 = por %p119, %p120
      %s123 = sadd.s32 %s122, 1
      %p126 = scmp.eq.s32.totalorder %s25, 1
      %p127 = scmp.ne.s32.totalorder %s122, %s124
      %p128 = scmp.eq.s32.totalorder %s25, 0
      %p129 = por %p127, %p128
      %p130 = scmp.ne.s32.totalorder %s122, %s124
      %p131 = scmp.eq.s32.totalorder %s30, 1
      %p132 = por %p130, %p131
      %p133 = scmp.ne.s32.totalorder %s124, %s125
      %p134 = scmp.eq.s32.totalorder %s30, 0
      %p135 = por %p133, %p134
      %p136 = scmp.ne.s32.totalorder %s124, %s125
      %p137 = scmp.eq.s32.totalorder %s31, 1
      %p138 = por %p136, %p137
      %p140 = scmp.ne.s32.totalorder %s125, %s139
      %p141 = scmp.eq.s32.totalorder %s31, 0
      %p142 = por %p140, %p141
      %s144 = sadd.s32 %s143, 1
      %p147 = scmp.eq.s32.totalorder %s25, 1
      %p148 = scmp.ne.s32.totalorder %s143, %s145
      %p149 = scmp.eq.s32.totalorder %s25, 0
      %p150 = por %p148, %p149
      %p151 = scmp.ne.s32.totalorder %s143, %s145
      %p152 = scmp.eq.s32.totalorder %s30, 1
      %p153 = por %p151, %p152
      %p154 = scmp.ne.s32.totalorder %s145, %s146
      %p155 = scmp.eq.s32.totalorder %s30, 0
      %p156 = por %p154, %p155
      %p157 = scmp.ne.s32.totalorder %s145, %s146
      %p158 = scmp.eq.s32.totalorder %s31, 1
      %p159 = por %p157, %p158
      %p161 = scmp.ne.s32.totalorder %s146, %s160
      %p162 = scmp.eq.s32.totalorder %s31, 0
      %p163 = por %p161, %p162
      %s165 = sadd.s32 %s164, 1
      %p168 = scmp.eq.s32.totalorder %s25, 1
      %p169 = scmp.ne.s32.totalorder %s164, %s166
      %p170 = scmp.eq.s32.totalorder %s25, 0
      %p171 = por %p169, %p170
      %p172 = scmp.ne.s32.totalorder %s164, %s166
      %p173 = scmp.eq.s32.totalorder %s30, 1
      %p174 = por %p172, %p173
      %p175 = scmp.ne.s32.totalorder %s166, %s167
      %p176 = scmp.eq.s32.totalorder %s30, 0
      %p177 = por %p175, %p176
      %p178 = scmp.ne.s32.totalorder %s166, %s167
      %p179 = scmp.eq.s32.totalorder %s31, 1
      %p180 = por %p178, %p179
      %p182 = scmp.ne.s32.totalorder %s167, %s181
      %p183 = scmp.eq.s32.totalorder %s31, 0
      %p184 = por %p182, %p183
      %s186 = sadd.s32 %s185, 1
      %p189 = scmp.eq.s32.totalorder %s25, 1
      %p190 = scmp.ne.s32.totalorder %s185, %s187
      %p191 = scmp.eq.s32.totalorder %s25, 0
      %p192 = por %p190, %p191
      %p193 = scmp.ne.s32.totalorder %s185, %s187
      %p194 = scmp.eq.s32.totalorder %s30, 1
      %p195 = por %p193, %p194
      %p196 = scmp.ne.s32.totalorder %s187, %s188
      %p197 = scmp.eq.s32.totalorder %s30, 0
      %p198 = por %p196, %p197
      %p199 = scmp.ne.s32.totalorder %s187, %s188
      %p200 = scmp.eq.s32.totalorder %s31, 1
      %p201 = por %p199, %p200
      %p203 = scmp.ne.s32.totalorder %s188, %s202
      %p204 = scmp.eq.s32.totalorder %s31, 0
      %p205 = por %p203, %p204
      %s207 = sadd.s32 %s206, 1
      %p210 = scmp.eq.s32.totalorder %s25, 1
      %p211 = scmp.ne.s32.totalorder %s206, %s208
      %p212 = scmp.eq.s32.totalorder %s25, 0
      %p213 = por %p211, %p212
      %p214 = scmp.ne.s32.totalorder %s206, %s208
      %p215 = scmp.eq.s32.totalorder %s30, 1
      %p216 = por %p214, %p215
      %p217 = scmp.ne.s32.totalorder %s208, %s209
      %p218 = scmp.eq.s32.totalorder %s30, 0
      %p219 = por %p217, %p218
      %p220 = scmp.ne.s32.totalorder %s208, %s209
      %p221 = scmp.eq.s32.totalorder %s31, 1
      %p222 = por %p220, %p221
      %p224 = scmp.ne.s32.totalorder %s209, %s223
      %p225 = scmp.eq.s32.totalorder %s31, 0
      %p226 = por %p224, %p225
      %s227 = ssub.s32 %s25, %s32
      %p228 = scmp.eq.s32.totalorder %s227, 0
      %s230 = sadd.s32 %s229, 1
      %s231 = scalar_select %p228, %s229, %s230
      %p234 = pneg %p228
      %p235 = scmp.eq.s32.totalorder %s25, 1
      %p236 = por %p234, %p235
      %p237 = scmp.ne.s32.totalorder %s229, %s232
      %p238 = scmp.eq.s32.totalorder %s25, 0
      %p239 = por %p237, %p238
      %p240 = scmp.ne.s32.totalorder %s229, %s232
      %p241 = scmp.eq.s32.totalorder %s30, 1
      %p242 = por %p240, %p241
      %p243 = scmp.ne.s32.totalorder %s232, %s233
      %p244 = scmp.eq.s32.totalorder %s30, 0
      %p245 = por %p243, %p244
      %p246 = scmp.ne.s32.totalorder %s232, %s233
      %p247 = scmp.eq.s32.totalorder %s31, 1
      %p248 = por %p246, %p247
      %p250 = scmp.ne.s32.totalorder %s233, %s249
      %p251 = scmp.eq.s32.totalorder %s31, 0
      %p252 = por %p250, %p251
      %s253 = ssub.s32 %s25, %s32
      %p254 = scmp.eq.s32.totalorder %s253, 0
      %s256 = sadd.s32 %s255, 1
      %s257 = scalar_select %p254, %s255, %s256
      %p260 = pneg %p254
      %p261 = scmp.eq.s32.totalorder %s25, 1
      %p262 = por %p260, %p261
      %p263 = scmp.ne.s32.totalorder %s255, %s258
      %p264 = scmp.eq.s32.totalorder %s25, 0
      %p265 = por %p263, %p264
      %p266 = scmp.ne.s32.totalorder %s255, %s258
      %p267 = scmp.eq.s32.totalorder %s30, 1
      %p268 = por %p266, %p267
      %p269 = scmp.ne.s32.totalorder %s258, %s259
      %p270 = scmp.eq.s32.totalorder %s30, 0
      %p271 = por %p269, %p270
      %p272 = scmp.ne.s32.totalorder %s258, %s259
      %p273 = scmp.eq.s32.totalorder %s31, 1
      %p274 = por %p272, %p273
      %p276 = scmp.ne.s32.totalorder %s259, %s275
      %p277 = scmp.eq.s32.totalorder %s31, 0
      %p278 = por %p276, %p277
      %p279 = scmp.le.s32.totalorder 1, %s25
      %p280 = scmp.lt.s32.totalorder %s25, 3
      %p281 = pnand %p279, %p280
      %p282 = pneg %p281
      // Predicated region
      $region9: #{tpu_custom_call.1} parent=5 // pred_check
        _
      $region10: #{tpu_custom_call.1} parent=5 // pred_check_branch
        %284 = sbr.rel (%p281) target = $region12
      $region11: #{tpu_custom_call.1} parent=5 // pred_region
        %s285 = ssub.s32 %s25, 1
        // Predicated region
        $region13: #{tpu_custom_call.1} parent=11 // pred_check
          %p286 = pneg %p72
        $region14: #{tpu_custom_call.1} parent=11 // pred_check_branch
          %288 = sbr.rel (%p286) target = $region16
        $region15: #{tpu_custom_call.1} parent=11 // pred_region
          _
        $region16: #{tpu_custom_call.1} parent=11 // pred_fallthru
          _
        // Predicated region
        $region17: #{tpu_custom_call.1} parent=11 // pred_check
          %p289 = pneg %p93
        $region18: #{tpu_custom_call.1} parent=11 // pred_check_branch
          %291 = sbr.rel (%p289) target = $region20
        $region19: #{tpu_custom_call.1} parent=11 // pred_region
          _
        $region20: #{tpu_custom_call.1} parent=11 // pred_fallthru
          _
        // Predicated region
        $region21: #{tpu_custom_call.1} parent=11 // pred_check
          %p292 = pneg %p114
        $region22: #{tpu_custom_call.1} parent=11 // pred_check_branch
          %294 = sbr.rel (%p292) target = $region24
        $region23: #{tpu_custom_call.1} parent=11 // pred_region
          _
        $region24: #{tpu_custom_call.1} parent=11 // pred_fallthru
          _
        // Predicated region
        $region25: #{tpu_custom_call.1} parent=11 // pred_check
          %p295 = pneg %p135
        $region26: #{tpu_custom_call.1} parent=11 // pred_check_branch
          %297 = sbr.rel (%p295) target = $region28
        $region27: #{tpu_custom_call.1} parent=11 // pred_region
          %299 = vsyncadd [#allocation3], 0
          %s300 = sshll.u32 %s4, 4
          %s301 = int_to_ptr.hbm [resolvable:$true] %s300
          %s302 = sshll.u32 [#allocation2], 4
          %s303 = int_to_ptr.vmem [resolvable:$true] %s302
          %308 = dma.hbm_to_vmem [thread:$0]  %s301, 5120, %s303, [#allocation3], 64, 64, 4
        $region28: #{tpu_custom_call.1} parent=11 // pred_fallthru
          _
        // Predicated region
        $region29: #{tpu_custom_call.1} parent=11 // pred_check
          %p309 = pneg %p156
        $region30: #{tpu_custom_call.1} parent=11 // pred_check_branch
          %311 = sbr.rel (%p309) target = $region32
        $region31: #{tpu_custom_call.1} parent=11 // pred_region
          _
        $region32: #{tpu_custom_call.1} parent=11 // pred_fallthru
          _
        // Predicated region
        $region33: #{tpu_custom_call.1} parent=11 // pred_check
          %p312 = pneg %p177
        $region34: #{tpu_custom_call.1} parent=11 // pred_check_branch
          %314 = sbr.rel (%p312) target = $region36
        $region35: #{tpu_custom_call.1} parent=11 // pred_region
          _
        $region36: #{tpu_custom_call.1} parent=11 // pred_fallthru
          _
        // Predicated region
        $region37: #{tpu_custom_call.1} parent=11 // pred_check
          %p315 = pneg %p198
        $region38: #{tpu_custom_call.1} parent=11 // pred_check_branch
          %317 = sbr.rel (%p315) target = $region40
        $region39: #{tpu_custom_call.1} parent=11 // pred_region
          %319 = vsyncadd [#allocation6], 0
          %s320 = sshll.u32 %s7, 4
          %s321 = int_to_ptr.hbm [resolvable:$true] %s320
          %s322 = sshll.u32 [#allocation5], 4
          %s323 = int_to_ptr.vmem [resolvable:$true] %s322
          %328 = dma.hbm_to_vmem [thread:$0]  %s321, 5120, %s323, [#allocation6], 64, 64, 4
        $region40: #{tpu_custom_call.1} parent=11 // pred_fallthru
          _
        // Predicated region
        $region41: #{tpu_custom_call.1} parent=11 // pred_check
          %p329 = pneg %p219
        $region42: #{tpu_custom_call.1} parent=11 // pred_check_branch
          %331 = sbr.rel (%p329) target = $region44
        $region43: #{tpu_custom_call.1} parent=11 // pred_region
          _
        $region44: #{tpu_custom_call.1} parent=11 // pred_fallthru
          _
      $region12: #{tpu_custom_call.1} parent=5 // pred_fallthru
        _
      %p332 = scmp.lt.s32.totalorder %s25, 2
      // Predicated region
      $region45: #{tpu_custom_call.1} parent=5 // pred_check
        %p333 = pneg %p332
      $region46: #{tpu_custom_call.1} parent=5 // pred_check_branch
        %335 = sbr.rel (%p333) target = $region48
      $region47: #{tpu_custom_call.1} parent=5 // pred_region
        // Predicated region
        $region49: #{tpu_custom_call.1} parent=47 // pred_check
          %p336 = pneg %p45
        $region50: #{tpu_custom_call.1} parent=47 // pred_check_branch
          %338 = sbr.rel (%p336) target = $region52
        $region51: #{tpu_custom_call.1} parent=47 // pred_region
          %p339 = scmp.lt.s32.totalorder %s25, 1
          %s340 = scalar_select %p339, %s25, 1
          %s341 = smul.addr %s340, 15
          %s342 = smul.addr %s341, 4
          %s343 = scalar_lea.vmem %s0, %s342
        $region52: #{tpu_custom_call.1} parent=47 // pred_fallthru
          _
      $region48: #{tpu_custom_call.1} parent=5 // pred_fallthru
        _
      %p344 = scmp.le.s32.totalorder 1, %s25
      %p345 = scmp.lt.s32.totalorder %s25, 3
      %p346 = pnand %p344, %p345
      %p347 = pneg %p346
      // Predicated region
      $region53: #{tpu_custom_call.1} parent=5 // pred_check
        _
      $region54: #{tpu_custom_call.1} parent=5 // pred_check_branch
        %349 = sbr.rel (%p346) target = $region56
      $region55: #{tpu_custom_call.1} parent=5 // pred_region
        %s350 = ssub.s32 %s25, 1
        // Predicated region
        $region57: #{tpu_custom_call.1} parent=55 // pred_check
          %p351 = pneg %p135
        $region58: #{tpu_custom_call.1} parent=55 // pred_check_branch
          %353 = sbr.rel (%p351) target = $region60
        $region59: #{tpu_custom_call.1} parent=55 // pred_region
          %355 = dma.done [#allocation3], 5120
        $region60: #{tpu_custom_call.1} parent=55 // pred_fallthru
          _
        // Predicated region
        $region61: #{tpu_custom_call.1} parent=55 // pred_check
          %p356 = pneg %p198
        $region62: #{tpu_custom_call.1} parent=55 // pred_check_branch
          %358 = sbr.rel (%p356) target = $region64
        $region63: #{tpu_custom_call.1} parent=55 // pred_region
          %360 = dma.done [#allocation6], 5120
        $region64: #{tpu_custom_call.1} parent=55 // pred_fallthru
          _
        %p361 = scmp.lt.s32.totalorder %s30, 1
        %s362 = scalar_select %p361, %s30, 1
        %s363 = smul.addr %s362, 15
        %s364 = smul.addr %s363, 4
        %s365 = scalar_lea.vmem %s0, %s364
        %p366 = pneg %p51
        %p367 = pneg %p48
        %p368 = pneg %p72
        %p369 = pneg %p69
        %p370 = pneg %p93
        %p371 = pneg %p90
        %p372 = pneg %p114
        %p373 = pneg %p111
        %p374 = pneg %p135
        %p375 = pneg %p132
        %p376 = pneg %p156
        %p377 = pneg %p153
        %p378 = pneg %p177
        %p379 = pneg %p174
        %p380 = pneg %p198
        %p381 = pneg %p195
        %p382 = pneg %p219
        %p383 = pneg %p216
        %p384 = pneg %p245
        %p385 = pneg %p242
        %s386 = sand.u32 %s232, 1
        %s387 = scalar_lea.sflag [#allocation4], %s386
        %s388 = sand.u32 %s232, 1
        %s389 = smul.addr %s388, 104
        %s390 = scalar_lea.vmem [#allocation7], %s389
        %p391 = pneg %p271
        %p392 = pneg %p268
        %s393 = sand.u32 %s258, 1
        %s394 = scalar_lea.sflag [#allocation9], %s393
        %s395 = sand.u32 %s258, 1
        %s396 = smul.addr %s395, 104
        %s397 = scalar_lea.vmem [#allocation8], %s396
        %p398 = scmp.lt.s32.totalorder %s30, 1
        %s399 = scalar_select %p398, %s30, 1
        %s400 = smul.addr %s399, 15
        %s401 = smul.addr %s400, 4
        %s402 = scalar_lea.vmem %s0, %s401
        %s403 = smul.u32 13, %s30
        %s404 = smul.u32 13, %s30
        %s406 = smul.u32 %s30, 104
        %v407 = vld [vmem:[%s402] sm:$0xf]
        %v408 = vld [vmem:[%s402 + $0x4] sm:$0xf]
        %v409 = vld [vmem:[%s402 + $0x8] sm:$0xf]
        %v410 = vld [vmem:[%s402 + $0xc] sm:$0xf]
        %v411 = vld [vmem:[%s402 + $0x10] sm:$0xf]
        %v412 = vld [vmem:[%s402 + $0x14] sm:$0xf]
        %v413 = vld [vmem:[%s402 + $0x18] sm:$0xf]
        %v414 = vld [vmem:[%s402 + $0x1c] sm:$0xf]
        %v415 = vld [vmem:[%s402 + $0x20] sm:$0xf]
        %v416 = vld [vmem:[%s402 + $0x24] sm:$0xf]
        %v417 = vld [vmem:[%s402 + $0x28] sm:$0xf]
        %v418 = vld [vmem:[%s402 + $0x2c] sm:$0xf]
        %v419 = vld [vmem:[%s402 + $0x30] sm:$0xf]
        %v420 = vld [vmem:[%s402 + $0x34] sm:$0xf]
        %v421 = vld [vmem:[%s402 + $0x38] sm:$0xf]
        %v422 = vld [vmem:[%s1] sm:$0xf]
        %v423 = vld [vmem:[%s1 + $0x4] sm:$0xf]
        %v424 = vld [vmem:[%s1 + $0x8] sm:$0xf]
        %v425 = vld [vmem:[%s1 + $0xc] sm:$0xf]
        %s426 = scalar_lea.vmem %s1, 16
        %v427 = vld [vmem:[%s426] sm:$0xf]
        %v428 = vld [vmem:[%s426 + $0x4] sm:$0xf]
        %v429 = vld [vmem:[%s426 + $0x8] sm:$0xf]
        %v430 = vld [vmem:[%s426 + $0xc] sm:$0xf]
        %v446 = vunpack.c.l.b16 %v407
        %v447 = vunpack.c.l.b16 %v408
        %v448 = vunpack.c.l.b16 %v409
        %v449 = vunpack.c.l.b16 %v410
        %v450 = vunpack.c.l.b16 %v411
        %v451 = vunpack.c.l.b16 %v412
        %v452 = vunpack.c.l.b16 %v413
        %v453 = vunpack.c.l.b16 %v414
        %v454 = vunpack.c.l.b16 %v415
        %v455 = vunpack.c.l.b16 %v416
        %v456 = vunpack.c.l.b16 %v417
        %v457 = vunpack.c.l.b16 %v418
        %v458 = vunpack.c.l.b16 %v419
        %v459 = vunpack.c.l.b16 %v420
        %v460 = vunpack.c.l.b16 %v421
        %v461 = vpack.c.b16 %v447, %v446
        %v462 = vpack.c.b16 %v449, %v448
        %v463 = vpack.c.b16 %v451, %v450
        %v464 = vpack.c.b16 %v453, %v452
        %v465 = vpack.c.b16 %v455, %v454
        %v466 = vpack.c.b16 %v457, %v456
        %v467 = vpack.c.b16 %v459, %v458
        %v468 = vpack.c.b16 %v460, %v460
        %vm469 = vsmask.f32 7424
        %v471 = vshrl.u32 %v461, 16
        %v473 = vshll.u32 %v461, 16
        %v475 = vrot.slane %v473, 1
        %v476 = vor.u32 %v471, %v475
        %v478 = vshll.u32 %v462, 16
        %v480 = vrot.slane %v478, 1
        %v481 = vsel %vm469, %v476, %v480
        %v482 = vshrl.u32 %v462, 16
        %v484 = vor.u32 %v482, %v480
        %v486 = vshll.u32 %v463, 16
        %v488 = vrot.slane %v486, 1
        %v489 = vsel %vm469, %v484, %v488
        %v490 = vshrl.u32 %v463, 16
        %v492 = vor.u32 %v490, %v488
        %v494 = vshll.u32 %v464, 16
        %v496 = vrot.slane %v494, 1
        %v497 = vsel %vm469, %v492, %v496
        %v498 = vshrl.u32 %v464, 16
        %v500 = vor.u32 %v498, %v496
        %v502 = vshll.u32 %v465, 16
        %v504 = vrot.slane %v502, 1
        %v505 = vsel %vm469, %v500, %v504
        %v506 = vshrl.u32 %v465, 16
        %v508 = vor.u32 %v506, %v504
        %v510 = vshll.u32 %v466, 16
        %v512 = vrot.slane %v510, 1
        %v513 = vsel %vm469, %v508, %v512
        %v514 = vshrl.u32 %v466, 16
        %v516 = vor.u32 %v514, %v512
        %v518 = vshll.u32 %v467, 16
        %v520 = vrot.slane %v518, 1
        %v521 = vsel %vm469, %v516, %v520
        %v522 = vshrl.u32 %v467, 16
        %v524 = vor.u32 %v522, %v520
        %v526 = vshll.u32 %v468, 16
        %v528 = vrot.slane %v526, 1
        %v529 = vsel %vm469, %v524, %v528
        %v530 = vshrl.u32 %v468, 16
        %v532 = vor.u32 %v530, %v528
        %v537 = vunpack.c.l.b16 %v427
        %v538 = vunpack.c.l.b16 %v428
        %v539 = vunpack.c.l.b16 %v429
        %v540 = vunpack.c.l.b16 %v430
        %v541 = vpack.c.b16 %v538, %v537
        %v542 = vpack.c.b16 %v540, %v539
        %vm545 = vcmask 261120
        %v547 = vsel %vm545, %v481, 0
        %v550 = vsel %vm545, %v489, 0
        %v553 = vsel %vm545, %v497, 0
        %v556 = vsel %vm545, %v505, 0
        %v559 = vsel %vm545, %v513, 0
        %v562 = vsel %vm545, %v521, 0
        %v565 = vsel %vm545, %v529, 0
        %v568 = vsel %vm545, %v532, 0
        %570 = vmatpush.bf16.msra.mxu0 0
        %571 = vmatpush.bf16.msra.mxu0 0
        %572 = vmatpush.bf16.msra.mxu0 0
        %573 = vmatpush.bf16.msra.mxu0 0
        %574 = vmatpush.bf16.msra.mxu0 0
        %575 = vmatpush.bf16.msra.mxu0 0
        %576 = vmatpush.bf16.msra.mxu0 %v542
        %577 = vmatpush.bf16.msra.mxu0 %v541
        %578 = vmatmul.bf16.gmra.mxu0 %v547
        %v579 = vpop.f32.mrf.mxu0
        %v580 = vadd.f32 0.0, %v579
        %v581 = vpop.f32.mrf.mxu0
        %v582 = vadd.f32 0.0, %v581
        %583 = vmatmul.bf16.gmra.mxu0 %v550
        %v584 = vpop.f32.mrf.mxu0
        %v585 = vadd.f32 0.0, %v584
        %v586 = vpop.f32.mrf.mxu0
        %v587 = vadd.f32 0.0, %v586
        %588 = vmatmul.bf16.gmra.mxu0 %v553
        %v589 = vpop.f32.mrf.mxu0
        %v590 = vadd.f32 0.0, %v589
        %v591 = vpop.f32.mrf.mxu0
        %v592 = vadd.f32 0.0, %v591
        %593 = vmatmul.bf16.gmra.mxu0 %v556
        %v594 = vpop.f32.mrf.mxu0
        %v595 = vadd.f32 0.0, %v594
        %v596 = vpop.f32.mrf.mxu0
        %v597 = vadd.f32 0.0, %v596
        %598 = vmatmul.bf16.gmra.mxu0 %v559
        %v599 = vpop.f32.mrf.mxu0
        %v600 = vadd.f32 0.0, %v599
        %v601 = vpop.f32.mrf.mxu0
        %v602 = vadd.f32 0.0, %v601
        %603 = vmatmul.bf16.gmra.mxu0 %v562
        %v604 = vpop.f32.mrf.mxu0
        %v605 = vadd.f32 0.0, %v604
        %v606 = vpop.f32.mrf.mxu0
        %v607 = vadd.f32 0.0, %v606
        %608 = vmatmul.bf16.gmra.mxu0 %v565
        %v609 = vpop.f32.mrf.mxu0
        %v610 = vadd.f32 0.0, %v609
        %v611 = vpop.f32.mrf.mxu0
        %v612 = vadd.f32 0.0, %v611
        %613 = vmatmul.bf16.gmra.mxu0 %v568
        %v614 = vpop.f32.mrf.mxu0
        %v615 = vadd.f32 0.0, %v614
        %v616 = vpop.f32.mrf.mxu0
        %617 = vdwg.mxu0
        %v622 = vunpack.c.l.b16 %v422
        %v623 = vunpack.c.l.b16 %v423
        %v624 = vunpack.c.l.b16 %v424
        %v625 = vunpack.c.l.b16 %v425
        %v626 = vpack.c.b16 %v623, %v622
        %v627 = vpack.c.b16 %v625, %v624
        %v630 = vsel %vm545, %v461, 0
        %v632 = vsel %vm545, %v462, 0
        %v634 = vsel %vm545, %v463, 0
        %v636 = vsel %vm545, %v464, 0
        %v638 = vsel %vm545, %v465, 0
        %v640 = vsel %vm545, %v466, 0
        %v642 = vsel %vm545, %v467, 0
        %v644 = vsel %vm545, %v468, 0
        %646 = vmatpush.bf16.msra.mxu0 0
        %647 = vmatpush.bf16.msra.mxu0 0
        %648 = vmatpush.bf16.msra.mxu0 0
        %649 = vmatpush.bf16.msra.mxu0 0
        %650 = vmatpush.bf16.msra.mxu0 0
        %651 = vmatpush.bf16.msra.mxu0 0
        %652 = vmatpush.bf16.msra.mxu0 %v627
        %653 = vmatpush.bf16.msra.mxu0 %v626
        %654 = vmatmul.bf16.gmra.mxu0 %v630
        %v655 = vpop.f32.mrf.mxu0
        %v656 = vadd.f32 %v580, %v655
        %v657 = vpop.f32.mrf.mxu0
        %v658 = vadd.f32 %v582, %v657
        %659 = vmatmul.bf16.gmra.mxu0 %v632
        %v660 = vpop.f32.mrf.mxu0
        %v661 = vadd.f32 %v585, %v660
        %v662 = vpop.f32.mrf.mxu0
        %v663 = vadd.f32 %v587, %v662
        %664 = vmatmul.bf16.gmra.mxu0 %v634
        %v665 = vpop.f32.mrf.mxu0
        %v666 = vadd.f32 %v590, %v665
        %v667 = vpop.f32.mrf.mxu0
        %v668 = vadd.f32 %v592, %v667
        %669 = vmatmul.bf16.gmra.mxu0 %v636
        %v670 = vpop.f32.mrf.mxu0
        %v671 = vadd.f32 %v595, %v670
        %v672 = vpop.f32.mrf.mxu0
        %v673 = vadd.f32 %v597, %v672
        %674 = vmatmul.bf16.gmra.mxu0 %v638
        %v675 = vpop.f32.mrf.mxu0
        %v676 = vadd.f32 %v600, %v675
        %v677 = vpop.f32.mrf.mxu0
        %v678 = vadd.f32 %v602, %v677
        %679 = vmatmul.bf16.gmra.mxu0 %v640
        %v680 = vpop.f32.mrf.mxu0
        %v681 = vadd.f32 %v605, %v680
        %v682 = vpop.f32.mrf.mxu0
        %v683 = vadd.f32 %v607, %v682
        %684 = vmatmul.bf16.gmra.mxu0 %v642
        %v685 = vpop.f32.mrf.mxu0
        %v686 = vadd.f32 %v610, %v685
        %v687 = vpop.f32.mrf.mxu0
        %v688 = vadd.f32 %v612, %v687
        %689 = vmatmul.bf16.gmra.mxu0 %v644
        %v690 = vpop.f32.mrf.mxu0
        %v691 = vadd.f32 %v615, %v690
        %v692 = vpop.f32.mrf.mxu0
        %693 = vdwg.mxu0
        %s694 = scalar_lea.vmem %s1, 32
        %v695 = vld [vmem:[%s694] sm:$0xf]
        %v696 = vld [vmem:[%s694 + $0x4] sm:$0xf]
        %v697 = vld [vmem:[%s694 + $0x8] sm:$0xf]
        %v698 = vld [vmem:[%s694 + $0xc] sm:$0xf]
        %vm699 = vcmask 1046528
        %v700 = vrot.slane %v461, 1
        %v701 = vrot.slane %v462, 1
        %v702 = vsel %vm699, %v700, %v701
        %v703 = vrot.slane %v463, 1
        %v704 = vsel %vm699, %v701, %v703
        %v705 = vrot.slane %v464, 1
        %v706 = vsel %vm699, %v703, %v705
        %v707 = vrot.slane %v465, 1
        %v708 = vsel %vm699, %v705, %v707
        %v709 = vrot.slane %v466, 1
        %v710 = vsel %vm699, %v707, %v709
        %v711 = vrot.slane %v467, 1
        %v712 = vsel %vm699, %v709, %v711
        %v713 = vrot.slane %v468, 1
        %v714 = vsel %vm699, %v711, %v713
        %v719 = vunpack.c.l.b16 %v695
        %v720 = vunpack.c.l.b16 %v696
        %v721 = vunpack.c.l.b16 %v697
        %v722 = vunpack.c.l.b16 %v698
        %v723 = vpack.c.b16 %v720, %v719
        %v724 = vpack.c.b16 %v722, %v721
        %v728 = vsel %vm545, %v702, 0
        %v731 = vsel %vm545, %v704, 0
        %v734 = vsel %vm545, %v706, 0
        %v737 = vsel %vm545, %v708, 0
        %v740 = vsel %vm545, %v710, 0
        %v743 = vsel %vm545, %v712, 0
        %v746 = vsel %vm545, %v714, 0
        %v749 = vsel %vm545, %v713, 0
        %751 = vmatpush.bf16.msra.mxu0 0
        %752 = vmatpush.bf16.msra.mxu0 0
        %753 = vmatpush.bf16.msra.mxu0 0
        %754 = vmatpush.bf16.msra.mxu0 0
        %755 = vmatpush.bf16.msra.mxu0 0
        %756 = vmatpush.bf16.msra.mxu0 0
        %757 = vmatpush.bf16.msra.mxu0 %v724
        %758 = vmatpush.bf16.msra.mxu0 %v723
        %759 = vmatmul.bf16.gmra.mxu0 %v728
        %v760 = vpop.f32.mrf.mxu0
        %v761 = vadd.f32 0.0, %v760
        %v762 = vpop.f32.mrf.mxu0
        %v763 = vadd.f32 0.0, %v762
        %764 = vmatmul.bf16.gmra.mxu0 %v731
        %v765 = vpop.f32.mrf.mxu0
        %v766 = vadd.f32 0.0, %v765
        %v767 = vpop.f32.mrf.mxu0
        %v768 = vadd.f32 0.0, %v767
        %769 = vmatmul.bf16.gmra.mxu0 %v734
        %v770 = vpop.f32.mrf.mxu0
        %v771 = vadd.f32 0.0, %v770
        %v772 = vpop.f32.mrf.mxu0
        %v773 = vadd.f32 0.0, %v772
        %774 = vmatmul.bf16.gmra.mxu0 %v737
        %v775 = vpop.f32.mrf.mxu0
        %v776 = vadd.f32 0.0, %v775
        %v777 = vpop.f32.mrf.mxu0
        %v778 = vadd.f32 0.0, %v777
        %779 = vmatmul.bf16.gmra.mxu0 %v740
        %v780 = vpop.f32.mrf.mxu0
        %v781 = vadd.f32 0.0, %v780
        %v782 = vpop.f32.mrf.mxu0
        %v783 = vadd.f32 0.0, %v782
        %784 = vmatmul.bf16.gmra.mxu0 %v743
        %v785 = vpop.f32.mrf.mxu0
        %v786 = vadd.f32 0.0, %v785
        %v787 = vpop.f32.mrf.mxu0
        %v788 = vadd.f32 0.0, %v787
        %789 = vmatmul.bf16.gmra.mxu0 %v746
        %v790 = vpop.f32.mrf.mxu0
        %v791 = vadd.f32 0.0, %v790
        %v792 = vpop.f32.mrf.mxu0
        %v793 = vadd.f32 0.0, %v792
        %794 = vmatmul.bf16.gmra.mxu0 %v749
        %v795 = vpop.f32.mrf.mxu0
        %v796 = vadd.f32 0.0, %v795
        %v797 = vpop.f32.mrf.mxu0
        %798 = vdwg.mxu0
        %v799 = vadd.f32 %v656, %v761
        %v800 = vadd.f32 %v658, %v763
        %v801 = vadd.f32 %v661, %v766
        %v802 = vadd.f32 %v663, %v768
        %v803 = vadd.f32 %v666, %v771
        %v804 = vadd.f32 %v668, %v773
        %v805 = vadd.f32 %v671, %v776
        %v806 = vadd.f32 %v673, %v778
        %v807 = vadd.f32 %v676, %v781
        %v808 = vadd.f32 %v678, %v783
        %v809 = vadd.f32 %v681, %v786
        %v810 = vadd.f32 %v683, %v788
        %v811 = vadd.f32 %v686, %v791
        %v812 = vadd.f32 %v688, %v793
        %v813 = vadd.f32 %v691, %v796
        %s814 = scalar_lea.vmem %s1, 48
        %v815 = vld [vmem:[%s814] sm:$0xf]
        %v816 = vld [vmem:[%s814 + $0x4] sm:$0xf]
        %v817 = vld [vmem:[%s814 + $0x8] sm:$0xf]
        %v818 = vld [vmem:[%s814 + $0xc] sm:$0xf]
        %vm819 = vsmask.f32 6400
        %v820 = vrot.slane %v471, 1
        %v821 = vrot.slane %v473, 2
        %v822 = vor.u32 %v820, %v821
        %v823 = vrot.slane %v482, 1
        %v824 = vrot.slane %v478, 2
        %v825 = vor.u32 %v823, %v824
        %v826 = vsel %vm819, %v822, %v825
        %v827 = vrot.slane %v490, 1
        %v828 = vrot.slane %v486, 2
        %v829 = vor.u32 %v827, %v828
        %v830 = vsel %vm819, %v825, %v829
        %v831 = vrot.slane %v498, 1
        %v832 = vrot.slane %v494, 2
        %v833 = vor.u32 %v831, %v832
        %v834 = vsel %vm819, %v829, %v833
        %v835 = vrot.slane %v506, 1
        %v836 = vrot.slane %v502, 2
        %v837 = vor.u32 %v835, %v836
        %v838 = vsel %vm819, %v833, %v837
        %v839 = vrot.slane %v514, 1
        %v840 = vrot.slane %v510, 2
        %v841 = vor.u32 %v839, %v840
        %v842 = vsel %vm819, %v837, %v841
        %v843 = vrot.slane %v522, 1
        %v844 = vrot.slane %v518, 2
        %v845 = vor.u32 %v843, %v844
        %v846 = vsel %vm819, %v841, %v845
        %v847 = vrot.slane %v530, 1
        %v848 = vrot.slane %v526, 2
        %v849 = vor.u32 %v847, %v848
        %v850 = vsel %vm819, %v845, %v849
        %v855 = vunpack.c.l.b16 %v815
        %v856 = vunpack.c.l.b16 %v816
        %v857 = vunpack.c.l.b16 %v817
        %v858 = vunpack.c.l.b16 %v818
        %v859 = vpack.c.b16 %v856, %v855
        %v860 = vpack.c.b16 %v858, %v857
        %v864 = vsel %vm545, %v826, 0
        %v867 = vsel %vm545, %v830, 0
        %v870 = vsel %vm545, %v834, 0
        %v873 = vsel %vm545, %v838, 0
        %v876 = vsel %vm545, %v842, 0
        %v879 = vsel %vm545, %v846, 0
        %v882 = vsel %vm545, %v850, 0
        %v885 = vsel %vm545, %v849, 0
        %887 = vmatpush.bf16.msra.mxu0 0
        %888 = vmatpush.bf16.msra.mxu0 0
        %889 = vmatpush.bf16.msra.mxu0 0
        %890 = vmatpush.bf16.msra.mxu0 0
        %891 = vmatpush.bf16.msra.mxu0 0
        %892 = vmatpush.bf16.msra.mxu0 0
        %893 = vmatpush.bf16.msra.mxu0 %v860
        %894 = vmatpush.bf16.msra.mxu0 %v859
        %895 = vmatmul.bf16.gmra.mxu0 %v864
        %v896 = vpop.f32.mrf.mxu0
        %v897 = vadd.f32 0.0, %v896
        %v898 = vpop.f32.mrf.mxu0
        %v899 = vadd.f32 0.0, %v898
        %900 = vmatmul.bf16.gmra.mxu0 %v867
        %v901 = vpop.f32.mrf.mxu0
        %v902 = vadd.f32 0.0, %v901
        %v903 = vpop.f32.mrf.mxu0
        %v904 = vadd.f32 0.0, %v903
        %905 = vmatmul.bf16.gmra.mxu0 %v870
        %v906 = vpop.f32.mrf.mxu0
        %v907 = vadd.f32 0.0, %v906
        %v908 = vpop.f32.mrf.mxu0
        %v909 = vadd.f32 0.0, %v908
        %910 = vmatmul.bf16.gmra.mxu0 %v873
        %v911 = vpop.f32.mrf.mxu0
        %v912 = vadd.f32 0.0, %v911
        %v913 = vpop.f32.mrf.mxu0
        %v914 = vadd.f32 0.0, %v913
        %915 = vmatmul.bf16.gmra.mxu0 %v876
        %v916 = vpop.f32.mrf.mxu0
        %v917 = vadd.f32 0.0, %v916
        %v918 = vpop.f32.mrf.mxu0
        %v919 = vadd.f32 0.0, %v918
        %920 = vmatmul.bf16.gmra.mxu0 %v879
        %v921 = vpop.f32.mrf.mxu0
        %v922 = vadd.f32 0.0, %v921
        %v923 = vpop.f32.mrf.mxu0
        %v924 = vadd.f32 0.0, %v923
        %925 = vmatmul.bf16.gmra.mxu0 %v882
        %v926 = vpop.f32.mrf.mxu0
        %v927 = vadd.f32 0.0, %v926
        %v928 = vpop.f32.mrf.mxu0
        %v929 = vadd.f32 0.0, %v928
        %930 = vmatmul.bf16.gmra.mxu0 %v885
        %v931 = vpop.f32.mrf.mxu0
        %v932 = vadd.f32 0.0, %v931
        %v933 = vpop.f32.mrf.mxu0
        %934 = vdwg.mxu0
        %v935 = vadd.f32 %v799, %v897
        %v936 = vadd.f32 %v800, %v899
        %v937 = vadd.f32 %v801, %v902
        %v938 = vadd.f32 %v802, %v904
        %v939 = vadd.f32 %v803, %v907
        %v940 = vadd.f32 %v804, %v909
        %v941 = vadd.f32 %v805, %v912
        %v942 = vadd.f32 %v806, %v914
        %v943 = vadd.f32 %v807, %v917
        %v944 = vadd.f32 %v808, %v919
        %v945 = vadd.f32 %v809, %v922
        %v946 = vadd.f32 %v810, %v924
        %v947 = vadd.f32 %v811, %v927
        %v948 = vadd.f32 %v812, %v929
        %v949 = vadd.f32 %v813, %v932
        %s950 = scalar_lea.vmem %s1, 64
        %v951 = vld [vmem:[%s950] sm:$0xf]
        %v952 = vld [vmem:[%s950 + $0x4] sm:$0xf]
        %v953 = vld [vmem:[%s950 + $0x8] sm:$0xf]
        %v954 = vld [vmem:[%s950 + $0xc] sm:$0xf]
        %vm955 = vcmask 1045504
        %v956 = vrot.slane %v461, 2
        %v957 = vrot.slane %v462, 2
        %v958 = vsel %vm955, %v956, %v957
        %v959 = vrot.slane %v463, 2
        %v960 = vsel %vm955, %v957, %v959
        %v961 = vrot.slane %v464, 2
        %v962 = vsel %vm955, %v959, %v961
        %v963 = vrot.slane %v465, 2
        %v964 = vsel %vm955, %v961, %v963
        %v965 = vrot.slane %v466, 2
        %v966 = vsel %vm955, %v963, %v965
        %v967 = vrot.slane %v467, 2
        %v968 = vsel %vm955, %v965, %v967
        %v969 = vrot.slane %v468, 2
        %v970 = vsel %vm955, %v967, %v969
        %v975 = vunpack.c.l.b16 %v951
        %v976 = vunpack.c.l.b16 %v952
        %v977 = vunpack.c.l.b16 %v953
        %v978 = vunpack.c.l.b16 %v954
        %v979 = vpack.c.b16 %v976, %v975
        %v980 = vpack.c.b16 %v978, %v977
        %v984 = vsel %vm545, %v958, 0
        %v987 = vsel %vm545, %v960, 0
        %v990 = vsel %vm545, %v962, 0
        %v993 = vsel %vm545, %v964, 0
        %v996 = vsel %vm545, %v966, 0
        %v999 = vsel %vm545, %v968, 0
        %v1002 = vsel %vm545, %v970, 0
        %v1005 = vsel %vm545, %v969, 0
        %1007 = vmatpush.bf16.msra.mxu0 0
        %1008 = vmatpush.bf16.msra.mxu0 0
        %1009 = vmatpush.bf16.msra.mxu0 0
        %1010 = vmatpush.bf16.msra.mxu0 0
        %1011 = vmatpush.bf16.msra.mxu0 0
        %1012 = vmatpush.bf16.msra.mxu0 0
        %1013 = vmatpush.bf16.msra.mxu0 %v980
        %1014 = vmatpush.bf16.msra.mxu0 %v979
        %1015 = vmatmul.bf16.gmra.mxu0 %v984
        %v1016 = vpop.f32.mrf.mxu0
        %v1017 = vadd.f32 0.0, %v1016
        %v1018 = vpop.f32.mrf.mxu0
        %v1019 = vadd.f32 0.0, %v1018
        %1020 = vmatmul.bf16.gmra.mxu0 %v987
        %v1021 = vpop.f32.mrf.mxu0
        %v1022 = vadd.f32 0.0, %v1021
        %v1023 = vpop.f32.mrf.mxu0
        %v1024 = vadd.f32 0.0, %v1023
        %1025 = vmatmul.bf16.gmra.mxu0 %v990
        %v1026 = vpop.f32.mrf.mxu0
        %v1027 = vadd.f32 0.0, %v1026
        %v1028 = vpop.f32.mrf.mxu0
        %v1029 = vadd.f32 0.0, %v1028
        %1030 = vmatmul.bf16.gmra.mxu0 %v993
        %v1031 = vpop.f32.mrf.mxu0
        %v1032 = vadd.f32 0.0, %v1031
        %v1033 = vpop.f32.mrf.mxu0
        %v1034 = vadd.f32 0.0, %v1033
        %1035 = vmatmul.bf16.gmra.mxu0 %v996
        %v1036 = vpop.f32.mrf.mxu0
        %v1037 = vadd.f32 0.0, %v1036
        %v1038 = vpop.f32.mrf.mxu0
        %v1039 = vadd.f32 0.0, %v1038
        %1040 = vmatmul.bf16.gmra.mxu0 %v999
        %v1041 = vpop.f32.mrf.mxu0
        %v1042 = vadd.f32 0.0, %v1041
        %v1043 = vpop.f32.mrf.mxu0
        %v1044 = vadd.f32 0.0, %v1043
        %1045 = vmatmul.bf16.gmra.mxu0 %v1002
        %v1046 = vpop.f32.mrf.mxu0
        %v1047 = vadd.f32 0.0, %v1046
        %v1048 = vpop.f32.mrf.mxu0
        %v1049 = vadd.f32 0.0, %v1048
        %1050 = vmatmul.bf16.gmra.mxu0 %v1005
        %v1051 = vpop.f32.mrf.mxu0
        %v1052 = vadd.f32 0.0, %v1051
        %v1053 = vpop.f32.mrf.mxu0
        %1054 = vdwg.mxu0
        %v1055 = vadd.f32 %v935, %v1017
        %v1056 = vadd.f32 %v936, %v1019
        %v1057 = vadd.f32 %v937, %v1022
        %v1058 = vadd.f32 %v938, %v1024
        %v1059 = vadd.f32 %v939, %v1027
        %v1060 = vadd.f32 %v940, %v1029
        %v1061 = vadd.f32 %v941, %v1032
        %v1062 = vadd.f32 %v942, %v1034
        %v1063 = vadd.f32 %v943, %v1037
        %v1064 = vadd.f32 %v944, %v1039
        %v1065 = vadd.f32 %v945, %v1042
        %v1066 = vadd.f32 %v946, %v1044
        %v1067 = vadd.f32 %v947, %v1047
        %v1068 = vadd.f32 %v948, %v1049
        %v1069 = vadd.f32 %v949, %v1052
        %v1070 = vld [vmem:[%s2] sm:$0x1]
        %v1072 = vperm.slane %v1070, 0
        %v1074 = vmul.f32 %v1055, %v1072
        %v1075 = vmul.f32 %v1056, %v1072
        %v1076 = vmul.f32 %v1057, %v1072
        %v1077 = vmul.f32 %v1058, %v1072
        %v1078 = vmul.f32 %v1059, %v1072
        %v1079 = vmul.f32 %v1060, %v1072
        %v1080 = vmul.f32 %v1061, %v1072
        %v1081 = vmul.f32 %v1062, %v1072
        %v1082 = vmul.f32 %v1063, %v1072
        %v1083 = vmul.f32 %v1064, %v1072
        %v1084 = vmul.f32 %v1065, %v1072
        %v1085 = vmul.f32 %v1066, %v1072
        %v1086 = vmul.f32 %v1067, %v1072
        %v1087 = vmul.f32 %v1068, %v1072
        %v1088 = vmul.f32 %v1069, %v1072
        %v1089 = vld [vmem:[%s3] sm:$0x1]
        %v1091 = vperm.slane %v1089, 0
        %v1093 = vadd.f32 %v1074, %v1091
        %v1094 = vadd.f32 %v1075, %v1091
        %v1095 = vadd.f32 %v1076, %v1091
        %v1096 = vadd.f32 %v1077, %v1091
        %v1097 = vadd.f32 %v1078, %v1091
        %v1098 = vadd.f32 %v1079, %v1091
        %v1099 = vadd.f32 %v1080, %v1091
        %v1100 = vadd.f32 %v1081, %v1091
        %v1101 = vadd.f32 %v1082, %v1091
        %v1102 = vadd.f32 %v1083, %v1091
        %v1103 = vadd.f32 %v1084, %v1091
        %v1104 = vadd.f32 %v1085, %v1091
        %v1105 = vadd.f32 %v1086, %v1091
        %v1106 = vadd.f32 %v1087, %v1091
        %v1107 = vadd.f32 %v1088, %v1091
        %v1108 = vmax.f32 %v1093, 0.0
        %v1109 = vmax.f32 %v1094, 0.0
        %v1110 = vmax.f32 %v1095, 0.0
        %v1111 = vmax.f32 %v1096, 0.0
        %v1112 = vmax.f32 %v1097, 0.0
        %v1113 = vmax.f32 %v1098, 0.0
        %v1114 = vmax.f32 %v1099, 0.0
        %v1115 = vmax.f32 %v1100, 0.0
        %v1116 = vmax.f32 %v1101, 0.0
        %v1117 = vmax.f32 %v1102, 0.0
        %v1118 = vmax.f32 %v1103, 0.0
        %v1119 = vmax.f32 %v1104, 0.0
        %v1120 = vmax.f32 %v1105, 0.0
        %v1121 = vmax.f32 %v1106, 0.0
        %v1122 = vmax.f32 %v1107, 0.0
        %s1123 = ssub.s32 %s406, 6
        %v1124 = vlaneseq
        %v1125 = vshrl.u32 %v1124, 7
        %v1126 = vadd.s32 %v1125, 8
        %v1127 = vadd.s32 %v1125, 16
        %v1128 = vadd.s32 %v1125, 24
        %v1129 = vadd.s32 %v1125, 32
        %v1130 = vadd.s32 %v1125, 40
        %v1131 = vadd.s32 %v1125, 48
        %v1132 = vadd.s32 %v1125, 56
        %v1133 = vadd.s32 %v1125, 64
        %v1134 = vadd.s32 %v1125, 72
        %v1135 = vadd.s32 %v1125, 80
        %v1136 = vadd.s32 %v1125, 88
        %v1137 = vadd.s32 %v1125, 96
        %v1138 = vadd.s32 %v1125, 104
        %v1139 = vadd.s32 %v1125, 112
        %v1140 = vstv %s1123
        %v1141 = vadd.s32 %v1140, %v1125
        %v1142 = vadd.s32 %v1140, %v1126
        %v1143 = vadd.s32 %v1140, %v1127
        %v1144 = vadd.s32 %v1140, %v1128
        %v1145 = vadd.s32 %v1140, %v1129
        %v1146 = vadd.s32 %v1140, %v1130
        %v1147 = vadd.s32 %v1140, %v1131
        %v1148 = vadd.s32 %v1140, %v1132
        %v1149 = vadd.s32 %v1140, %v1133
        %v1150 = vadd.s32 %v1140, %v1134
        %v1151 = vadd.s32 %v1140, %v1135
        %v1152 = vadd.s32 %v1140, %v1136
        %v1153 = vadd.s32 %v1140, %v1137
        %v1154 = vadd.s32 %v1140, %v1138
        %v1155 = vadd.s32 %v1140, %v1139
        %vm1156 = vcmp.ge.s32.totalorder %v1141, 0
        %vm1157 = vcmp.ge.s32.totalorder %v1142, 0
        %vm1158 = vcmp.ge.s32.totalorder %v1143, 0
        %vm1159 = vcmp.ge.s32.totalorder %v1144, 0
        %vm1160 = vcmp.ge.s32.totalorder %v1145, 0
        %vm1161 = vcmp.ge.s32.totalorder %v1146, 0
        %vm1162 = vcmp.ge.s32.totalorder %v1147, 0
        %vm1163 = vcmp.ge.s32.totalorder %v1148, 0
        %vm1164 = vcmp.ge.s32.totalorder %v1149, 0
        %vm1165 = vcmp.ge.s32.totalorder %v1150, 0
        %vm1166 = vcmp.ge.s32.totalorder %v1151, 0
        %vm1167 = vcmp.ge.s32.totalorder %v1152, 0
        %vm1168 = vcmp.ge.s32.totalorder %v1153, 0
        %vm1169 = vcmp.ge.s32.totalorder %v1154, 0
        %vm1170 = vcmp.ge.s32.totalorder %v1155, 0
        %vm1171 = vcmp.lt.s32.totalorder %v1141, 200
        %vm1172 = vcmp.lt.s32.totalorder %v1142, 200
        %vm1173 = vcmp.lt.s32.totalorder %v1143, 200
        %vm1174 = vcmp.lt.s32.totalorder %v1144, 200
        %vm1175 = vcmp.lt.s32.totalorder %v1145, 200
        %vm1176 = vcmp.lt.s32.totalorder %v1146, 200
        %vm1177 = vcmp.lt.s32.totalorder %v1147, 200
        %vm1178 = vcmp.lt.s32.totalorder %v1148, 200
        %vm1179 = vcmp.lt.s32.totalorder %v1149, 200
        %vm1180 = vcmp.lt.s32.totalorder %v1150, 200
        %vm1181 = vcmp.lt.s32.totalorder %v1151, 200
        %vm1182 = vcmp.lt.s32.totalorder %v1152, 200
        %vm1183 = vcmp.lt.s32.totalorder %v1153, 200
        %vm1184 = vcmp.lt.s32.totalorder %v1154, 200
        %vm1185 = vcmp.lt.s32.totalorder %v1155, 200
        %vm1186 = vmand %vm1156, %vm1171
        %vm1187 = vmand %vm1157, %vm1172
        %vm1188 = vmand %vm1158, %vm1173
        %vm1189 = vmand %vm1159, %vm1174
        %vm1190 = vmand %vm1160, %vm1175
        %vm1191 = vmand %vm1161, %vm1176
        %vm1192 = vmand %vm1162, %vm1177
        %vm1193 = vmand %vm1163, %vm1178
        %vm1194 = vmand %vm1164, %vm1179
        %vm1195 = vmand %vm1165, %vm1180
        %vm1196 = vmand %vm1166, %vm1181
        %vm1197 = vmand %vm1167, %vm1182
        %vm1198 = vmand %vm1168, %vm1183
        %vm1199 = vmand %vm1169, %vm1184
        %vm1200 = vmand %vm1170, %vm1185
        %v1201 = vsel %vm1186, 1, 0
        %v1202 = vsel %vm1187, 1, 0
        %v1203 = vsel %vm1188, 1, 0
        %v1204 = vsel %vm1189, 1, 0
        %v1205 = vsel %vm1190, 1, 0
        %v1206 = vsel %vm1191, 1, 0
        %v1207 = vsel %vm1192, 1, 0
        %v1208 = vsel %vm1193, 1, 0
        %v1209 = vsel %vm1194, 1, 0
        %v1210 = vsel %vm1195, 1, 0
        %v1211 = vsel %vm1196, 1, 0
        %v1212 = vsel %vm1197, 1, 0
        %v1213 = vsel %vm1198, 1, 0
        %v1214 = vsel %vm1199, 1, 0
        %v1215 = vsel %vm1200, 1, 0
        %vm1216 = vcmp.eq.s32.totalorder %v1201, 1
        %vm1217 = vcmp.eq.s32.totalorder %v1202, 1
        %vm1218 = vcmp.eq.s32.totalorder %v1203, 1
        %vm1219 = vcmp.eq.s32.totalorder %v1204, 1
        %vm1220 = vcmp.eq.s32.totalorder %v1205, 1
        %vm1221 = vcmp.eq.s32.totalorder %v1206, 1
        %vm1222 = vcmp.eq.s32.totalorder %v1207, 1
        %vm1223 = vcmp.eq.s32.totalorder %v1208, 1
        %vm1224 = vcmp.eq.s32.totalorder %v1209, 1
        %vm1225 = vcmp.eq.s32.totalorder %v1210, 1
        %vm1226 = vcmp.eq.s32.totalorder %v1211, 1
        %vm1227 = vcmp.eq.s32.totalorder %v1212, 1
        %vm1228 = vcmp.eq.s32.totalorder %v1213, 1
        %vm1229 = vcmp.eq.s32.totalorder %v1214, 1
        %vm1230 = vcmp.eq.s32.totalorder %v1215, 1
        %v1231 = vsel %vm1216, %v1108, 0.0
        %v1232 = vsel %vm1217, %v1109, 0.0
        %v1233 = vsel %vm1218, %v1110, 0.0
        %v1234 = vsel %vm1219, %v1111, 0.0
        %v1235 = vsel %vm1220, %v1112, 0.0
        %v1236 = vsel %vm1221, %v1113, 0.0
        %v1237 = vsel %vm1222, %v1114, 0.0
        %v1238 = vsel %vm1223, %v1115, 0.0
        %v1239 = vsel %vm1224, %v1116, 0.0
        %v1240 = vsel %vm1225, %v1117, 0.0
        %v1241 = vsel %vm1226, %v1118, 0.0
        %v1242 = vsel %vm1227, %v1119, 0.0
        %v1243 = vsel %vm1228, %v1120, 0.0
        %v1244 = vsel %vm1229, %v1121, 0.0
        %v1245 = vsel %vm1230, %v1122, 0.0
        %v1246 = vpack.c.bf16 %v1231, %v1231
        %v1247 = vpack.c.bf16 %v1232, %v1232
        %v1248 = vpack.c.bf16 %v1233, %v1233
        %v1249 = vpack.c.bf16 %v1234, %v1234
        %v1250 = vpack.c.bf16 %v1235, %v1235
        %v1251 = vpack.c.bf16 %v1236, %v1236
        %v1252 = vpack.c.bf16 %v1237, %v1237
        %v1253 = vpack.c.bf16 %v1238, %v1238
        %v1254 = vpack.c.bf16 %v1239, %v1239
        %v1255 = vpack.c.bf16 %v1240, %v1240
        %v1256 = vpack.c.bf16 %v1241, %v1241
        %v1257 = vpack.c.bf16 %v1242, %v1242
        %v1258 = vpack.c.bf16 %v1243, %v1243
        %v1259 = vpack.c.bf16 %v1244, %v1244
        %v1260 = vpack.c.bf16 %v1245, %v1245
        %v1261 = vld [vmem:[#allocation2] sm:$0xf]
        %v1262 = vld [vmem:[#allocation2 + $0x4] sm:$0xf]
        %v1263 = vld [vmem:[#allocation2 + $0x8] sm:$0xf]
        %v1264 = vld [vmem:[#allocation2 + $0xc] sm:$0xf]
        %v1265 = vld [vmem:[#allocation2 + $0x10] sm:$0xf]
        %v1266 = vld [vmem:[#allocation2 + $0x14] sm:$0xf]
        %v1267 = vld [vmem:[#allocation2 + $0x18] sm:$0xf]
        %v1268 = vld [vmem:[#allocation2 + $0x1c] sm:$0xf]
        %v1269 = vld [vmem:[#allocation2 + $0x20] sm:$0xf]
        %v1270 = vld [vmem:[#allocation2 + $0x24] sm:$0xf]
        %v1271 = vld [vmem:[#allocation2 + $0x28] sm:$0xf]
        %v1272 = vld [vmem:[#allocation2 + $0x2c] sm:$0xf]
        %v1273 = vld [vmem:[#allocation2 + $0x30] sm:$0xf]
        %v1274 = vld [vmem:[#allocation2 + $0x34] sm:$0xf]
        %v1275 = vld [vmem:[#allocation2 + $0x38] sm:$0xf]
        %v1276 = vld [vmem:[#allocation2 + $0x3c] sm:$0xf]
        %s1277 = scalar_lea.vmem [#allocation2], 64
        %v1278 = vld [vmem:[%s1277] sm:$0xf]
        %v1279 = vld [vmem:[%s1277 + $0x4] sm:$0xf]
        %v1280 = vld [vmem:[%s1277 + $0x8] sm:$0xf]
        %v1281 = vld [vmem:[%s1277 + $0xc] sm:$0xf]
        %v1282 = vld [vmem:[%s1277 + $0x10] sm:$0xf]
        %v1283 = vld [vmem:[%s1277 + $0x14] sm:$0xf]
        %v1284 = vld [vmem:[%s1277 + $0x18] sm:$0xf]
        %v1285 = vld [vmem:[%s1277 + $0x1c] sm:$0xf]
        %v1286 = vld [vmem:[%s1277 + $0x20] sm:$0xf]
        %v1287 = vld [vmem:[%s1277 + $0x24] sm:$0xf]
        %v1288 = vld [vmem:[%s1277 + $0x28] sm:$0xf]
        %v1289 = vld [vmem:[%s1277 + $0x2c] sm:$0xf]
        %v1290 = vld [vmem:[%s1277 + $0x30] sm:$0xf]
        %v1291 = vld [vmem:[%s1277 + $0x34] sm:$0xf]
        %v1292 = vld [vmem:[%s1277 + $0x38] sm:$0xf]
        %v1293 = vld [vmem:[%s1277 + $0x3c] sm:$0xf]
        %v1309 = vunpack.c.l.b16 %v1246
        %v1310 = vunpack.c.l.b16 %v1247
        %v1311 = vunpack.c.l.b16 %v1248
        %v1312 = vunpack.c.l.b16 %v1249
        %v1313 = vunpack.c.l.b16 %v1250
        %v1314 = vunpack.c.l.b16 %v1251
        %v1315 = vunpack.c.l.b16 %v1252
        %v1316 = vunpack.c.l.b16 %v1253
        %v1317 = vunpack.c.l.b16 %v1254
        %v1318 = vunpack.c.l.b16 %v1255
        %v1319 = vunpack.c.l.b16 %v1256
        %v1320 = vunpack.c.l.b16 %v1257
        %v1321 = vunpack.c.l.b16 %v1258
        %v1322 = vunpack.c.l.b16 %v1259
        %v1323 = vunpack.c.l.b16 %v1260
        %v1324 = vpack.c.b16 %v1310, %v1309
        %v1325 = vpack.c.b16 %v1312, %v1311
        %v1326 = vpack.c.b16 %v1314, %v1313
        %v1327 = vpack.c.b16 %v1316, %v1315
        %v1328 = vpack.c.b16 %v1318, %v1317
        %v1329 = vpack.c.b16 %v1320, %v1319
        %v1330 = vpack.c.b16 %v1322, %v1321
        %v1331 = vpack.c.b16 %v1323, %v1323
        %v1333 = vshrl.u32 %v1324, 16
        %v1335 = vshll.u32 %v1324, 16
        %v1337 = vrot.slane %v1335, 1
        %v1338 = vor.u32 %v1333, %v1337
        %v1340 = vshll.u32 %v1325, 16
        %v1342 = vrot.slane %v1340, 1
        %v1343 = vsel %vm469, %v1338, %v1342
        %v1344 = vshrl.u32 %v1325, 16
        %v1346 = vor.u32 %v1344, %v1342
        %v1348 = vshll.u32 %v1326, 16
        %v1350 = vrot.slane %v1348, 1
        %v1351 = vsel %vm469, %v1346, %v1350
        %v1352 = vshrl.u32 %v1326, 16
        %v1354 = vor.u32 %v1352, %v1350
        %v1356 = vshll.u32 %v1327, 16
        %v1358 = vrot.slane %v1356, 1
        %v1359 = vsel %vm469, %v1354, %v1358
        %v1360 = vshrl.u32 %v1327, 16
        %v1362 = vor.u32 %v1360, %v1358
        %v1364 = vshll.u32 %v1328, 16
        %v1366 = vrot.slane %v1364, 1
        %v1367 = vsel %vm469, %v1362, %v1366
        %v1368 = vshrl.u32 %v1328, 16
        %v1370 = vor.u32 %v1368, %v1366
        %v1372 = vshll.u32 %v1329, 16
        %v1374 = vrot.slane %v1372, 1
        %v1375 = vsel %vm469, %v1370, %v1374
        %v1376 = vshrl.u32 %v1329, 16
        %v1378 = vor.u32 %v1376, %v1374
        %v1380 = vshll.u32 %v1330, 16
        %v1382 = vrot.slane %v1380, 1
        %v1383 = vsel %vm469, %v1378, %v1382
        %v1384 = vshrl.u32 %v1330, 16
        %v1386 = vor.u32 %v1384, %v1382
        %v1388 = vshll.u32 %v1331, 16
        %v1390 = vrot.slane %v1388, 1
        %v1391 = vsel %vm469, %v1386, %v1390
        %v1415 = vunpack.c.l.b16 %v1278
        %v1416 = vunpack.c.l.b16 %v1279
        %v1417 = vunpack.c.l.b16 %v1280
        %v1418 = vunpack.c.l.b16 %v1281
        %v1419 = vunpack.c.l.b16 %v1282
        %v1420 = vunpack.c.l.b16 %v1283
        %v1421 = vunpack.c.l.b16 %v1284
        %v1422 = vunpack.c.l.b16 %v1285
        %v1423 = vunpack.c.l.b16 %v1286
        %v1424 = vunpack.c.l.b16 %v1287
        %v1425 = vunpack.c.l.b16 %v1288
        %v1426 = vunpack.c.l.b16 %v1289
        %v1427 = vunpack.c.l.b16 %v1290
        %v1428 = vunpack.c.l.b16 %v1291
        %v1429 = vunpack.c.l.b16 %v1292
        %v1430 = vunpack.c.l.b16 %v1293
        %v1431 = vpack.c.b16 %v1416, %v1415
        %v1432 = vpack.c.b16 %v1418, %v1417
        %v1433 = vpack.c.b16 %v1420, %v1419
        %v1434 = vpack.c.b16 %v1422, %v1421
        %v1435 = vpack.c.b16 %v1424, %v1423
        %v1436 = vpack.c.b16 %v1426, %v1425
        %v1437 = vpack.c.b16 %v1428, %v1427
        %v1438 = vpack.c.b16 %v1430, %v1429
        %1447 = vmatpush.bf16.msra.mxu0 %v1438
        %1448 = vmatpush.bf16.msra.mxu0 %v1437
        %1449 = vmatpush.bf16.msra.mxu0 %v1436
        %1450 = vmatpush.bf16.msra.mxu0 %v1435
        %1451 = vmatpush.bf16.msra.mxu0 %v1434
        %1452 = vmatpush.bf16.msra.mxu0 %v1433
        %1453 = vmatpush.bf16.msra.mxu0 %v1432
        %1454 = vmatpush.bf16.msra.mxu0 %v1431
        %1455 = vmatmul.bf16.gmra.mxu0 %v1343
        %v1456 = vpop.f32.mrf.mxu0
        %v1457 = vadd.f32 0.0, %v1456
        %v1458 = vpop.f32.mrf.mxu0
        %v1459 = vadd.f32 0.0, %v1458
        %1460 = vmatmul.bf16.gmra.mxu0 %v1351
        %v1461 = vpop.f32.mrf.mxu0
        %v1462 = vadd.f32 0.0, %v1461
        %v1463 = vpop.f32.mrf.mxu0
        %v1464 = vadd.f32 0.0, %v1463
        %1465 = vmatmul.bf16.gmra.mxu0 %v1359
        %v1466 = vpop.f32.mrf.mxu0
        %v1467 = vadd.f32 0.0, %v1466
        %v1468 = vpop.f32.mrf.mxu0
        %v1469 = vadd.f32 0.0, %v1468
        %1470 = vmatmul.bf16.gmra.mxu0 %v1367
        %v1471 = vpop.f32.mrf.mxu0
        %v1472 = vadd.f32 0.0, %v1471
        %v1473 = vpop.f32.mrf.mxu0
        %v1474 = vadd.f32 0.0, %v1473
        %1475 = vmatmul.bf16.gmra.mxu0 %v1375
        %v1476 = vpop.f32.mrf.mxu0
        %v1477 = vadd.f32 0.0, %v1476
        %v1478 = vpop.f32.mrf.mxu0
        %v1479 = vadd.f32 0.0, %v1478
        %1480 = vmatmul.bf16.gmra.mxu0 %v1383
        %v1481 = vpop.f32.mrf.mxu0
        %v1482 = vadd.f32 0.0, %v1481
        %v1483 = vpop.f32.mrf.mxu0
        %v1484 = vadd.f32 0.0, %v1483
        %1485 = vmatmul.bf16.gmra.mxu0 %v1391
        %v1486 = vpop.f32.mrf.mxu0
        %v1487 = vadd.f32 0.0, %v1486
        %v1488 = vpop.f32.mrf.mxu0
        %v1489 = vadd.f32 0.0, %v1488
        %1490 = vdwg.mxu0
        %v1514 = vunpack.c.l.b16 %v1261
        %v1515 = vunpack.c.l.b16 %v1262
        %v1516 = vunpack.c.l.b16 %v1263
        %v1517 = vunpack.c.l.b16 %v1264
        %v1518 = vunpack.c.l.b16 %v1265
        %v1519 = vunpack.c.l.b16 %v1266
        %v1520 = vunpack.c.l.b16 %v1267
        %v1521 = vunpack.c.l.b16 %v1268
        %v1522 = vunpack.c.l.b16 %v1269
        %v1523 = vunpack.c.l.b16 %v1270
        %v1524 = vunpack.c.l.b16 %v1271
        %v1525 = vunpack.c.l.b16 %v1272
        %v1526 = vunpack.c.l.b16 %v1273
        %v1527 = vunpack.c.l.b16 %v1274
        %v1528 = vunpack.c.l.b16 %v1275
        %v1529 = vunpack.c.l.b16 %v1276
        %v1530 = vpack.c.b16 %v1515, %v1514
        %v1531 = vpack.c.b16 %v1517, %v1516
        %v1532 = vpack.c.b16 %v1519, %v1518
        %v1533 = vpack.c.b16 %v1521, %v1520
        %v1534 = vpack.c.b16 %v1523, %v1522
        %v1535 = vpack.c.b16 %v1525, %v1524
        %v1536 = vpack.c.b16 %v1527, %v1526
        %v1537 = vpack.c.b16 %v1529, %v1528
        %1546 = vmatpush.bf16.msra.mxu0 %v1537
        %1547 = vmatpush.bf16.msra.mxu0 %v1536
        %1548 = vmatpush.bf16.msra.mxu0 %v1535
        %1549 = vmatpush.bf16.msra.mxu0 %v1534
        %1550 = vmatpush.bf16.msra.mxu0 %v1533
        %1551 = vmatpush.bf16.msra.mxu0 %v1532
        %1552 = vmatpush.bf16.msra.mxu0 %v1531
        %1553 = vmatpush.bf16.msra.mxu0 %v1530
        %1554 = vmatmul.bf16.gmra.mxu0 %v1324
        %v1555 = vpop.f32.mrf.mxu0
        %v1556 = vadd.f32 %v1457, %v1555
        %v1557 = vpop.f32.mrf.mxu0
        %v1558 = vadd.f32 %v1459, %v1557
        %1559 = vmatmul.bf16.gmra.mxu0 %v1325
        %v1560 = vpop.f32.mrf.mxu0
        %v1561 = vadd.f32 %v1462, %v1560
        %v1562 = vpop.f32.mrf.mxu0
        %v1563 = vadd.f32 %v1464, %v1562
        %1564 = vmatmul.bf16.gmra.mxu0 %v1326
        %v1565 = vpop.f32.mrf.mxu0
        %v1566 = vadd.f32 %v1467, %v1565
        %v1567 = vpop.f32.mrf.mxu0
        %v1568 = vadd.f32 %v1469, %v1567
        %1569 = vmatmul.bf16.gmra.mxu0 %v1327
        %v1570 = vpop.f32.mrf.mxu0
        %v1571 = vadd.f32 %v1472, %v1570
        %v1572 = vpop.f32.mrf.mxu0
        %v1573 = vadd.f32 %v1474, %v1572
        %1574 = vmatmul.bf16.gmra.mxu0 %v1328
        %v1575 = vpop.f32.mrf.mxu0
        %v1576 = vadd.f32 %v1477, %v1575
        %v1577 = vpop.f32.mrf.mxu0
        %v1578 = vadd.f32 %v1479, %v1577
        %1579 = vmatmul.bf16.gmra.mxu0 %v1329
        %v1580 = vpop.f32.mrf.mxu0
        %v1581 = vadd.f32 %v1482, %v1580
        %v1582 = vpop.f32.mrf.mxu0
        %v1583 = vadd.f32 %v1484, %v1582
        %1584 = vmatmul.bf16.gmra.mxu0 %v1330
        %v1585 = vpop.f32.mrf.mxu0
        %v1586 = vadd.f32 %v1487, %v1585
        %v1587 = vpop.f32.mrf.mxu0
        %v1588 = vadd.f32 %v1489, %v1587
        %1589 = vdwg.mxu0
        %s1590 = scalar_lea.vmem [#allocation2], 128
        %v1591 = vld [vmem:[%s1590] sm:$0xf]
        %v1592 = vld [vmem:[%s1590 + $0x4] sm:$0xf]
        %v1593 = vld [vmem:[%s1590 + $0x8] sm:$0xf]
        %v1594 = vld [vmem:[%s1590 + $0xc] sm:$0xf]
        %v1595 = vld [vmem:[%s1590 + $0x10] sm:$0xf]
        %v1596 = vld [vmem:[%s1590 + $0x14] sm:$0xf]
        %v1597 = vld [vmem:[%s1590 + $0x18] sm:$0xf]
        %v1598 = vld [vmem:[%s1590 + $0x1c] sm:$0xf]
        %v1599 = vld [vmem:[%s1590 + $0x20] sm:$0xf]
        %v1600 = vld [vmem:[%s1590 + $0x24] sm:$0xf]
        %v1601 = vld [vmem:[%s1590 + $0x28] sm:$0xf]
        %v1602 = vld [vmem:[%s1590 + $0x2c] sm:$0xf]
        %v1603 = vld [vmem:[%s1590 + $0x30] sm:$0xf]
        %v1604 = vld [vmem:[%s1590 + $0x34] sm:$0xf]
        %v1605 = vld [vmem:[%s1590 + $0x38] sm:$0xf]
        %v1606 = vld [vmem:[%s1590 + $0x3c] sm:$0xf]
        %v1607 = vrot.slane %v1324, 1
        %v1608 = vrot.slane %v1325, 1
        %v1609 = vsel %vm699, %v1607, %v1608
        %v1610 = vrot.slane %v1326, 1
        %v1611 = vsel %vm699, %v1608, %v1610
        %v1612 = vrot.slane %v1327, 1
        %v1613 = vsel %vm699, %v1610, %v1612
        %v1614 = vrot.slane %v1328, 1
        %v1615 = vsel %vm699, %v1612, %v1614
        %v1616 = vrot.slane %v1329, 1
        %v1617 = vsel %vm699, %v1614, %v1616
        %v1618 = vrot.slane %v1330, 1
        %v1619 = vsel %vm699, %v1616, %v1618
        %v1620 = vrot.slane %v1331, 1
        %v1621 = vsel %vm699, %v1618, %v1620
        %v1645 = vunpack.c.l.b16 %v1591
        %v1646 = vunpack.c.l.b16 %v1592
        %v1647 = vunpack.c.l.b16 %v1593
        %v1648 = vunpack.c.l.b16 %v1594
        %v1649 = vunpack.c.l.b16 %v1595
        %v1650 = vunpack.c.l.b16 %v1596
        %v1651 = vunpack.c.l.b16 %v1597
        %v1652 = vunpack.c.l.b16 %v1598
        %v1653 = vunpack.c.l.b16 %v1599
        %v1654 = vunpack.c.l.b16 %v1600
        %v1655 = vunpack.c.l.b16 %v1601
        %v1656 = vunpack.c.l.b16 %v1602
        %v1657 = vunpack.c.l.b16 %v1603
        %v1658 = vunpack.c.l.b16 %v1604
        %v1659 = vunpack.c.l.b16 %v1605
        %v1660 = vunpack.c.l.b16 %v1606
        %v1661 = vpack.c.b16 %v1646, %v1645
        %v1662 = vpack.c.b16 %v1648, %v1647
        %v1663 = vpack.c.b16 %v1650, %v1649
        %v1664 = vpack.c.b16 %v1652, %v1651
        %v1665 = vpack.c.b16 %v1654, %v1653
        %v1666 = vpack.c.b16 %v1656, %v1655
        %v1667 = vpack.c.b16 %v1658, %v1657
        %v1668 = vpack.c.b16 %v1660, %v1659
        %1677 = vmatpush.bf16.msra.mxu0 %v1668
        %1678 = vmatpush.bf16.msra.mxu0 %v1667
        %1679 = vmatpush.bf16.msra.mxu0 %v1666
        %1680 = vmatpush.bf16.msra.mxu0 %v1665
        %1681 = vmatpush.bf16.msra.mxu0 %v1664
        %1682 = vmatpush.bf16.msra.mxu0 %v1663
        %1683 = vmatpush.bf16.msra.mxu0 %v1662
        %1684 = vmatpush.bf16.msra.mxu0 %v1661
        %1685 = vmatmul.bf16.gmra.mxu0 %v1609
        %v1686 = vpop.f32.mrf.mxu0
        %v1687 = vadd.f32 0.0, %v1686
        %v1688 = vpop.f32.mrf.mxu0
        %v1689 = vadd.f32 0.0, %v1688
        %1690 = vmatmul.bf16.gmra.mxu0 %v1611
        %v1691 = vpop.f32.mrf.mxu0
        %v1692 = vadd.f32 0.0, %v1691
        %v1693 = vpop.f32.mrf.mxu0
        %v1694 = vadd.f32 0.0, %v1693
        %1695 = vmatmul.bf16.gmra.mxu0 %v1613
        %v1696 = vpop.f32.mrf.mxu0
        %v1697 = vadd.f32 0.0, %v1696
        %v1698 = vpop.f32.mrf.mxu0
        %v1699 = vadd.f32 0.0, %v1698
        %1700 = vmatmul.bf16.gmra.mxu0 %v1615
        %v1701 = vpop.f32.mrf.mxu0
        %v1702 = vadd.f32 0.0, %v1701
        %v1703 = vpop.f32.mrf.mxu0
        %v1704 = vadd.f32 0.0, %v1703
        %1705 = vmatmul.bf16.gmra.mxu0 %v1617
        %v1706 = vpop.f32.mrf.mxu0
        %v1707 = vadd.f32 0.0, %v1706
        %v1708 = vpop.f32.mrf.mxu0
        %v1709 = vadd.f32 0.0, %v1708
        %1710 = vmatmul.bf16.gmra.mxu0 %v1619
        %v1711 = vpop.f32.mrf.mxu0
        %v1712 = vadd.f32 0.0, %v1711
        %v1713 = vpop.f32.mrf.mxu0
        %v1714 = vadd.f32 0.0, %v1713
        %1715 = vmatmul.bf16.gmra.mxu0 %v1621
        %v1716 = vpop.f32.mrf.mxu0
        %v1717 = vadd.f32 0.0, %v1716
        %v1718 = vpop.f32.mrf.mxu0
        %v1719 = vadd.f32 0.0, %v1718
        %1720 = vdwg.mxu0
        %v1721 = vadd.f32 %v1556, %v1687
        %v1722 = vadd.f32 %v1558, %v1689
        %v1723 = vadd.f32 %v1561, %v1692
        %v1724 = vadd.f32 %v1563, %v1694
        %v1725 = vadd.f32 %v1566, %v1697
        %v1726 = vadd.f32 %v1568, %v1699
        %v1727 = vadd.f32 %v1571, %v1702
        %v1728 = vadd.f32 %v1573, %v1704
        %v1729 = vadd.f32 %v1576, %v1707
        %v1730 = vadd.f32 %v1578, %v1709
        %v1731 = vadd.f32 %v1581, %v1712
        %v1732 = vadd.f32 %v1583, %v1714
        %v1733 = vadd.f32 %v1586, %v1717
        %v1734 = vadd.f32 %v1588, %v1719
        %s1735 = scalar_lea.vmem [#allocation2], 192
        %v1736 = vld [vmem:[%s1735] sm:$0xf]
        %v1737 = vld [vmem:[%s1735 + $0x4] sm:$0xf]
        %v1738 = vld [vmem:[%s1735 + $0x8] sm:$0xf]
        %v1739 = vld [vmem:[%s1735 + $0xc] sm:$0xf]
        %v1740 = vld [vmem:[%s1735 + $0x10] sm:$0xf]
        %v1741 = vld [vmem:[%s1735 + $0x14] sm:$0xf]
        %v1742 = vld [vmem:[%s1735 + $0x18] sm:$0xf]
        %v1743 = vld [vmem:[%s1735 + $0x1c] sm:$0xf]
        %v1744 = vld [vmem:[%s1735 + $0x20] sm:$0xf]
        %v1745 = vld [vmem:[%s1735 + $0x24] sm:$0xf]
        %v1746 = vld [vmem:[%s1735 + $0x28] sm:$0xf]
        %v1747 = vld [vmem:[%s1735 + $0x2c] sm:$0xf]
        %v1748 = vld [vmem:[%s1735 + $0x30] sm:$0xf]
        %v1749 = vld [vmem:[%s1735 + $0x34] sm:$0xf]
        %v1750 = vld [vmem:[%s1735 + $0x38] sm:$0xf]
        %v1751 = vld [vmem:[%s1735 + $0x3c] sm:$0xf]
        %v1752 = vrot.slane %v1333, 1
        %v1753 = vrot.slane %v1335, 2
        %v1754 = vor.u32 %v1752, %v1753
        %v1755 = vrot.slane %v1344, 1
        %v1756 = vrot.slane %v1340, 2
        %v1757 = vor.u32 %v1755, %v1756
        %v1758 = vsel %vm819, %v1754, %v1757
        %v1759 = vrot.slane %v1352, 1
        %v1760 = vrot.slane %v1348, 2
        %v1761 = vor.u32 %v1759, %v1760
        %v1762 = vsel %vm819, %v1757, %v1761
        %v1763 = vrot.slane %v1360, 1
        %v1764 = vrot.slane %v1356, 2
        %v1765 = vor.u32 %v1763, %v1764
        %v1766 = vsel %vm819, %v1761, %v1765
        %v1767 = vrot.slane %v1368, 1
        %v1768 = vrot.slane %v1364, 2
        %v1769 = vor.u32 %v1767, %v1768
        %v1770 = vsel %vm819, %v1765, %v1769
        %v1771 = vrot.slane %v1376, 1
        %v1772 = vrot.slane %v1372, 2
        %v1773 = vor.u32 %v1771, %v1772
        %v1774 = vsel %vm819, %v1769, %v1773
        %v1775 = vrot.slane %v1384, 1
        %v1776 = vrot.slane %v1380, 2
        %v1777 = vor.u32 %v1775, %v1776
        %v1778 = vsel %vm819, %v1773, %v1777
        %v1779 = vshrl.u32 %v1331, 16
        %v1781 = vrot.slane %v1779, 1
        %v1782 = vrot.slane %v1388, 2
        %v1783 = vor.u32 %v1781, %v1782
        %v1784 = vsel %vm819, %v1777, %v1783
        %v1808 = vunpack.c.l.b16 %v1736
        %v1809 = vunpack.c.l.b16 %v1737
        %v1810 = vunpack.c.l.b16 %v1738
        %v1811 = vunpack.c.l.b16 %v1739
        %v1812 = vunpack.c.l.b16 %v1740
        %v1813 = vunpack.c.l.b16 %v1741
        %v1814 = vunpack.c.l.b16 %v1742
        %v1815 = vunpack.c.l.b16 %v1743
        %v1816 = vunpack.c.l.b16 %v1744
        %v1817 = vunpack.c.l.b16 %v1745
        %v1818 = vunpack.c.l.b16 %v1746
        %v1819 = vunpack.c.l.b16 %v1747
        %v1820 = vunpack.c.l.b16 %v1748
        %v1821 = vunpack.c.l.b16 %v1749
        %v1822 = vunpack.c.l.b16 %v1750
        %v1823 = vunpack.c.l.b16 %v1751
        %v1824 = vpack.c.b16 %v1809, %v1808
        %v1825 = vpack.c.b16 %v1811, %v1810
        %v1826 = vpack.c.b16 %v1813, %v1812
        %v1827 = vpack.c.b16 %v1815, %v1814
        %v1828 = vpack.c.b16 %v1817, %v1816
        %v1829 = vpack.c.b16 %v1819, %v1818
        %v1830 = vpack.c.b16 %v1821, %v1820
        %v1831 = vpack.c.b16 %v1823, %v1822
        %1840 = vmatpush.bf16.msra.mxu0 %v1831
        %1841 = vmatpush.bf16.msra.mxu0 %v1830
        %1842 = vmatpush.bf16.msra.mxu0 %v1829
        %1843 = vmatpush.bf16.msra.mxu0 %v1828
        %1844 = vmatpush.bf16.msra.mxu0 %v1827
        %1845 = vmatpush.bf16.msra.mxu0 %v1826
        %1846 = vmatpush.bf16.msra.mxu0 %v1825
        %1847 = vmatpush.bf16.msra.mxu0 %v1824
        %1848 = vmatmul.bf16.gmra.mxu0 %v1758
        %v1849 = vpop.f32.mrf.mxu0
        %v1850 = vadd.f32 0.0, %v1849
        %v1851 = vpop.f32.mrf.mxu0
        %v1852 = vadd.f32 0.0, %v1851
        %1853 = vmatmul.bf16.gmra.mxu0 %v1762
        %v1854 = vpop.f32.mrf.mxu0
        %v1855 = vadd.f32 0.0, %v1854
        %v1856 = vpop.f32.mrf.mxu0
        %v1857 = vadd.f32 0.0, %v1856
        %1858 = vmatmul.bf16.gmra.mxu0 %v1766
        %v1859 = vpop.f32.mrf.mxu0
        %v1860 = vadd.f32 0.0, %v1859
        %v1861 = vpop.f32.mrf.mxu0
        %v1862 = vadd.f32 0.0, %v1861
        %1863 = vmatmul.bf16.gmra.mxu0 %v1770
        %v1864 = vpop.f32.mrf.mxu0
        %v1865 = vadd.f32 0.0, %v1864
        %v1866 = vpop.f32.mrf.mxu0
        %v1867 = vadd.f32 0.0, %v1866
        %1868 = vmatmul.bf16.gmra.mxu0 %v1774
        %v1869 = vpop.f32.mrf.mxu0
        %v1870 = vadd.f32 0.0, %v1869
        %v1871 = vpop.f32.mrf.mxu0
        %v1872 = vadd.f32 0.0, %v1871
        %1873 = vmatmul.bf16.gmra.mxu0 %v1778
        %v1874 = vpop.f32.mrf.mxu0
        %v1875 = vadd.f32 0.0, %v1874
        %v1876 = vpop.f32.mrf.mxu0
        %v1877 = vadd.f32 0.0, %v1876
        %1878 = vmatmul.bf16.gmra.mxu0 %v1784
        %v1879 = vpop.f32.mrf.mxu0
        %v1880 = vadd.f32 0.0, %v1879
        %v1881 = vpop.f32.mrf.mxu0
        %v1882 = vadd.f32 0.0, %v1881
        %1883 = vdwg.mxu0
        %v1884 = vadd.f32 %v1721, %v1850
        %v1885 = vadd.f32 %v1722, %v1852
        %v1886 = vadd.f32 %v1723, %v1855
        %v1887 = vadd.f32 %v1724, %v1857
        %v1888 = vadd.f32 %v1725, %v1860
        %v1889 = vadd.f32 %v1726, %v1862
        %v1890 = vadd.f32 %v1727, %v1865
        %v1891 = vadd.f32 %v1728, %v1867
        %v1892 = vadd.f32 %v1729, %v1870
        %v1893 = vadd.f32 %v1730, %v1872
        %v1894 = vadd.f32 %v1731, %v1875
        %v1895 = vadd.f32 %v1732, %v1877
        %v1896 = vadd.f32 %v1733, %v1880
        %v1897 = vadd.f32 %v1734, %v1882
        %s1898 = scalar_lea.vmem [#allocation2], 256
        %v1899 = vld [vmem:[%s1898] sm:$0xf]
        %v1900 = vld [vmem:[%s1898 + $0x4] sm:$0xf]
        %v1901 = vld [vmem:[%s1898 + $0x8] sm:$0xf]
        %v1902 = vld [vmem:[%s1898 + $0xc] sm:$0xf]
        %v1903 = vld [vmem:[%s1898 + $0x10] sm:$0xf]
        %v1904 = vld [vmem:[%s1898 + $0x14] sm:$0xf]
        %v1905 = vld [vmem:[%s1898 + $0x18] sm:$0xf]
        %v1906 = vld [vmem:[%s1898 + $0x1c] sm:$0xf]
        %v1907 = vld [vmem:[%s1898 + $0x20] sm:$0xf]
        %v1908 = vld [vmem:[%s1898 + $0x24] sm:$0xf]
        %v1909 = vld [vmem:[%s1898 + $0x28] sm:$0xf]
        %v1910 = vld [vmem:[%s1898 + $0x2c] sm:$0xf]
        %v1911 = vld [vmem:[%s1898 + $0x30] sm:$0xf]
        %v1912 = vld [vmem:[%s1898 + $0x34] sm:$0xf]
        %v1913 = vld [vmem:[%s1898 + $0x38] sm:$0xf]
        %v1914 = vld [vmem:[%s1898 + $0x3c] sm:$0xf]
        %v1915 = vrot.slane %v1324, 2
        %v1916 = vrot.slane %v1325, 2
        %v1917 = vsel %vm955, %v1915, %v1916
        %v1918 = vrot.slane %v1326, 2
        %v1919 = vsel %vm955, %v1916, %v1918
        %v1920 = vrot.slane %v1327, 2
        %v1921 = vsel %vm955, %v1918, %v1920
        %v1922 = vrot.slane %v1328, 2
        %v1923 = vsel %vm955, %v1920, %v1922
        %v1924 = vrot.slane %v1329, 2
        %v1925 = vsel %vm955, %v1922, %v1924
        %v1926 = vrot.slane %v1330, 2
        %v1927 = vsel %vm955, %v1924, %v1926
        %v1928 = vrot.slane %v1331, 2
        %v1929 = vsel %vm955, %v1926, %v1928
        %v1953 = vunpack.c.l.b16 %v1899
        %v1954 = vunpack.c.l.b16 %v1900
        %v1955 = vunpack.c.l.b16 %v1901
        %v1956 = vunpack.c.l.b16 %v1902
        %v1957 = vunpack.c.l.b16 %v1903
        %v1958 = vunpack.c.l.b16 %v1904
        %v1959 = vunpack.c.l.b16 %v1905
        %v1960 = vunpack.c.l.b16 %v1906
        %v1961 = vunpack.c.l.b16 %v1907
        %v1962 = vunpack.c.l.b16 %v1908
        %v1963 = vunpack.c.l.b16 %v1909
        %v1964 = vunpack.c.l.b16 %v1910
        %v1965 = vunpack.c.l.b16 %v1911
        %v1966 = vunpack.c.l.b16 %v1912
        %v1967 = vunpack.c.l.b16 %v1913
        %v1968 = vunpack.c.l.b16 %v1914
        %v1969 = vpack.c.b16 %v1954, %v1953
        %v1970 = vpack.c.b16 %v1956, %v1955
        %v1971 = vpack.c.b16 %v1958, %v1957
        %v1972 = vpack.c.b16 %v1960, %v1959
        %v1973 = vpack.c.b16 %v1962, %v1961
        %v1974 = vpack.c.b16 %v1964, %v1963
        %v1975 = vpack.c.b16 %v1966, %v1965
        %v1976 = vpack.c.b16 %v1968, %v1967
        %1985 = vmatpush.bf16.msra.mxu0 %v1976
        %1986 = vmatpush.bf16.msra.mxu0 %v1975
        %1987 = vmatpush.bf16.msra.mxu0 %v1974
        %1988 = vmatpush.bf16.msra.mxu0 %v1973
        %1989 = vmatpush.bf16.msra.mxu0 %v1972
        %1990 = vmatpush.bf16.msra.mxu0 %v1971
        %1991 = vmatpush.bf16.msra.mxu0 %v1970
        %1992 = vmatpush.bf16.msra.mxu0 %v1969
        %1993 = vmatmul.bf16.gmra.mxu0 %v1917
        %v1994 = vpop.f32.mrf.mxu0
        %v1995 = vadd.f32 0.0, %v1994
        %v1996 = vpop.f32.mrf.mxu0
        %v1997 = vadd.f32 0.0, %v1996
        %1998 = vmatmul.bf16.gmra.mxu0 %v1919
        %v1999 = vpop.f32.mrf.mxu0
        %v2000 = vadd.f32 0.0, %v1999
        %v2001 = vpop.f32.mrf.mxu0
        %v2002 = vadd.f32 0.0, %v2001
        %2003 = vmatmul.bf16.gmra.mxu0 %v1921
        %v2004 = vpop.f32.mrf.mxu0
        %v2005 = vadd.f32 0.0, %v2004
        %v2006 = vpop.f32.mrf.mxu0
        %v2007 = vadd.f32 0.0, %v2006
        %2008 = vmatmul.bf16.gmra.mxu0 %v1923
        %v2009 = vpop.f32.mrf.mxu0
        %v2010 = vadd.f32 0.0, %v2009
        %v2011 = vpop.f32.mrf.mxu0
        %v2012 = vadd.f32 0.0, %v2011
        %2013 = vmatmul.bf16.gmra.mxu0 %v1925
        %v2014 = vpop.f32.mrf.mxu0
        %v2015 = vadd.f32 0.0, %v2014
        %v2016 = vpop.f32.mrf.mxu0
        %v2017 = vadd.f32 0.0, %v2016
        %2018 = vmatmul.bf16.gmra.mxu0 %v1927
        %v2019 = vpop.f32.mrf.mxu0
        %v2020 = vadd.f32 0.0, %v2019
        %v2021 = vpop.f32.mrf.mxu0
        %v2022 = vadd.f32 0.0, %v2021
        %2023 = vmatmul.bf16.gmra.mxu0 %v1929
        %v2024 = vpop.f32.mrf.mxu0
        %v2025 = vadd.f32 0.0, %v2024
        %v2026 = vpop.f32.mrf.mxu0
        %v2027 = vadd.f32 0.0, %v2026
        %2028 = vdwg.mxu0
        %v2029 = vadd.f32 %v1884, %v1995
        %v2030 = vadd.f32 %v1885, %v1997
        %v2031 = vadd.f32 %v1886, %v2000
        %v2032 = vadd.f32 %v1887, %v2002
        %v2033 = vadd.f32 %v1888, %v2005
        %v2034 = vadd.f32 %v1889, %v2007
        %v2035 = vadd.f32 %v1890, %v2010
        %v2036 = vadd.f32 %v1891, %v2012
        %v2037 = vadd.f32 %v1892, %v2015
        %v2038 = vadd.f32 %v1893, %v2017
        %v2039 = vadd.f32 %v1894, %v2020
        %v2040 = vadd.f32 %v1895, %v2022
        %v2041 = vadd.f32 %v1896, %v2025
        %v2042 = vadd.f32 %v1897, %v2027
        %v2043 = vld [vmem:[%s5] sm:$0x1]
        %v2045 = vperm.slane %v2043, 0
        %v2047 = vmul.f32 %v2029, %v2045
        %v2048 = vmul.f32 %v2030, %v2045
        %v2049 = vmul.f32 %v2031, %v2045
        %v2050 = vmul.f32 %v2032, %v2045
        %v2051 = vmul.f32 %v2033, %v2045
        %v2052 = vmul.f32 %v2034, %v2045
        %v2053 = vmul.f32 %v2035, %v2045
        %v2054 = vmul.f32 %v2036, %v2045
        %v2055 = vmul.f32 %v2037, %v2045
        %v2056 = vmul.f32 %v2038, %v2045
        %v2057 = vmul.f32 %v2039, %v2045
        %v2058 = vmul.f32 %v2040, %v2045
        %v2059 = vmul.f32 %v2041, %v2045
        %v2060 = vmul.f32 %v2042, %v2045
        %v2061 = vld [vmem:[%s6] sm:$0x1]
        %v2063 = vperm.slane %v2061, 0
        %v2065 = vadd.f32 %v2047, %v2063
        %v2066 = vadd.f32 %v2048, %v2063
        %v2067 = vadd.f32 %v2049, %v2063
        %v2068 = vadd.f32 %v2050, %v2063
        %v2069 = vadd.f32 %v2051, %v2063
        %v2070 = vadd.f32 %v2052, %v2063
        %v2071 = vadd.f32 %v2053, %v2063
        %v2072 = vadd.f32 %v2054, %v2063
        %v2073 = vadd.f32 %v2055, %v2063
        %v2074 = vadd.f32 %v2056, %v2063
        %v2075 = vadd.f32 %v2057, %v2063
        %v2076 = vadd.f32 %v2058, %v2063
        %v2077 = vadd.f32 %v2059, %v2063
        %v2078 = vadd.f32 %v2060, %v2063
        %v2079 = vmax.f32 %v2065, 0.0
        %v2080 = vmax.f32 %v2066, 0.0
        %v2081 = vmax.f32 %v2067, 0.0
        %v2082 = vmax.f32 %v2068, 0.0
        %v2083 = vmax.f32 %v2069, 0.0
        %v2084 = vmax.f32 %v2070, 0.0
        %v2085 = vmax.f32 %v2071, 0.0
        %v2086 = vmax.f32 %v2072, 0.0
        %v2087 = vmax.f32 %v2073, 0.0
        %v2088 = vmax.f32 %v2074, 0.0
        %v2089 = vmax.f32 %v2075, 0.0
        %v2090 = vmax.f32 %v2076, 0.0
        %v2091 = vmax.f32 %v2077, 0.0
        %v2092 = vmax.f32 %v2078, 0.0
        %s2093 = ssub.s32 %s406, 4
        %v2094 = vstv %s2093
        %v2095 = vadd.s32 %v2094, %v1125
        %v2096 = vadd.s32 %v2094, %v1126
        %v2097 = vadd.s32 %v2094, %v1127
        %v2098 = vadd.s32 %v2094, %v1128
        %v2099 = vadd.s32 %v2094, %v1129
        %v2100 = vadd.s32 %v2094, %v1130
        %v2101 = vadd.s32 %v2094, %v1131
        %v2102 = vadd.s32 %v2094, %v1132
        %v2103 = vadd.s32 %v2094, %v1133
        %v2104 = vadd.s32 %v2094, %v1134
        %v2105 = vadd.s32 %v2094, %v1135
        %v2106 = vadd.s32 %v2094, %v1136
        %v2107 = vadd.s32 %v2094, %v1137
        %v2108 = vadd.s32 %v2094, %v1138
        %vm2109 = vcmp.ge.s32.totalorder %v2095, 0
        %vm2110 = vcmp.ge.s32.totalorder %v2096, 0
        %vm2111 = vcmp.ge.s32.totalorder %v2097, 0
        %vm2112 = vcmp.ge.s32.totalorder %v2098, 0
        %vm2113 = vcmp.ge.s32.totalorder %v2099, 0
        %vm2114 = vcmp.ge.s32.totalorder %v2100, 0
        %vm2115 = vcmp.ge.s32.totalorder %v2101, 0
        %vm2116 = vcmp.ge.s32.totalorder %v2102, 0
        %vm2117 = vcmp.ge.s32.totalorder %v2103, 0
        %vm2118 = vcmp.ge.s32.totalorder %v2104, 0
        %vm2119 = vcmp.ge.s32.totalorder %v2105, 0
        %vm2120 = vcmp.ge.s32.totalorder %v2106, 0
        %vm2121 = vcmp.ge.s32.totalorder %v2107, 0
        %vm2122 = vcmp.ge.s32.totalorder %v2108, 0
        %vm2123 = vcmp.lt.s32.totalorder %v2095, 200
        %vm2124 = vcmp.lt.s32.totalorder %v2096, 200
        %vm2125 = vcmp.lt.s32.totalorder %v2097, 200
        %vm2126 = vcmp.lt.s32.totalorder %v2098, 200
        %vm2127 = vcmp.lt.s32.totalorder %v2099, 200
        %vm2128 = vcmp.lt.s32.totalorder %v2100, 200
        %vm2129 = vcmp.lt.s32.totalorder %v2101, 200
        %vm2130 = vcmp.lt.s32.totalorder %v2102, 200
        %vm2131 = vcmp.lt.s32.totalorder %v2103, 200
        %vm2132 = vcmp.lt.s32.totalorder %v2104, 200
        %vm2133 = vcmp.lt.s32.totalorder %v2105, 200
        %vm2134 = vcmp.lt.s32.totalorder %v2106, 200
        %vm2135 = vcmp.lt.s32.totalorder %v2107, 200
        %vm2136 = vcmp.lt.s32.totalorder %v2108, 200
        %vm2137 = vmand %vm2109, %vm2123
        %vm2138 = vmand %vm2110, %vm2124
        %vm2139 = vmand %vm2111, %vm2125
        %vm2140 = vmand %vm2112, %vm2126
        %vm2141 = vmand %vm2113, %vm2127
        %vm2142 = vmand %vm2114, %vm2128
        %vm2143 = vmand %vm2115, %vm2129
        %vm2144 = vmand %vm2116, %vm2130
        %vm2145 = vmand %vm2117, %vm2131
        %vm2146 = vmand %vm2118, %vm2132
        %vm2147 = vmand %vm2119, %vm2133
        %vm2148 = vmand %vm2120, %vm2134
        %vm2149 = vmand %vm2121, %vm2135
        %vm2150 = vmand %vm2122, %vm2136
        %v2151 = vsel %vm2137, 1, 0
        %v2152 = vsel %vm2138, 1, 0
        %v2153 = vsel %vm2139, 1, 0
        %v2154 = vsel %vm2140, 1, 0
        %v2155 = vsel %vm2141, 1, 0
        %v2156 = vsel %vm2142, 1, 0
        %v2157 = vsel %vm2143, 1, 0
        %v2158 = vsel %vm2144, 1, 0
        %v2159 = vsel %vm2145, 1, 0
        %v2160 = vsel %vm2146, 1, 0
        %v2161 = vsel %vm2147, 1, 0
        %v2162 = vsel %vm2148, 1, 0
        %v2163 = vsel %vm2149, 1, 0
        %v2164 = vsel %vm2150, 1, 0
        %vm2165 = vcmp.eq.s32.totalorder %v2151, 1
        %vm2166 = vcmp.eq.s32.totalorder %v2152, 1
        %vm2167 = vcmp.eq.s32.totalorder %v2153, 1
        %vm2168 = vcmp.eq.s32.totalorder %v2154, 1
        %vm2169 = vcmp.eq.s32.totalorder %v2155, 1
        %vm2170 = vcmp.eq.s32.totalorder %v2156, 1
        %vm2171 = vcmp.eq.s32.totalorder %v2157, 1
        %vm2172 = vcmp.eq.s32.totalorder %v2158, 1
        %vm2173 = vcmp.eq.s32.totalorder %v2159, 1
        %vm2174 = vcmp.eq.s32.totalorder %v2160, 1
        %vm2175 = vcmp.eq.s32.totalorder %v2161, 1
        %vm2176 = vcmp.eq.s32.totalorder %v2162, 1
        %vm2177 = vcmp.eq.s32.totalorder %v2163, 1
        %vm2178 = vcmp.eq.s32.totalorder %v2164, 1
        %v2179 = vsel %vm2165, %v2079, 0.0
        %v2180 = vsel %vm2166, %v2080, 0.0
        %v2181 = vsel %vm2167, %v2081, 0.0
        %v2182 = vsel %vm2168, %v2082, 0.0
        %v2183 = vsel %vm2169, %v2083, 0.0
        %v2184 = vsel %vm2170, %v2084, 0.0
        %v2185 = vsel %vm2171, %v2085, 0.0
        %v2186 = vsel %vm2172, %v2086, 0.0
        %v2187 = vsel %vm2173, %v2087, 0.0
        %v2188 = vsel %vm2174, %v2088, 0.0
        %v2189 = vsel %vm2175, %v2089, 0.0
        %v2190 = vsel %vm2176, %v2090, 0.0
        %v2191 = vsel %vm2177, %v2091, 0.0
        %v2192 = vsel %vm2178, %v2092, 0.0
        %v2193 = vpack.c.bf16 %v2179, %v2179
        %v2194 = vpack.c.bf16 %v2180, %v2180
        %v2195 = vpack.c.bf16 %v2181, %v2181
        %v2196 = vpack.c.bf16 %v2182, %v2182
        %v2197 = vpack.c.bf16 %v2183, %v2183
        %v2198 = vpack.c.bf16 %v2184, %v2184
        %v2199 = vpack.c.bf16 %v2185, %v2185
        %v2200 = vpack.c.bf16 %v2186, %v2186
        %v2201 = vpack.c.bf16 %v2187, %v2187
        %v2202 = vpack.c.bf16 %v2188, %v2188
        %v2203 = vpack.c.bf16 %v2189, %v2189
        %v2204 = vpack.c.bf16 %v2190, %v2190
        %v2205 = vpack.c.bf16 %v2191, %v2191
        %v2206 = vpack.c.bf16 %v2192, %v2192
        %v2207 = vld [vmem:[#allocation5] sm:$0xf]
        %v2208 = vld [vmem:[#allocation5 + $0x4] sm:$0xf]
        %v2209 = vld [vmem:[#allocation5 + $0x8] sm:$0xf]
        %v2210 = vld [vmem:[#allocation5 + $0xc] sm:$0xf]
        %v2211 = vld [vmem:[#allocation5 + $0x10] sm:$0xf]
        %v2212 = vld [vmem:[#allocation5 + $0x14] sm:$0xf]
        %v2213 = vld [vmem:[#allocation5 + $0x18] sm:$0xf]
        %v2214 = vld [vmem:[#allocation5 + $0x1c] sm:$0xf]
        %v2215 = vld [vmem:[#allocation5 + $0x20] sm:$0xf]
        %v2216 = vld [vmem:[#allocation5 + $0x24] sm:$0xf]
        %v2217 = vld [vmem:[#allocation5 + $0x28] sm:$0xf]
        %v2218 = vld [vmem:[#allocation5 + $0x2c] sm:$0xf]
        %v2219 = vld [vmem:[#allocation5 + $0x30] sm:$0xf]
        %v2220 = vld [vmem:[#allocation5 + $0x34] sm:$0xf]
        %v2221 = vld [vmem:[#allocation5 + $0x38] sm:$0xf]
        %v2222 = vld [vmem:[#allocation5 + $0x3c] sm:$0xf]
        %s2223 = scalar_lea.vmem [#allocation5], 64
        %v2224 = vld [vmem:[%s2223] sm:$0xf]
        %v2225 = vld [vmem:[%s2223 + $0x4] sm:$0xf]
        %v2226 = vld [vmem:[%s2223 + $0x8] sm:$0xf]
        %v2227 = vld [vmem:[%s2223 + $0xc] sm:$0xf]
        %v2228 = vld [vmem:[%s2223 + $0x10] sm:$0xf]
        %v2229 = vld [vmem:[%s2223 + $0x14] sm:$0xf]
        %v2230 = vld [vmem:[%s2223 + $0x18] sm:$0xf]
        %v2231 = vld [vmem:[%s2223 + $0x1c] sm:$0xf]
        %v2232 = vld [vmem:[%s2223 + $0x20] sm:$0xf]
        %v2233 = vld [vmem:[%s2223 + $0x24] sm:$0xf]
        %v2234 = vld [vmem:[%s2223 + $0x28] sm:$0xf]
        %v2235 = vld [vmem:[%s2223 + $0x2c] sm:$0xf]
        %v2236 = vld [vmem:[%s2223 + $0x30] sm:$0xf]
        %v2237 = vld [vmem:[%s2223 + $0x34] sm:$0xf]
        %v2238 = vld [vmem:[%s2223 + $0x38] sm:$0xf]
        %v2239 = vld [vmem:[%s2223 + $0x3c] sm:$0xf]
        %v2254 = vunpack.c.l.b16 %v2193
        %v2255 = vunpack.c.l.b16 %v2194
        %v2256 = vunpack.c.l.b16 %v2195
        %v2257 = vunpack.c.l.b16 %v2196
        %v2258 = vunpack.c.l.b16 %v2197
        %v2259 = vunpack.c.l.b16 %v2198
        %v2260 = vunpack.c.l.b16 %v2199
        %v2261 = vunpack.c.l.b16 %v2200
        %v2262 = vunpack.c.l.b16 %v2201
        %v2263 = vunpack.c.l.b16 %v2202
        %v2264 = vunpack.c.l.b16 %v2203
        %v2265 = vunpack.c.l.b16 %v2204
        %v2266 = vunpack.c.l.b16 %v2205
        %v2267 = vunpack.c.l.b16 %v2206
        %v2268 = vpack.c.b16 %v2255, %v2254
        %v2269 = vpack.c.b16 %v2257, %v2256
        %v2270 = vpack.c.b16 %v2259, %v2258
        %v2271 = vpack.c.b16 %v2261, %v2260
        %v2272 = vpack.c.b16 %v2263, %v2262
        %v2273 = vpack.c.b16 %v2265, %v2264
        %v2274 = vpack.c.b16 %v2267, %v2266
        %v2276 = vshrl.u32 %v2268, 16
        %v2278 = vrot.slane %v2276, 1
        %v2279 = vshll.u32 %v2268, 16
        %v2281 = vrot.slane %v2279, 2
        %v2282 = vor.u32 %v2278, %v2281
        %v2284 = vshrl.u32 %v2269, 16
        %v2286 = vrot.slane %v2284, 1
        %v2287 = vshll.u32 %v2269, 16
        %v2289 = vrot.slane %v2287, 2
        %v2290 = vor.u32 %v2286, %v2289
        %v2291 = vsel %vm819, %v2282, %v2290
        %v2293 = vshrl.u32 %v2270, 16
        %v2295 = vrot.slane %v2293, 1
        %v2296 = vshll.u32 %v2270, 16
        %v2298 = vrot.slane %v2296, 2
        %v2299 = vor.u32 %v2295, %v2298
        %v2300 = vsel %vm819, %v2290, %v2299
        %v2302 = vshrl.u32 %v2271, 16
        %v2304 = vrot.slane %v2302, 1
        %v2305 = vshll.u32 %v2271, 16
        %v2307 = vrot.slane %v2305, 2
        %v2308 = vor.u32 %v2304, %v2307
        %v2309 = vsel %vm819, %v2299, %v2308
        %v2311 = vshrl.u32 %v2272, 16
        %v2313 = vrot.slane %v2311, 1
        %v2314 = vshll.u32 %v2272, 16
        %v2316 = vrot.slane %v2314, 2
        %v2317 = vor.u32 %v2313, %v2316
        %v2318 = vsel %vm819, %v2308, %v2317
        %v2320 = vshrl.u32 %v2273, 16
        %v2322 = vrot.slane %v2320, 1
        %v2323 = vshll.u32 %v2273, 16
        %v2325 = vrot.slane %v2323, 2
        %v2326 = vor.u32 %v2322, %v2325
        %v2327 = vsel %vm819, %v2317, %v2326
        %v2329 = vshrl.u32 %v2274, 16
        %v2331 = vrot.slane %v2329, 1
        %v2332 = vshll.u32 %v2274, 16
        %v2334 = vrot.slane %v2332, 2
        %v2335 = vor.u32 %v2331, %v2334
        %v2336 = vsel %vm819, %v2326, %v2335
        %v2360 = vunpack.c.l.b16 %v2224
        %v2361 = vunpack.c.l.b16 %v2225
        %v2362 = vunpack.c.l.b16 %v2226
        %v2363 = vunpack.c.l.b16 %v2227
        %v2364 = vunpack.c.l.b16 %v2228
        %v2365 = vunpack.c.l.b16 %v2229
        %v2366 = vunpack.c.l.b16 %v2230
        %v2367 = vunpack.c.l.b16 %v2231
        %v2368 = vunpack.c.l.b16 %v2232
        %v2369 = vunpack.c.l.b16 %v2233
        %v2370 = vunpack.c.l.b16 %v2234
        %v2371 = vunpack.c.l.b16 %v2235
        %v2372 = vunpack.c.l.b16 %v2236
        %v2373 = vunpack.c.l.b16 %v2237
        %v2374 = vunpack.c.l.b16 %v2238
        %v2375 = vunpack.c.l.b16 %v2239
        %v2376 = vpack.c.b16 %v2361, %v2360
        %v2377 = vpack.c.b16 %v2363, %v2362
        %v2378 = vpack.c.b16 %v2365, %v2364
        %v2379 = vpack.c.b16 %v2367, %v2366
        %v2380 = vpack.c.b16 %v2369, %v2368
        %v2381 = vpack.c.b16 %v2371, %v2370
        %v2382 = vpack.c.b16 %v2373, %v2372
        %v2383 = vpack.c.b16 %v2375, %v2374
        %2392 = vmatpush.bf16.msra.mxu0 %v2383
        %2393 = vmatpush.bf16.msra.mxu0 %v2382
        %2394 = vmatpush.bf16.msra.mxu0 %v2381
        %2395 = vmatpush.bf16.msra.mxu0 %v2380
        %2396 = vmatpush.bf16.msra.mxu0 %v2379
        %2397 = vmatpush.bf16.msra.mxu0 %v2378
        %2398 = vmatpush.bf16.msra.mxu0 %v2377
        %2399 = vmatpush.bf16.msra.mxu0 %v2376
        %2400 = vmatmul.bf16.gmra.mxu0 %v2291
        %v2401 = vpop.f32.mrf.mxu0
        %v2402 = vadd.f32 0.0, %v2401
        %v2403 = vpop.f32.mrf.mxu0
        %v2404 = vadd.f32 0.0, %v2403
        %2405 = vmatmul.bf16.gmra.mxu0 %v2300
        %v2406 = vpop.f32.mrf.mxu0
        %v2407 = vadd.f32 0.0, %v2406
        %v2408 = vpop.f32.mrf.mxu0
        %v2409 = vadd.f32 0.0, %v2408
        %2410 = vmatmul.bf16.gmra.mxu0 %v2309
        %v2411 = vpop.f32.mrf.mxu0
        %v2412 = vadd.f32 0.0, %v2411
        %v2413 = vpop.f32.mrf.mxu0
        %v2414 = vadd.f32 0.0, %v2413
        %2415 = vmatmul.bf16.gmra.mxu0 %v2318
        %v2416 = vpop.f32.mrf.mxu0
        %v2417 = vadd.f32 0.0, %v2416
        %v2418 = vpop.f32.mrf.mxu0
        %v2419 = vadd.f32 0.0, %v2418
        %2420 = vmatmul.bf16.gmra.mxu0 %v2327
        %v2421 = vpop.f32.mrf.mxu0
        %v2422 = vadd.f32 0.0, %v2421
        %v2423 = vpop.f32.mrf.mxu0
        %v2424 = vadd.f32 0.0, %v2423
        %2425 = vmatmul.bf16.gmra.mxu0 %v2336
        %v2426 = vpop.f32.mrf.mxu0
        %v2427 = vadd.f32 0.0, %v2426
        %v2428 = vpop.f32.mrf.mxu0
        %v2429 = vadd.f32 0.0, %v2428
        %2430 = vmatmul.bf16.gmra.mxu0 %v2335
        %v2431 = vpop.f32.mrf.mxu0
        %v2432 = vadd.f32 0.0, %v2431
        %v2433 = vpop.f32.mrf.mxu0
        %2434 = vdwg.mxu0
        %v2435 = vrot.slane %v2268, 1
        %v2436 = vrot.slane %v2269, 1
        %v2437 = vsel %vm699, %v2435, %v2436
        %v2438 = vrot.slane %v2270, 1
        %v2439 = vsel %vm699, %v2436, %v2438
        %v2440 = vrot.slane %v2271, 1
        %v2441 = vsel %vm699, %v2438, %v2440
        %v2442 = vrot.slane %v2272, 1
        %v2443 = vsel %vm699, %v2440, %v2442
        %v2444 = vrot.slane %v2273, 1
        %v2445 = vsel %vm699, %v2442, %v2444
        %v2446 = vrot.slane %v2274, 1
        %v2447 = vsel %vm699, %v2444, %v2446
        %v2471 = vunpack.c.l.b16 %v2207
        %v2472 = vunpack.c.l.b16 %v2208
        %v2473 = vunpack.c.l.b16 %v2209
        %v2474 = vunpack.c.l.b16 %v2210
        %v2475 = vunpack.c.l.b16 %v2211
        %v2476 = vunpack.c.l.b16 %v2212
        %v2477 = vunpack.c.l.b16 %v2213
        %v2478 = vunpack.c.l.b16 %v2214
        %v2479 = vunpack.c.l.b16 %v2215
        %v2480 = vunpack.c.l.b16 %v2216
        %v2481 = vunpack.c.l.b16 %v2217
        %v2482 = vunpack.c.l.b16 %v2218
        %v2483 = vunpack.c.l.b16 %v2219
        %v2484 = vunpack.c.l.b16 %v2220
        %v2485 = vunpack.c.l.b16 %v2221
        %v2486 = vunpack.c.l.b16 %v2222
        %v2487 = vpack.c.b16 %v2472, %v2471
        %v2488 = vpack.c.b16 %v2474, %v2473
        %v2489 = vpack.c.b16 %v2476, %v2475
        %v2490 = vpack.c.b16 %v2478, %v2477
        %v2491 = vpack.c.b16 %v2480, %v2479
        %v2492 = vpack.c.b16 %v2482, %v2481
        %v2493 = vpack.c.b16 %v2484, %v2483
        %v2494 = vpack.c.b16 %v2486, %v2485
        %2503 = vmatpush.bf16.msra.mxu0 %v2494
        %2504 = vmatpush.bf16.msra.mxu0 %v2493
        %2505 = vmatpush.bf16.msra.mxu0 %v2492
        %2506 = vmatpush.bf16.msra.mxu0 %v2491
        %2507 = vmatpush.bf16.msra.mxu0 %v2490
        %2508 = vmatpush.bf16.msra.mxu0 %v2489
        %2509 = vmatpush.bf16.msra.mxu0 %v2488
        %2510 = vmatpush.bf16.msra.mxu0 %v2487
        %2511 = vmatmul.bf16.gmra.mxu0 %v2437
        %v2512 = vpop.f32.mrf.mxu0
        %v2513 = vadd.f32 %v2402, %v2512
        %v2514 = vpop.f32.mrf.mxu0
        %v2515 = vadd.f32 %v2404, %v2514
        %2516 = vmatmul.bf16.gmra.mxu0 %v2439
        %v2517 = vpop.f32.mrf.mxu0
        %v2518 = vadd.f32 %v2407, %v2517
        %v2519 = vpop.f32.mrf.mxu0
        %v2520 = vadd.f32 %v2409, %v2519
        %2521 = vmatmul.bf16.gmra.mxu0 %v2441
        %v2522 = vpop.f32.mrf.mxu0
        %v2523 = vadd.f32 %v2412, %v2522
        %v2524 = vpop.f32.mrf.mxu0
        %v2525 = vadd.f32 %v2414, %v2524
        %2526 = vmatmul.bf16.gmra.mxu0 %v2443
        %v2527 = vpop.f32.mrf.mxu0
        %v2528 = vadd.f32 %v2417, %v2527
        %v2529 = vpop.f32.mrf.mxu0
        %v2530 = vadd.f32 %v2419, %v2529
        %2531 = vmatmul.bf16.gmra.mxu0 %v2445
        %v2532 = vpop.f32.mrf.mxu0
        %v2533 = vadd.f32 %v2422, %v2532
        %v2534 = vpop.f32.mrf.mxu0
        %v2535 = vadd.f32 %v2424, %v2534
        %2536 = vmatmul.bf16.gmra.mxu0 %v2447
        %v2537 = vpop.f32.mrf.mxu0
        %v2538 = vadd.f32 %v2427, %v2537
        %v2539 = vpop.f32.mrf.mxu0
        %v2540 = vadd.f32 %v2429, %v2539
        %2541 = vmatmul.bf16.gmra.mxu0 %v2446
        %v2542 = vpop.f32.mrf.mxu0
        %v2543 = vadd.f32 %v2432, %v2542
        %v2544 = vpop.f32.mrf.mxu0
        %2545 = vdwg.mxu0
        %s2546 = scalar_lea.vmem [#allocation5], 128
        %v2547 = vld [vmem:[%s2546] sm:$0xf]
        %v2548 = vld [vmem:[%s2546 + $0x4] sm:$0xf]
        %v2549 = vld [vmem:[%s2546 + $0x8] sm:$0xf]
        %v2550 = vld [vmem:[%s2546 + $0xc] sm:$0xf]
        %v2551 = vld [vmem:[%s2546 + $0x10] sm:$0xf]
        %v2552 = vld [vmem:[%s2546 + $0x14] sm:$0xf]
        %v2553 = vld [vmem:[%s2546 + $0x18] sm:$0xf]
        %v2554 = vld [vmem:[%s2546 + $0x1c] sm:$0xf]
        %v2555 = vld [vmem:[%s2546 + $0x20] sm:$0xf]
        %v2556 = vld [vmem:[%s2546 + $0x24] sm:$0xf]
        %v2557 = vld [vmem:[%s2546 + $0x28] sm:$0xf]
        %v2558 = vld [vmem:[%s2546 + $0x2c] sm:$0xf]
        %v2559 = vld [vmem:[%s2546 + $0x30] sm:$0xf]
        %v2560 = vld [vmem:[%s2546 + $0x34] sm:$0xf]
        %v2561 = vld [vmem:[%s2546 + $0x38] sm:$0xf]
        %v2562 = vld [vmem:[%s2546 + $0x3c] sm:$0xf]
        %v2563 = vrot.slane %v2268, 2
        %v2564 = vrot.slane %v2269, 2
        %v2565 = vsel %vm955, %v2563, %v2564
        %v2566 = vrot.slane %v2270, 2
        %v2567 = vsel %vm955, %v2564, %v2566
        %v2568 = vrot.slane %v2271, 2
        %v2569 = vsel %vm955, %v2566, %v2568
        %v2570 = vrot.slane %v2272, 2
        %v2571 = vsel %vm955, %v2568, %v2570
        %v2572 = vrot.slane %v2273, 2
        %v2573 = vsel %vm955, %v2570, %v2572
        %v2574 = vrot.slane %v2274, 2
        %v2575 = vsel %vm955, %v2572, %v2574
        %v2599 = vunpack.c.l.b16 %v2547
        %v2600 = vunpack.c.l.b16 %v2548
        %v2601 = vunpack.c.l.b16 %v2549
        %v2602 = vunpack.c.l.b16 %v2550
        %v2603 = vunpack.c.l.b16 %v2551
        %v2604 = vunpack.c.l.b16 %v2552
        %v2605 = vunpack.c.l.b16 %v2553
        %v2606 = vunpack.c.l.b16 %v2554
        %v2607 = vunpack.c.l.b16 %v2555
        %v2608 = vunpack.c.l.b16 %v2556
        %v2609 = vunpack.c.l.b16 %v2557
        %v2610 = vunpack.c.l.b16 %v2558
        %v2611 = vunpack.c.l.b16 %v2559
        %v2612 = vunpack.c.l.b16 %v2560
        %v2613 = vunpack.c.l.b16 %v2561
        %v2614 = vunpack.c.l.b16 %v2562
        %v2615 = vpack.c.b16 %v2600, %v2599
        %v2616 = vpack.c.b16 %v2602, %v2601
        %v2617 = vpack.c.b16 %v2604, %v2603
        %v2618 = vpack.c.b16 %v2606, %v2605
        %v2619 = vpack.c.b16 %v2608, %v2607
        %v2620 = vpack.c.b16 %v2610, %v2609
        %v2621 = vpack.c.b16 %v2612, %v2611
        %v2622 = vpack.c.b16 %v2614, %v2613
        %2631 = vmatpush.bf16.msra.mxu0 %v2622
        %2632 = vmatpush.bf16.msra.mxu0 %v2621
        %2633 = vmatpush.bf16.msra.mxu0 %v2620
        %2634 = vmatpush.bf16.msra.mxu0 %v2619
        %2635 = vmatpush.bf16.msra.mxu0 %v2618
        %2636 = vmatpush.bf16.msra.mxu0 %v2617
        %2637 = vmatpush.bf16.msra.mxu0 %v2616
        %2638 = vmatpush.bf16.msra.mxu0 %v2615
        %2639 = vmatmul.bf16.gmra.mxu0 %v2565
        %v2640 = vpop.f32.mrf.mxu0
        %v2641 = vadd.f32 0.0, %v2640
        %v2642 = vpop.f32.mrf.mxu0
        %v2643 = vadd.f32 0.0, %v2642
        %2644 = vmatmul.bf16.gmra.mxu0 %v2567
        %v2645 = vpop.f32.mrf.mxu0
        %v2646 = vadd.f32 0.0, %v2645
        %v2647 = vpop.f32.mrf.mxu0
        %v2648 = vadd.f32 0.0, %v2647
        %2649 = vmatmul.bf16.gmra.mxu0 %v2569
        %v2650 = vpop.f32.mrf.mxu0
        %v2651 = vadd.f32 0.0, %v2650
        %v2652 = vpop.f32.mrf.mxu0
        %v2653 = vadd.f32 0.0, %v2652
        %2654 = vmatmul.bf16.gmra.mxu0 %v2571
        %v2655 = vpop.f32.mrf.mxu0
        %v2656 = vadd.f32 0.0, %v2655
        %v2657 = vpop.f32.mrf.mxu0
        %v2658 = vadd.f32 0.0, %v2657
        %2659 = vmatmul.bf16.gmra.mxu0 %v2573
        %v2660 = vpop.f32.mrf.mxu0
        %v2661 = vadd.f32 0.0, %v2660
        %v2662 = vpop.f32.mrf.mxu0
        %v2663 = vadd.f32 0.0, %v2662
        %2664 = vmatmul.bf16.gmra.mxu0 %v2575
        %v2665 = vpop.f32.mrf.mxu0
        %v2666 = vadd.f32 0.0, %v2665
        %v2667 = vpop.f32.mrf.mxu0
        %v2668 = vadd.f32 0.0, %v2667
        %2669 = vmatmul.bf16.gmra.mxu0 %v2574
        %v2670 = vpop.f32.mrf.mxu0
        %v2671 = vadd.f32 0.0, %v2670
        %v2672 = vpop.f32.mrf.mxu0
        %2673 = vdwg.mxu0
        %v2674 = vadd.f32 %v2513, %v2641
        %v2675 = vadd.f32 %v2515, %v2643
        %v2676 = vadd.f32 %v2518, %v2646
        %v2677 = vadd.f32 %v2520, %v2648
        %v2678 = vadd.f32 %v2523, %v2651
        %v2679 = vadd.f32 %v2525, %v2653
        %v2680 = vadd.f32 %v2528, %v2656
        %v2681 = vadd.f32 %v2530, %v2658
        %v2682 = vadd.f32 %v2533, %v2661
        %v2683 = vadd.f32 %v2535, %v2663
        %v2684 = vadd.f32 %v2538, %v2666
        %v2685 = vadd.f32 %v2540, %v2668
        %v2686 = vadd.f32 %v2543, %v2671
        %s2687 = scalar_lea.vmem [#allocation5], 192
        %v2688 = vld [vmem:[%s2687] sm:$0xf]
        %v2689 = vld [vmem:[%s2687 + $0x4] sm:$0xf]
        %v2690 = vld [vmem:[%s2687 + $0x8] sm:$0xf]
        %v2691 = vld [vmem:[%s2687 + $0xc] sm:$0xf]
        %v2692 = vld [vmem:[%s2687 + $0x10] sm:$0xf]
        %v2693 = vld [vmem:[%s2687 + $0x14] sm:$0xf]
        %v2694 = vld [vmem:[%s2687 + $0x18] sm:$0xf]
        %v2695 = vld [vmem:[%s2687 + $0x1c] sm:$0xf]
        %v2696 = vld [vmem:[%s2687 + $0x20] sm:$0xf]
        %v2697 = vld [vmem:[%s2687 + $0x24] sm:$0xf]
        %v2698 = vld [vmem:[%s2687 + $0x28] sm:$0xf]
        %v2699 = vld [vmem:[%s2687 + $0x2c] sm:$0xf]
        %v2700 = vld [vmem:[%s2687 + $0x30] sm:$0xf]
        %v2701 = vld [vmem:[%s2687 + $0x34] sm:$0xf]
        %v2702 = vld [vmem:[%s2687 + $0x38] sm:$0xf]
        %v2703 = vld [vmem:[%s2687 + $0x3c] sm:$0xf]
        %vm2704 = vsmask.f32 5376
        %v2705 = vrot.slane %v2276, 2
        %v2706 = vrot.slane %v2279, 3
        %v2707 = vor.u32 %v2705, %v2706
        %v2708 = vrot.slane %v2284, 2
        %v2709 = vrot.slane %v2287, 3
        %v2710 = vor.u32 %v2708, %v2709
        %v2711 = vsel %vm2704, %v2707, %v2710
        %v2712 = vrot.slane %v2293, 2
        %v2713 = vrot.slane %v2296, 3
        %v2714 = vor.u32 %v2712, %v2713
        %v2715 = vsel %vm2704, %v2710, %v2714
        %v2716 = vrot.slane %v2302, 2
        %v2717 = vrot.slane %v2305, 3
        %v2718 = vor.u32 %v2716, %v2717
        %v2719 = vsel %vm2704, %v2714, %v2718
        %v2720 = vrot.slane %v2311, 2
        %v2721 = vrot.slane %v2314, 3
        %v2722 = vor.u32 %v2720, %v2721
        %v2723 = vsel %vm2704, %v2718, %v2722
        %v2724 = vrot.slane %v2320, 2
        %v2725 = vrot.slane %v2323, 3
        %v2726 = vor.u32 %v2724, %v2725
        %v2727 = vsel %vm2704, %v2722, %v2726
        %v2728 = vrot.slane %v2329, 2
        %v2729 = vrot.slane %v2332, 3
        %v2730 = vor.u32 %v2728, %v2729
        %v2731 = vsel %vm2704, %v2726, %v2730
        %v2755 = vunpack.c.l.b16 %v2688
        %v2756 = vunpack.c.l.b16 %v2689
        %v2757 = vunpack.c.l.b16 %v2690
        %v2758 = vunpack.c.l.b16 %v2691
        %v2759 = vunpack.c.l.b16 %v2692
        %v2760 = vunpack.c.l.b16 %v2693
        %v2761 = vunpack.c.l.b16 %v2694
        %v2762 = vunpack.c.l.b16 %v2695
        %v2763 = vunpack.c.l.b16 %v2696
        %v2764 = vunpack.c.l.b16 %v2697
        %v2765 = vunpack.c.l.b16 %v2698
        %v2766 = vunpack.c.l.b16 %v2699
        %v2767 = vunpack.c.l.b16 %v2700
        %v2768 = vunpack.c.l.b16 %v2701
        %v2769 = vunpack.c.l.b16 %v2702
        %v2770 = vunpack.c.l.b16 %v2703
        %v2771 = vpack.c.b16 %v2756, %v2755
        %v2772 = vpack.c.b16 %v2758, %v2757
        %v2773 = vpack.c.b16 %v2760, %v2759
        %v2774 = vpack.c.b16 %v2762, %v2761
        %v2775 = vpack.c.b16 %v2764, %v2763
        %v2776 = vpack.c.b16 %v2766, %v2765
        %v2777 = vpack.c.b16 %v2768, %v2767
        %v2778 = vpack.c.b16 %v2770, %v2769
        %2787 = vmatpush.bf16.msra.mxu0 %v2778
        %2788 = vmatpush.bf16.msra.mxu0 %v2777
        %2789 = vmatpush.bf16.msra.mxu0 %v2776
        %2790 = vmatpush.bf16.msra.mxu0 %v2775
        %2791 = vmatpush.bf16.msra.mxu0 %v2774
        %2792 = vmatpush.bf16.msra.mxu0 %v2773
        %2793 = vmatpush.bf16.msra.mxu0 %v2772
        %2794 = vmatpush.bf16.msra.mxu0 %v2771
        %2795 = vmatmul.bf16.gmra.mxu0 %v2711
        %v2796 = vpop.f32.mrf.mxu0
        %v2797 = vadd.f32 0.0, %v2796
        %v2798 = vpop.f32.mrf.mxu0
        %v2799 = vadd.f32 0.0, %v2798
        %2800 = vmatmul.bf16.gmra.mxu0 %v2715
        %v2801 = vpop.f32.mrf.mxu0
        %v2802 = vadd.f32 0.0, %v2801
        %v2803 = vpop.f32.mrf.mxu0
        %v2804 = vadd.f32 0.0, %v2803
        %2805 = vmatmul.bf16.gmra.mxu0 %v2719
        %v2806 = vpop.f32.mrf.mxu0
        %v2807 = vadd.f32 0.0, %v2806
        %v2808 = vpop.f32.mrf.mxu0
        %v2809 = vadd.f32 0.0, %v2808
        %2810 = vmatmul.bf16.gmra.mxu0 %v2723
        %v2811 = vpop.f32.mrf.mxu0
        %v2812 = vadd.f32 0.0, %v2811
        %v2813 = vpop.f32.mrf.mxu0
        %v2814 = vadd.f32 0.0, %v2813
        %2815 = vmatmul.bf16.gmra.mxu0 %v2727
        %v2816 = vpop.f32.mrf.mxu0
        %v2817 = vadd.f32 0.0, %v2816
        %v2818 = vpop.f32.mrf.mxu0
        %v2819 = vadd.f32 0.0, %v2818
        %2820 = vmatmul.bf16.gmra.mxu0 %v2731
        %v2821 = vpop.f32.mrf.mxu0
        %v2822 = vadd.f32 0.0, %v2821
        %v2823 = vpop.f32.mrf.mxu0
        %v2824 = vadd.f32 0.0, %v2823
        %2825 = vmatmul.bf16.gmra.mxu0 %v2730
        %v2826 = vpop.f32.mrf.mxu0
        %v2827 = vadd.f32 0.0, %v2826
        %v2828 = vpop.f32.mrf.mxu0
        %2829 = vdwg.mxu0
        %v2830 = vadd.f32 %v2674, %v2797
        %v2831 = vadd.f32 %v2675, %v2799
        %v2832 = vadd.f32 %v2676, %v2802
        %v2833 = vadd.f32 %v2677, %v2804
        %v2834 = vadd.f32 %v2678, %v2807
        %v2835 = vadd.f32 %v2679, %v2809
        %v2836 = vadd.f32 %v2680, %v2812
        %v2837 = vadd.f32 %v2681, %v2814
        %v2838 = vadd.f32 %v2682, %v2817
        %v2839 = vadd.f32 %v2683, %v2819
        %v2840 = vadd.f32 %v2684, %v2822
        %v2841 = vadd.f32 %v2685, %v2824
        %v2842 = vadd.f32 %v2686, %v2827
        %s2843 = scalar_lea.vmem [#allocation5], 256
        %v2844 = vld [vmem:[%s2843] sm:$0xf]
        %v2845 = vld [vmem:[%s2843 + $0x4] sm:$0xf]
        %v2846 = vld [vmem:[%s2843 + $0x8] sm:$0xf]
        %v2847 = vld [vmem:[%s2843 + $0xc] sm:$0xf]
        %v2848 = vld [vmem:[%s2843 + $0x10] sm:$0xf]
        %v2849 = vld [vmem:[%s2843 + $0x14] sm:$0xf]
        %v2850 = vld [vmem:[%s2843 + $0x18] sm:$0xf]
        %v2851 = vld [vmem:[%s2843 + $0x1c] sm:$0xf]
        %v2852 = vld [vmem:[%s2843 + $0x20] sm:$0xf]
        %v2853 = vld [vmem:[%s2843 + $0x24] sm:$0xf]
        %v2854 = vld [vmem:[%s2843 + $0x28] sm:$0xf]
        %v2855 = vld [vmem:[%s2843 + $0x2c] sm:$0xf]
        %v2856 = vld [vmem:[%s2843 + $0x30] sm:$0xf]
        %v2857 = vld [vmem:[%s2843 + $0x34] sm:$0xf]
        %v2858 = vld [vmem:[%s2843 + $0x38] sm:$0xf]
        %v2859 = vld [vmem:[%s2843 + $0x3c] sm:$0xf]
        %vm2860 = vcmask 1044480
        %v2861 = vrot.slane %v2268, 3
        %v2862 = vrot.slane %v2269, 3
        %v2863 = vsel %vm2860, %v2861, %v2862
        %v2864 = vrot.slane %v2270, 3
        %v2865 = vsel %vm2860, %v2862, %v2864
        %v2866 = vrot.slane %v2271, 3
        %v2867 = vsel %vm2860, %v2864, %v2866
        %v2868 = vrot.slane %v2272, 3
        %v2869 = vsel %vm2860, %v2866, %v2868
        %v2870 = vrot.slane %v2273, 3
        %v2871 = vsel %vm2860, %v2868, %v2870
        %v2872 = vrot.slane %v2274, 3
        %v2873 = vsel %vm2860, %v2870, %v2872
        %v2897 = vunpack.c.l.b16 %v2844
        %v2898 = vunpack.c.l.b16 %v2845
        %v2899 = vunpack.c.l.b16 %v2846
        %v2900 = vunpack.c.l.b16 %v2847
        %v2901 = vunpack.c.l.b16 %v2848
        %v2902 = vunpack.c.l.b16 %v2849
        %v2903 = vunpack.c.l.b16 %v2850
        %v2904 = vunpack.c.l.b16 %v2851
        %v2905 = vunpack.c.l.b16 %v2852
        %v2906 = vunpack.c.l.b16 %v2853
        %v2907 = vunpack.c.l.b16 %v2854
        %v2908 = vunpack.c.l.b16 %v2855
        %v2909 = vunpack.c.l.b16 %v2856
        %v2910 = vunpack.c.l.b16 %v2857
        %v2911 = vunpack.c.l.b16 %v2858
        %v2912 = vunpack.c.l.b16 %v2859
        %v2913 = vpack.c.b16 %v2898, %v2897
        %v2914 = vpack.c.b16 %v2900, %v2899
        %v2915 = vpack.c.b16 %v2902, %v2901
        %v2916 = vpack.c.b16 %v2904, %v2903
        %v2917 = vpack.c.b16 %v2906, %v2905
        %v2918 = vpack.c.b16 %v2908, %v2907
        %v2919 = vpack.c.b16 %v2910, %v2909
        %v2920 = vpack.c.b16 %v2912, %v2911
        %2929 = vmatpush.bf16.msra.mxu0 %v2920
        %2930 = vmatpush.bf16.msra.mxu0 %v2919
        %2931 = vmatpush.bf16.msra.mxu0 %v2918
        %2932 = vmatpush.bf16.msra.mxu0 %v2917
        %2933 = vmatpush.bf16.msra.mxu0 %v2916
        %2934 = vmatpush.bf16.msra.mxu0 %v2915
        %2935 = vmatpush.bf16.msra.mxu0 %v2914
        %2936 = vmatpush.bf16.msra.mxu0 %v2913
        %2937 = vmatmul.bf16.gmra.mxu0 %v2863
        %v2938 = vpop.f32.mrf.mxu0
        %v2939 = vadd.f32 0.0, %v2938
        %v2940 = vpop.f32.mrf.mxu0
        %v2941 = vadd.f32 0.0, %v2940
        %2942 = vmatmul.bf16.gmra.mxu0 %v2865
        %v2943 = vpop.f32.mrf.mxu0
        %v2944 = vadd.f32 0.0, %v2943
        %v2945 = vpop.f32.mrf.mxu0
        %v2946 = vadd.f32 0.0, %v2945
        %2947 = vmatmul.bf16.gmra.mxu0 %v2867
        %v2948 = vpop.f32.mrf.mxu0
        %v2949 = vadd.f32 0.0, %v2948
        %v2950 = vpop.f32.mrf.mxu0
        %v2951 = vadd.f32 0.0, %v2950
        %2952 = vmatmul.bf16.gmra.mxu0 %v2869
        %v2953 = vpop.f32.mrf.mxu0
        %v2954 = vadd.f32 0.0, %v2953
        %v2955 = vpop.f32.mrf.mxu0
        %v2956 = vadd.f32 0.0, %v2955
        %2957 = vmatmul.bf16.gmra.mxu0 %v2871
        %v2958 = vpop.f32.mrf.mxu0
        %v2959 = vadd.f32 0.0, %v2958
        %v2960 = vpop.f32.mrf.mxu0
        %v2961 = vadd.f32 0.0, %v2960
        %2962 = vmatmul.bf16.gmra.mxu0 %v2873
        %v2963 = vpop.f32.mrf.mxu0
        %v2964 = vadd.f32 0.0, %v2963
        %v2965 = vpop.f32.mrf.mxu0
        %v2966 = vadd.f32 0.0, %v2965
        %2967 = vmatmul.bf16.gmra.mxu0 %v2872
        %v2968 = vpop.f32.mrf.mxu0
        %v2969 = vadd.f32 0.0, %v2968
        %v2970 = vpop.f32.mrf.mxu0
        %2971 = vdwg.mxu0
        %v2972 = vadd.f32 %v2830, %v2939
        %v2973 = vadd.f32 %v2831, %v2941
        %v2974 = vadd.f32 %v2832, %v2944
        %v2975 = vadd.f32 %v2833, %v2946
        %v2976 = vadd.f32 %v2834, %v2949
        %v2977 = vadd.f32 %v2835, %v2951
        %v2978 = vadd.f32 %v2836, %v2954
        %v2979 = vadd.f32 %v2837, %v2956
        %v2980 = vadd.f32 %v2838, %v2959
        %v2981 = vadd.f32 %v2839, %v2961
        %v2982 = vadd.f32 %v2840, %v2964
        %v2983 = vadd.f32 %v2841, %v2966
        %v2984 = vadd.f32 %v2842, %v2969
        %v2985 = vld [vmem:[%s8] sm:$0x1]
        %v2987 = vperm.slane %v2985, 0
        %v2989 = vadd.f32 %v2972, %v2987
        %v2990 = vadd.f32 %v2973, %v2987
        %v2991 = vadd.f32 %v2974, %v2987
        %v2992 = vadd.f32 %v2975, %v2987
        %v2993 = vadd.f32 %v2976, %v2987
        %v2994 = vadd.f32 %v2977, %v2987
        %v2995 = vadd.f32 %v2978, %v2987
        %v2996 = vadd.f32 %v2979, %v2987
        %v2997 = vadd.f32 %v2980, %v2987
        %v2998 = vadd.f32 %v2981, %v2987
        %v2999 = vadd.f32 %v2982, %v2987
        %v3000 = vadd.f32 %v2983, %v2987
        %v3001 = vadd.f32 %v2984, %v2987
        %v3002 = vlaneseq
        %v3003 = vand.u32 %v3002, 127
        %vm3004 = vcmp.lt.s32.totalorder %v3003, 33
        %v3005 = vsel %vm3004, %v2989, -1e+30
        %v3006 = vsel %vm3004, %v2990, -1e+30
        %v3007 = vsel %vm3004, %v2991, -1e+30
        %v3008 = vsel %vm3004, %v2992, -1e+30
        %v3009 = vsel %vm3004, %v2993, -1e+30
        %v3010 = vsel %vm3004, %v2994, -1e+30
        %v3011 = vsel %vm3004, %v2995, -1e+30
        %v3012 = vsel %vm3004, %v2996, -1e+30
        %v3013 = vsel %vm3004, %v2997, -1e+30
        %v3014 = vsel %vm3004, %v2998, -1e+30
        %v3015 = vsel %vm3004, %v2999, -1e+30
        %v3016 = vsel %vm3004, %v3000, -1e+30
        %v3017 = vsel %vm3004, %v3001, -1e+30
        %3018 = vmax.xlane.f32.xlu0 %v3005
        %v3019 = vpop.xlane.xlu0 %3018
        %3020 = vmax.xlane.f32.xlu0 %v3006
        %v3021 = vpop.xlane.xlu0 %3020
        %3022 = vmax.xlane.f32.xlu0 %v3007
        %v3023 = vpop.xlane.xlu0 %3022
        %3024 = vmax.xlane.f32.xlu0 %v3008
        %v3025 = vpop.xlane.xlu0 %3024
        %3026 = vmax.xlane.f32.xlu0 %v3009
        %v3027 = vpop.xlane.xlu0 %3026
        %3028 = vmax.xlane.f32.xlu0 %v3010
        %v3029 = vpop.xlane.xlu0 %3028
        %3030 = vmax.xlane.f32.xlu0 %v3011
        %v3031 = vpop.xlane.xlu0 %3030
        %3032 = vmax.xlane.f32.xlu0 %v3012
        %v3033 = vpop.xlane.xlu0 %3032
        %3034 = vmax.xlane.f32.xlu0 %v3013
        %v3035 = vpop.xlane.xlu0 %3034
        %3036 = vmax.xlane.f32.xlu0 %v3014
        %v3037 = vpop.xlane.xlu0 %3036
        %3038 = vmax.xlane.f32.xlu0 %v3015
        %v3039 = vpop.xlane.xlu0 %3038
        %3040 = vmax.xlane.f32.xlu0 %v3016
        %v3041 = vpop.xlane.xlu0 %3040
        %3042 = vmax.xlane.f32.xlu0 %v3017
        %v3043 = vpop.xlane.xlu0 %3042
        %v3044 = vsub.f32 %v3005, %v3019
        %v3045 = vsub.f32 %v3006, %v3021
        %v3046 = vsub.f32 %v3007, %v3023
        %v3047 = vsub.f32 %v3008, %v3025
        %v3048 = vsub.f32 %v3009, %v3027
        %v3049 = vsub.f32 %v3010, %v3029
        %v3050 = vsub.f32 %v3011, %v3031
        %v3051 = vsub.f32 %v3012, %v3033
        %v3052 = vsub.f32 %v3013, %v3035
        %v3053 = vsub.f32 %v3014, %v3037
        %v3054 = vsub.f32 %v3015, %v3039
        %v3055 = vsub.f32 %v3016, %v3041
        %v3056 = vsub.f32 %v3017, %v3043
        %v3057 = vmul.f32 %v3044, 1.442695
        %v3058 = vpow.pop %v3057
        %v3059 = vmul.f32 %v3045, 1.442695
        %v3060 = vpow.pop %v3059
        %v3061 = vmul.f32 %v3046, 1.442695
        %v3062 = vpow.pop %v3061
        %v3063 = vmul.f32 %v3047, 1.442695
        %v3064 = vpow.pop %v3063
        %v3065 = vmul.f32 %v3048, 1.442695
        %v3066 = vpow.pop %v3065
        %v3067 = vmul.f32 %v3049, 1.442695
        %v3068 = vpow.pop %v3067
        %v3069 = vmul.f32 %v3050, 1.442695
        %v3070 = vpow.pop %v3069
        %v3071 = vmul.f32 %v3051, 1.442695
        %v3072 = vpow.pop %v3071
        %v3073 = vmul.f32 %v3052, 1.442695
        %v3074 = vpow.pop %v3073
        %v3075 = vmul.f32 %v3053, 1.442695
        %v3076 = vpow.pop %v3075
        %v3077 = vmul.f32 %v3054, 1.442695
        %v3078 = vpow.pop %v3077
        %v3079 = vmul.f32 %v3055, 1.442695
        %v3080 = vpow.pop %v3079
        %v3081 = vmul.f32 %v3056, 1.442695
        %v3082 = vpow.pop %v3081
        %3083 = vadd.xlane.f32.xlu0 %v3058
        %v3084 = vpop.xlane.xlu0 %3083
        %3085 = vadd.xlane.f32.xlu0 %v3060
        %v3086 = vpop.xlane.xlu0 %3085
        %3087 = vadd.xlane.f32.xlu0 %v3062
        %v3088 = vpop.xlane.xlu0 %3087
        %3089 = vadd.xlane.f32.xlu0 %v3064
        %v3090 = vpop.xlane.xlu0 %3089
        %3091 = vadd.xlane.f32.xlu0 %v3066
        %v3092 = vpop.xlane.xlu0 %3091
        %3093 = vadd.xlane.f32.xlu0 %v3068
        %v3094 = vpop.xlane.xlu0 %3093
        %3095 = vadd.xlane.f32.xlu0 %v3070
        %v3096 = vpop.xlane.xlu0 %3095
        %3097 = vadd.xlane.f32.xlu0 %v3072
        %v3098 = vpop.xlane.xlu0 %3097
        %3099 = vadd.xlane.f32.xlu0 %v3074
        %v3100 = vpop.xlane.xlu0 %3099
        %3101 = vadd.xlane.f32.xlu0 %v3076
        %v3102 = vpop.xlane.xlu0 %3101
        %3103 = vadd.xlane.f32.xlu0 %v3078
        %v3104 = vpop.xlane.xlu0 %3103
        %3105 = vadd.xlane.f32.xlu0 %v3080
        %v3106 = vpop.xlane.xlu0 %3105
        %3107 = vadd.xlane.f32.xlu0 %v3082
        %v3108 = vpop.xlane.xlu0 %3107
        %v3109 = vlog2.pop %v3084
        %v3110 = vmul.f32 %v3109, 0.6931472
        %v3111 = vlog2.pop %v3086
        %v3112 = vmul.f32 %v3111, 0.6931472
        %v3113 = vlog2.pop %v3088
        %v3114 = vmul.f32 %v3113, 0.6931472
        %v3115 = vlog2.pop %v3090
        %v3116 = vmul.f32 %v3115, 0.6931472
        %v3117 = vlog2.pop %v3092
        %v3118 = vmul.f32 %v3117, 0.6931472
        %v3119 = vlog2.pop %v3094
        %v3120 = vmul.f32 %v3119, 0.6931472
        %v3121 = vlog2.pop %v3096
        %v3122 = vmul.f32 %v3121, 0.6931472
        %v3123 = vlog2.pop %v3098
        %v3124 = vmul.f32 %v3123, 0.6931472
        %v3125 = vlog2.pop %v3100
        %v3126 = vmul.f32 %v3125, 0.6931472
        %v3127 = vlog2.pop %v3102
        %v3128 = vmul.f32 %v3127, 0.6931472
        %v3129 = vlog2.pop %v3104
        %v3130 = vmul.f32 %v3129, 0.6931472
        %v3131 = vlog2.pop %v3106
        %v3132 = vmul.f32 %v3131, 0.6931472
        %v3133 = vlog2.pop %v3108
        %v3134 = vmul.f32 %v3133, 0.6931472
        %v3135 = vadd.f32 %v3019, %v3110
        %v3136 = vadd.f32 %v3021, %v3112
        %v3137 = vadd.f32 %v3023, %v3114
        %v3138 = vadd.f32 %v3025, %v3116
        %v3139 = vadd.f32 %v3027, %v3118
        %v3140 = vadd.f32 %v3029, %v3120
        %v3141 = vadd.f32 %v3031, %v3122
        %v3142 = vadd.f32 %v3033, %v3124
        %v3143 = vadd.f32 %v3035, %v3126
        %v3144 = vadd.f32 %v3037, %v3128
        %v3145 = vadd.f32 %v3039, %v3130
        %v3146 = vadd.f32 %v3041, %v3132
        %v3147 = vadd.f32 %v3043, %v3134
        %3148 = vst [vmem:[%s397] sm:$0xff] %v2989
        %3149 = vst [vmem:[%s397 + $0x8] sm:$0xff] %v2990
        %3150 = vst [vmem:[%s397 + $0x10] sm:$0xff] %v2991
        %3151 = vst [vmem:[%s397 + $0x18] sm:$0xff] %v2992
        %3152 = vst [vmem:[%s397 + $0x20] sm:$0xff] %v2993
        %3153 = vst [vmem:[%s397 + $0x28] sm:$0xff] %v2994
        %3154 = vst [vmem:[%s397 + $0x30] sm:$0xff] %v2995
        %3155 = vst [vmem:[%s397 + $0x38] sm:$0xff] %v2996
        %3156 = vst [vmem:[%s397 + $0x40] sm:$0xff] %v2997
        %3157 = vst [vmem:[%s397 + $0x48] sm:$0xff] %v2998
        %3158 = vst [vmem:[%s397 + $0x50] sm:$0xff] %v2999
        %3159 = vst [vmem:[%s397 + $0x58] sm:$0xff] %v3000
        %3160 = vst [vmem:[%s397 + $0x60] sm:$0xff] %v3001
        %v3161 = vsub.f32 %v2989, %v3135
        %v3162 = vsub.f32 %v2990, %v3136
        %v3163 = vsub.f32 %v2991, %v3137
        %v3164 = vsub.f32 %v2992, %v3138
        %v3165 = vsub.f32 %v2993, %v3139
        %v3166 = vsub.f32 %v2994, %v3140
        %v3167 = vsub.f32 %v2995, %v3141
        %v3168 = vsub.f32 %v2996, %v3142
        %v3169 = vsub.f32 %v2997, %v3143
        %v3170 = vsub.f32 %v2998, %v3144
        %v3171 = vsub.f32 %v2999, %v3145
        %v3172 = vsub.f32 %v3000, %v3146
        %v3173 = vsub.f32 %v3001, %v3147
        %3174 = vst [vmem:[%s390] sm:$0xff] %v3161
        %3175 = vst [vmem:[%s390 + $0x8] sm:$0xff] %v3162
        %3176 = vst [vmem:[%s390 + $0x10] sm:$0xff] %v3163
        %3177 = vst [vmem:[%s390 + $0x18] sm:$0xff] %v3164
        %3178 = vst [vmem:[%s390 + $0x20] sm:$0xff] %v3165
        %3179 = vst [vmem:[%s390 + $0x28] sm:$0xff] %v3166
        %3180 = vst [vmem:[%s390 + $0x30] sm:$0xff] %v3167
        %3181 = vst [vmem:[%s390 + $0x38] sm:$0xff] %v3168
        %3182 = vst [vmem:[%s390 + $0x40] sm:$0xff] %v3169
        %3183 = vst [vmem:[%s390 + $0x48] sm:$0xff] %v3170
        %3184 = vst [vmem:[%s390 + $0x50] sm:$0xff] %v3171
        %3185 = vst [vmem:[%s390 + $0x58] sm:$0xff] %v3172
        %3186 = vst [vmem:[%s390 + $0x60] sm:$0xff] %v3173
        %s3187 = sand.u32 %s232, 1
        %s3188 = scalar_lea.sflag [#allocation4], %s3187
        %s3189 = sand.u32 %s232, 1
        %s3190 = smul.addr %s3189, 104
        %s3191 = scalar_lea.vmem [#allocation7], %s3190
        %s3192 = sand.u32 %s258, 1
        %s3193 = scalar_lea.sflag [#allocation9], %s3192
        %s3194 = sand.u32 %s258, 1
        %s3195 = smul.addr %s3194, 104
        %s3196 = scalar_lea.vmem [#allocation8], %s3195
        // Predicated region
        $region65: #{tpu_custom_call.1} parent=55 // pred_check
          %p3197 = pneg %p242
        $region66: #{tpu_custom_call.1} parent=55 // pred_check_branch
          %3199 = sbr.rel (%p3197) target = $region68
        $region67: #{tpu_custom_call.1} parent=55 // pred_region
          %s3200 = smul.u32 13, %s30
          %3202 = vsyncadd %s3188, 0
          %s3203 = smul.addr %s3200, 8
          %s3204 = scalar_lea.hbm %s9, %s3203
          %s3205 = sshll.u32 %s3191, 4
          %s3206 = int_to_ptr.vmem [resolvable:$true] %s3205
          %s3207 = sshll.u32 %s3204, 4
          %s3208 = int_to_ptr.hbm [resolvable:$true] %s3207
          %3213 = dma.vmem_to_hbm [thread:$0]  %s3206, 1664, %s3208, %s3188, 128, 128, 8
        $region68: #{tpu_custom_call.1} parent=55 // pred_fallthru
          _
        // Predicated region
        $region69: #{tpu_custom_call.1} parent=55 // pred_check
          %p3214 = pneg %p268
        $region70: #{tpu_custom_call.1} parent=55 // pred_check_branch
          %3216 = sbr.rel (%p3214) target = $region72
        $region71: #{tpu_custom_call.1} parent=55 // pred_region
          %s3217 = smul.u32 13, %s30
          %3219 = vsyncadd %s3193, 0
          %s3220 = smul.addr %s3217, 8
          %s3221 = scalar_lea.hbm %s10, %s3220
          %s3222 = sshll.u32 %s3196, 4
          %s3223 = int_to_ptr.vmem [resolvable:$true] %s3222
          %s3224 = sshll.u32 %s3221, 4
          %s3225 = int_to_ptr.hbm [resolvable:$true] %s3224
          %3230 = dma.vmem_to_hbm [thread:$0]  %s3223, 1664, %s3225, %s3193, 128, 128, 8
        $region72: #{tpu_custom_call.1} parent=55 // pred_fallthru
          _
      $region56: #{tpu_custom_call.1} parent=5 // pred_fallthru
        _
      %p3231 = scmp.le.s32.totalorder 2, %s25
      // Predicated region
      $region73: #{tpu_custom_call.1} parent=5 // pred_check
        %p3232 = pneg %p3231
      $region74: #{tpu_custom_call.1} parent=5 // pred_check_branch
        %3234 = sbr.rel (%p3232) target = $region76
      $region75: #{tpu_custom_call.1} parent=5 // pred_region
        %s3235 = ssub.s32 %s25, 2
        // Predicated region
        $region77: #{tpu_custom_call.1} parent=75 // pred_check
          %p3236 = pneg %p248
        $region78: #{tpu_custom_call.1} parent=75 // pred_check_branch
          %3238 = sbr.rel (%p3236) target = $region80
        $region79: #{tpu_custom_call.1} parent=75 // pred_region
          %s3239 = sand.u32 %s233, 1
          %s3240 = scalar_lea.sflag [#allocation4], %s3239
          %s3241 = sand.u32 %s233, 1
          %s3242 = smul.addr %s3241, 104
          %s3243 = scalar_lea.vmem [#allocation7], %s3242
          %3245 = dma.done %s3240, 1664
        $region80: #{tpu_custom_call.1} parent=75 // pred_fallthru
          _
        // Predicated region
        $region81: #{tpu_custom_call.1} parent=75 // pred_check
          %p3246 = pneg %p274
        $region82: #{tpu_custom_call.1} parent=75 // pred_check_branch
          %3248 = sbr.rel (%p3246) target = $region84
        $region83: #{tpu_custom_call.1} parent=75 // pred_region
          %s3249 = sand.u32 %s259, 1
          %s3250 = scalar_lea.sflag [#allocation9], %s3249
          %s3251 = sand.u32 %s259, 1
          %s3252 = smul.addr %s3251, 104
          %s3253 = scalar_lea.vmem [#allocation8], %s3252
          %3255 = dma.done %s3250, 1664
        $region84: #{tpu_custom_call.1} parent=75 // pred_fallthru
          _
      $region76: #{tpu_custom_call.1} parent=5 // pred_fallthru
        _
    $region6: #{tpu_custom_call.1} parent=1 // loop_footer
      %s29 = sadd.s32 1, %s25
    $region7: #{tpu_custom_call.1} parent=1 // loop_footer_branch
      %24 = sbr.rel target = $region3
    $region8: #{tpu_custom_call.1} parent=1 // loop_exit
      _
    %3256 = vsyncpa [#allocation3], 1
    %s3257 = scalar_lea.sflag [#allocation3], 1
    %3258 = vsyncpa %s3257, 1
    %3259 = vsyncpa [#allocation6], 1
    %3260 = vsyncpa [#allocation4], 1
    %s3261 = scalar_lea.sflag [#allocation4], 1
    %3262 = vsyncpa %s3261, 1
    %3263 = vsyncpa [#allocation9], 1
    %s3264 = scalar_lea.sflag [#allocation9], 1
    %3265 = vsyncpa %s3264, 1

</llo_original>
